<compile_context>
chip_gen: v6e
topology: v6e:2x2x1
jax: 0.10.0
libtpu: 0.0.40
codegen_flags: <defaults>
</compile_context>

<pallas_src>
import jax
import jax.numpy as jnp
from jax.experimental import pallas as pl
from jax.experimental.pallas import tpu as pltpu


NUM_CLASSES = 100
LATENT = 32

_PARAM_ORDER = (
    "w1cls", "b1",          # encoder conv1 (as dense) || classifier(x) weight
    "w2", "b2",             # encoder conv2 as dense
    "w3", "b3",             # encoder linear -> latent (padded to 128)
    "l2cdec", "y_b",        # latent2classifier || decoder layer-1 weight, fused bias
    "dec_b1",               # decoder layer-1 bias
    "dec_w2", "dec_b2",     # decoder layer 2 -> flat image
)


def _round_up(n, m):
    return ((n + m - 1) // m) * m


# ----------------------------------------------------------------------------
# Single fused Pallas kernel: entire LCN100plain forward
# ----------------------------------------------------------------------------
def _fused_forward_kernel(x_ref, w1cls_ref, b1_ref, w2_ref, b2_ref, w3_ref,
                          b3_ref, l2cdec_ref, yb_ref, db1_ref, dw2_ref,
                          db2_ref, y_ref, xhat_ref):
    f32 = jnp.float32
    bf16 = jnp.bfloat16

    # Flattened NCHW input rows for this M tile (bf16 operand, f32 accum).
    xb = x_ref[...].astype(bf16)                                   # (bm, 1024)

    # ---- one MXU pass over x: encoder conv1 (dense) || classifier(x) branch --
    xw = jnp.dot(xb, w1cls_ref[...], preferred_element_type=f32)   # (bm, 640)
    h1 = jnp.maximum(xw[:, :512] + b1_ref[...], 0.0)               # conv1+relu
    y_x = xw[:, 512:]                                              # (bm, 128)

    # ---- encoder conv2 (dense) + linear -> latent ----
    h2 = jnp.dot(h1.astype(bf16), w2_ref[...],
                 preferred_element_type=f32) + b2_ref[...]
    h2 = jnp.maximum(h2, 0.0)                                      # (bm, 256)
    l = jnp.dot(h2.astype(bf16), w3_ref[...],
                preferred_element_type=f32) + b3_ref[...]
    l = jnp.maximum(l, 0.0)                                        # (bm, 128) pad
    lb = l.astype(bf16)

    # ---- one MXU pass over latent: latent2classifier || decoder layer 1 ----
    lw = jnp.dot(lb, l2cdec_ref[...], preferred_element_type=f32)  # (bm, 384)

    # yHat = classifier(x) + latent2classifier(l) + fused bias
    y_ref[...] = (y_x + lw[:, :128] + yb_ref[...]).astype(y_ref.dtype)

    # ---- plaindecoder: latent -> 256 -> flat image ----
    d = jnp.maximum(lw[:, 128:] + db1_ref[...], 0.0)               # (bm, 256)
    xh = jnp.dot(d.astype(bf16), dw2_ref[...],
                 preferred_element_type=f32) + db2_ref[...]
    xhat_ref[...] = xh.astype(xhat_ref.dtype)                      # (bm, 1024)


# ----------------------------------------------------------------------------
# Tiling / driver
# ----------------------------------------------------------------------------
def _vmem_capacity_bytes():
    try:
        return int(pltpu.get_tpu_info().vmem_capacity_bytes)
    except Exception:
        return 0


def _choose_bm(M):
    """8-aligned M-tile: bounded VMEM, >=2 grid steps for non-tiny batches."""
    m8 = _round_up(max(M, 1), 8)
    if m8 <= 256:
        return m8                                  # tiny batch: single block
    if m8 <= 512:
        # split into exactly 2 blocks so v7x's two TensorCores both get work
        return _round_up((m8 + 1) // 2, 8)
    bm = 512
    # bm=1024 only on 128-MiB-VMEM parts (v5e/v6e) and only if >=2 grid steps
    if m8 >= 2048 and _vmem_capacity_bytes() >= 100 * 1024 * 1024:
        bm = 1024
    return bm


def _fused_call(params, x_flat):
    M, K = x_flat.shape
    ncls_p = params["y_b"].shape[1]        # 128 (padded classes)
    dec_out = params["dec_b2"].shape[1]    # 1024 (flat image)

    bm = _choose_bm(M)
    m_pad = _round_up(M, bm)
    if m_pad != M:
        x_flat = jnp.pad(x_flat, ((0, m_pad - M), (0, 0)))
    grid = (m_pad // bm,)

    def row_map(i):
        return (i, 0)

    def fixed_map(i):
        return (0, 0)

    # NOTE: weight blocks are constant across the grid; their default double
    # buffer costs only ~2 MiB bf16 total, well within the VMEM budget, so we
    # skip pipeline_mode overrides.
    in_specs = [pl.BlockSpec((bm, K), row_map)]
    in_specs += [pl.BlockSpec(params[k].shape, fixed_map) for k in _PARAM_ORDER]

    out_specs = [pl.BlockSpec((bm, ncls_p), row_map),
                 pl.BlockSpec((bm, dec_out), row_map)]
    out_shape = (jax.ShapeDtypeStruct((m_pad, ncls_p), jnp.float32),
                 jax.ShapeDtypeStruct((m_pad, dec_out), jnp.float32))

    vmem_limit = (40 if bm <= 512 else 64) * 1024 * 1024

    y_pad, xhat = pl.pallas_call(
        _fused_forward_kernel,
        out_shape=out_shape,
        grid_spec=pl.GridSpec(
            grid=grid,
            in_specs=in_specs,
            out_specs=out_specs,
        ),
        compiler_params=pltpu.CompilerParams(
            dimension_semantics=("parallel",),   # M rows independent
            vmem_limit_bytes=vmem_limit),
    )(x_flat, *[params[k] for k in _PARAM_ORDER])

    return y_pad[:M], xhat[:M]


# ----------------------------------------------------------------------------
# Parameter construction (one-time, outside the forward path)
# ----------------------------------------------------------------------------
def _conv_as_dense(w_oihw, b, H, W, stride, pad):
    """Exact dense-matrix form of a Conv2d (NCHW in, NCHW out, both flattened)."""
    Cout, Cin, kh, kw = w_oihw.shape
    eye = jnp.eye(Cin * H * W, dtype=jnp.float32).reshape(Cin * H * W, Cin, H, W)
    out = jax.lax.conv_general_dilated(
        eye, w_oihw, window_strides=(stride, stride),
        padding=((pad, pad), (pad, pad)),
        dimension_numbers=("NCHW", "OIHW", "NCHW"))
    _, _, Ho, Wo = out.shape
    w_dense = out.reshape(Cin * H * W, Cout * Ho * Wo)          # (in_flat, out_flat)
    b_dense = jnp.repeat(b, Ho * Wo)[None, :]                   # (1, out_flat)
    return w_dense, b_dense, Ho, Wo


def _pad_to(w, rows, cols):
    out = jnp.zeros((rows, cols), w.dtype)
    return out.at[: w.shape[0], : w.shape[1]].set(w)


def make_params(key, *, cin=4, hw=16, latent=LATENT, num_classes=NUM_CLASSES):
    ks = jax.random.split(key, 8)
    s = 0.05
    lat_p = _round_up(latent, 128)          # 128
    ncls_p = _round_up(num_classes, 128)    # 128
    x_flat = cin * hw * hw                  # 1024

    # encoder: conv 4->8 s2 p1, conv 8->16 s2 p1, linear (16*4*4)->latent
    enc_w1 = s * jax.random.normal(ks[0], (8, cin, 3, 3), jnp.float32)
    enc_b1 = jnp.zeros((8,), jnp.float32)
    enc_w2 = s * jax.random.normal(ks[1], (16, 8, 3, 3), jnp.float32)
    enc_b2 = jnp.zeros((16,), jnp.float32)
    w1d, b1d, h1o, w1o = _conv_as_dense(enc_w1, enc_b1, hw, hw, 2, 1)   # (1024, 512)
    w2d, b2d, _, _ = _conv_as_dense(enc_w2, enc_b2, h1o, w1o, 2, 1)     # (512, 256)

    enc_flat = 16 * (hw // 4) * (hw // 4)                               # 256
    enc_w3 = s * jax.random.normal(ks[2], (enc_flat, latent), jnp.float32)
    enc_b3 = jnp.zeros((1, latent), jnp.float32)

    # latent2classifier / classifier
    l2c_w = s * jax.random.normal(ks[3], (latent, num_classes), jnp.float32)
    l2c_b = jnp.zeros((1, num_classes), jnp.float32)
    cls_w = s * jax.random.normal(ks[4], (x_flat, num_classes), jnp.float32)
    cls_b = jnp.zeros((1, num_classes), jnp.float32)

    # plaindecoder: latent -> 256 -> flat(x)
    dec_w1 = s * jax.random.normal(ks[5], (latent, 256), jnp.float32)
    dec_b1 = jnp.zeros((1, 256), jnp.float32)
    dec_w2 = s * jax.random.normal(ks[6], (256, x_flat), jnp.float32)
    dec_b2 = jnp.zeros((1, x_flat), jnp.float32)

    # shared-LHS weight concats: one MXU pass over x and one over the latent
    w1cls = jnp.concatenate(
        [w1d, _pad_to(cls_w, x_flat, ncls_p)], axis=1)                  # (1024, 640)
    l2cdec = jnp.concatenate(
        [_pad_to(l2c_w, lat_p, ncls_p), _pad_to(dec_w1, lat_p, 256)],
        axis=1)                                                         # (128, 384)

    bf16 = jnp.bfloat16
    return {
        "w1cls": w1cls.astype(bf16), "b1": b1d,
        "w2": w2d.astype(bf16), "b2": b2d,
        "w3": _pad_to(enc_w3, enc_flat, lat_p).astype(bf16),
        "b3": _pad_to(enc_b3, 1, lat_p),
        "l2cdec": l2cdec.astype(bf16),
        "y_b": _pad_to(l2c_b + cls_b, 1, ncls_p),
        "dec_b1": dec_b1,
        "dec_w2": dec_w2.astype(bf16),
        "dec_b2": dec_b2,
    }


# ----------------------------------------------------------------------------
# LCN100plain forward
# ----------------------------------------------------------------------------
def lcn100plain_forward(params, x, num_classes=NUM_CLASSES):
    N, C, H, W = x.shape
    x_flat = x.reshape(N, -1).astype(jnp.float32)      # NCHW flatten (no transposes)
    y_pad, xhat_flat = _fused_call(params, x_flat)
    y_hat = y_pad[:, :num_classes]                     # drop lane padding (128->100)
    x_hat = xhat_flat.reshape(N, C, H, W)
    return [y_hat, x_hat]


if __name__ == "__main__":
    key = jax.random.PRNGKey(0)
    k_param, k_x = jax.random.split(key)

    params = make_params(k_param, cin=4, hw=16, latent=LATENT,
                         num_classes=NUM_CLASSES)
    x = jax.random.normal(k_x, (2, 4, 16, 16), jnp.float32)   # NCHW, like PyTorch

    fwd = jax.jit(lcn100plain_forward)
    y_hat, x_hat = fwd(params, x)
    jax.block_until_ready(y_hat)
    jax.block_until_ready(x_hat)

    assert y_hat.shape == (2, NUM_CLASSES), y_hat.shape
    assert x_hat.shape == (2, 4, 16, 16), x_hat.shape
    print("KERNEL_OK")
</pallas_src>

<mosaic_0001>
module attributes {stable_mosaic.version = 11 : i64} {
  func.func @_fused_forward_kernel(%arg0: i32, %arg1: memref<8x1024xf32, #tpu.memory_space<vmem>>, %arg2: memref<1024x640xbf16, #tpu.memory_space<vmem>>, %arg3: memref<1x512xf32, #tpu.memory_space<vmem>>, %arg4: memref<512x256xbf16, #tpu.memory_space<vmem>>, %arg5: memref<1x256xf32, #tpu.memory_space<vmem>>, %arg6: memref<256x128xbf16, #tpu.memory_space<vmem>>, %arg7: memref<1x128xf32, #tpu.memory_space<vmem>>, %arg8: memref<128x384xbf16, #tpu.memory_space<vmem>>, %arg9: memref<1x128xf32, #tpu.memory_space<vmem>>, %arg10: memref<1x256xf32, #tpu.memory_space<vmem>>, %arg11: memref<256x1024xbf16, #tpu.memory_space<vmem>>, %arg12: memref<1x1024xf32, #tpu.memory_space<vmem>>, %arg13: memref<8x128xf32, #tpu.memory_space<vmem>>, %arg14: memref<8x1024xf32, #tpu.memory_space<vmem>>) attributes {dimension_semantics = [#tpu.dimension_semantics<parallel>], iteration_bounds = array<i64: 1>, scalar_prefetch = 0 : i64, scratch_operands = 0 : i64, tpu.core_type = #tpu.core_type<tc>, window_params = [{transform_indices = @transform_0, window_bounds = array<i64: 8, 1024>}, {pipeline_mode = #tpu.pipeline_mode<synchronous>, transform_indices = @transform_1, window_bounds = array<i64: 1024, 640>}, {pipeline_mode = #tpu.pipeline_mode<synchronous>, transform_indices = @transform_2, window_bounds = array<i64: 1, 512>}, {pipeline_mode = #tpu.pipeline_mode<synchronous>, transform_indices = @transform_3, window_bounds = array<i64: 512, 256>}, {pipeline_mode = #tpu.pipeline_mode<synchronous>, transform_indices = @transform_4, window_bounds = array<i64: 1, 256>}, {pipeline_mode = #tpu.pipeline_mode<synchronous>, transform_indices = @transform_5, window_bounds = array<i64: 256, 128>}, {pipeline_mode = #tpu.pipeline_mode<synchronous>, transform_indices = @transform_6, window_bounds = array<i64: 1, 128>}, {pipeline_mode = #tpu.pipeline_mode<synchronous>, transform_indices = @transform_7, window_bounds = array<i64: 128, 384>}, {pipeline_mode = #tpu.pipeline_mode<synchronous>, transform_indices = @transform_8, window_bounds = array<i64: 1, 128>}, {pipeline_mode = #tpu.pipeline_mode<synchronous>, transform_indices = @transform_9, window_bounds = array<i64: 1, 256>}, {pipeline_mode = #tpu.pipeline_mode<synchronous>, transform_indices = @transform_10, window_bounds = array<i64: 256, 1024>}, {pipeline_mode = #tpu.pipeline_mode<synchronous>, transform_indices = @transform_11, window_bounds = array<i64: 1, 1024>}, {transform_indices = @transform_12, window_bounds = array<i64: 8, 128>}, {transform_indices = @transform_13, window_bounds = array<i64: 8, 1024>}]} {
    %c0 = arith.constant 0 : index
    %c0_0 = arith.constant 0 : index
    %0 = vector.load %arg1[%c0, %c0_0] : memref<8x1024xf32, #tpu.memory_space<vmem>>, vector<8x1024xf32>
    %1 = arith.truncf %0 : vector<8x1024xf32> to vector<8x1024xbf16>
    %c0_1 = arith.constant 0 : index
    %c0_2 = arith.constant 0 : index
    %2 = vector.load %arg2[%c0_1, %c0_2] : memref<1024x640xbf16, #tpu.memory_space<vmem>>, vector<1024x640xbf16>
    %cst = arith.constant dense<0.000000e+00> : vector<8x640xf32>
    %3 = tpu.matmul %1, %2, %cst {dimension_numbers = #tpu.dot_dimension_numbers<[1], [0], [0], [1], [0, 0, 1, 1], [], []>} : vector<8x1024xbf16>, vector<1024x640xbf16>, vector<8x640xf32> -> vector<8x640xf32>
    %4 = vector.extract_strided_slice %3 {offsets = [0, 0], sizes = [8, 512], strides = [1, 1]} : vector<8x640xf32> to vector<8x512xf32>
    %c0_3 = arith.constant 0 : index
    %c0_4 = arith.constant 0 : index
    %5 = vector.load %arg3[%c0_3, %c0_4] : memref<1x512xf32, #tpu.memory_space<vmem>>, vector<1x512xf32>
    %6 = vector.broadcast %5 : vector<1x512xf32> to vector<8x512xf32>
    %7 = arith.addf %4, %6 : vector<8x512xf32>
    %cst_5 = arith.constant 0.000000e+00 : f32
    %8 = vector.broadcast %cst_5 : f32 to vector<8x512xf32>
    %9 = arith.maximumf %7, %8 : vector<8x512xf32>
    %10 = vector.extract_strided_slice %3 {offsets = [0, 512], sizes = [8, 128], strides = [1, 1]} : vector<8x640xf32> to vector<8x128xf32>
    %11 = arith.truncf %9 : vector<8x512xf32> to vector<8x512xbf16>
    %c0_6 = arith.constant 0 : index
    %c0_7 = arith.constant 0 : index
    %12 = vector.load %arg4[%c0_6, %c0_7] : memref<512x256xbf16, #tpu.memory_space<vmem>>, vector<512x256xbf16>
    %cst_8 = arith.constant dense<0.000000e+00> : vector<8x256xf32>
    %13 = tpu.matmul %11, %12, %cst_8 {dimension_numbers = #tpu.dot_dimension_numbers<[1], [0], [0], [1], [0, 0, 1, 1], [], []>} : vector<8x512xbf16>, vector<512x256xbf16>, vector<8x256xf32> -> vector<8x256xf32>
    %c0_9 = arith.constant 0 : index
    %c0_10 = arith.constant 0 : index
    %14 = vector.load %arg5[%c0_9, %c0_10] : memref<1x256xf32, #tpu.memory_space<vmem>>, vector<1x256xf32>
    %15 = vector.broadcast %14 : vector<1x256xf32> to vector<8x256xf32>
    %16 = arith.addf %13, %15 : vector<8x256xf32>
    %cst_11 = arith.constant 0.000000e+00 : f32
    %17 = vector.broadcast %cst_11 : f32 to vector<8x256xf32>
    %18 = arith.maximumf %16, %17 : vector<8x256xf32>
    %19 = arith.truncf %18 : vector<8x256xf32> to vector<8x256xbf16>
    %c0_12 = arith.constant 0 : index
    %c0_13 = arith.constant 0 : index
    %20 = vector.load %arg6[%c0_12, %c0_13] : memref<256x128xbf16, #tpu.memory_space<vmem>>, vector<256x128xbf16>
    %cst_14 = arith.constant dense<0.000000e+00> : vector<8x128xf32>
    %21 = tpu.matmul %19, %20, %cst_14 {dimension_numbers = #tpu.dot_dimension_numbers<[1], [0], [0], [1], [0, 0, 1, 1], [], []>} : vector<8x256xbf16>, vector<256x128xbf16>, vector<8x128xf32> -> vector<8x128xf32>
    %c0_15 = arith.constant 0 : index
    %c0_16 = arith.constant 0 : index
    %22 = vector.load %arg7[%c0_15, %c0_16] : memref<1x128xf32, #tpu.memory_space<vmem>>, vector<1x128xf32>
    %23 = vector.broadcast %22 : vector<1x128xf32> to vector<8x128xf32>
    %24 = arith.addf %21, %23 : vector<8x128xf32>
    %cst_17 = arith.constant 0.000000e+00 : f32
    %25 = vector.broadcast %cst_17 : f32 to vector<8x128xf32>
    %26 = arith.maximumf %24, %25 : vector<8x128xf32>
    %27 = arith.truncf %26 : vector<8x128xf32> to vector<8x128xbf16>
    %c0_18 = arith.constant 0 : index
    %c0_19 = arith.constant 0 : index
    %28 = vector.load %arg8[%c0_18, %c0_19] : memref<128x384xbf16, #tpu.memory_space<vmem>>, vector<128x384xbf16>
    %cst_20 = arith.constant dense<0.000000e+00> : vector<8x384xf32>
    %29 = tpu.matmul %27, %28, %cst_20 {dimension_numbers = #tpu.dot_dimension_numbers<[1], [0], [0], [1], [0, 0, 1, 1], [], []>} : vector<8x128xbf16>, vector<128x384xbf16>, vector<8x384xf32> -> vector<8x384xf32>
    %30 = vector.extract_strided_slice %29 {offsets = [0, 0], sizes = [8, 128], strides = [1, 1]} : vector<8x384xf32> to vector<8x128xf32>
    %31 = arith.addf %10, %30 : vector<8x128xf32>
    %c0_21 = arith.constant 0 : index
    %c0_22 = arith.constant 0 : index
    %32 = vector.load %arg9[%c0_21, %c0_22] : memref<1x128xf32, #tpu.memory_space<vmem>>, vector<1x128xf32>
    %33 = vector.broadcast %32 : vector<1x128xf32> to vector<8x128xf32>
    %34 = arith.addf %31, %33 : vector<8x128xf32>
    %c0_23 = arith.constant 0 : index
    %c0_24 = arith.constant 0 : index
    %35 = vector.load %arg13[%c0_23, %c0_24] : memref<8x128xf32, #tpu.memory_space<vmem>>, vector<8x128xf32>
    tpu.vector_store %arg13[%c0_23, %c0_24], %34 {strides = array<i32>} : memref<8x128xf32, #tpu.memory_space<vmem>>, vector<8x128xf32>,
    %36 = vector.extract_strided_slice %29 {offsets = [0, 128], sizes = [8, 256], strides = [1, 1]} : vector<8x384xf32> to vector<8x256xf32>
    %c0_25 = arith.constant 0 : index
    %c0_26 = arith.constant 0 : index
    %37 = vector.load %arg10[%c0_25, %c0_26] : memref<1x256xf32, #tpu.memory_space<vmem>>, vector<1x256xf32>
    %38 = vector.broadcast %37 : vector<1x256xf32> to vector<8x256xf32>
    %39 = arith.addf %36, %38 : vector<8x256xf32>
    %cst_27 = arith.constant 0.000000e+00 : f32
    %40 = vector.broadcast %cst_27 : f32 to vector<8x256xf32>
    %41 = arith.maximumf %39, %40 : vector<8x256xf32>
    %42 = arith.truncf %41 : vector<8x256xf32> to vector<8x256xbf16>
    %c0_28 = arith.constant 0 : index
    %c0_29 = arith.constant 0 : index
    %43 = vector.load %arg11[%c0_28, %c0_29] : memref<256x1024xbf16, #tpu.memory_space<vmem>>, vector<256x1024xbf16>
    %cst_30 = arith.constant dense<0.000000e+00> : vector<8x1024xf32>
    %44 = tpu.matmul %42, %43, %cst_30 {dimension_numbers = #tpu.dot_dimension_numbers<[1], [0], [0], [1], [0, 0, 1, 1], [], []>} : vector<8x256xbf16>, vector<256x1024xbf16>, vector<8x1024xf32> -> vector<8x1024xf32>
    %c0_31 = arith.constant 0 : index
    %c0_32 = arith.constant 0 : index
    %45 = vector.load %arg12[%c0_31, %c0_32] : memref<1x1024xf32, #tpu.memory_space<vmem>>, vector<1x1024xf32>
    %46 = vector.broadcast %45 : vector<1x1024xf32> to vector<8x1024xf32>
    %47 = arith.addf %44, %46 : vector<8x1024xf32>
    %c0_33 = arith.constant 0 : index
    %c0_34 = arith.constant 0 : index
    %48 = vector.load %arg14[%c0_33, %c0_34] : memref<8x1024xf32, #tpu.memory_space<vmem>>, vector<8x1024xf32>
    tpu.vector_store %arg14[%c0_33, %c0_34], %47 {strides = array<i32>} : memref<8x1024xf32, #tpu.memory_space<vmem>>, vector<8x1024xf32>,
    return
  }
  func.func @transform_0(%arg0: i32) -> (i32, i32) {
    %c0_i32 = arith.constant 0 : i32
    %c0_i32_0 = arith.constant 0 : i32
    return %arg0, %c0_i32 : i32, i32
  }
  func.func @transform_1(%arg0: i32) -> (i32, i32) {
    %c0_i32 = arith.constant 0 : i32
    %c0_i32_0 = arith.constant 0 : i32
    %c0_i32_1 = arith.constant 0 : i32
    return %c0_i32, %c0_i32_0 : i32, i32
  }
  func.func @transform_2(%arg0: i32) -> (i32, i32) {
    %c0_i32 = arith.constant 0 : i32
    %c0_i32_0 = arith.constant 0 : i32
    %c0_i32_1 = arith.constant 0 : i32
    return %c0_i32, %c0_i32_0 : i32, i32
  }
  func.func @transform_3(%arg0: i32) -> (i32, i32) {
    %c0_i32 = arith.constant 0 : i32
    %c0_i32_0 = arith.constant 0 : i32
    %c0_i32_1 = arith.constant 0 : i32
    return %c0_i32, %c0_i32_0 : i32, i32
  }
  func.func @transform_4(%arg0: i32) -> (i32, i32) {
    %c0_i32 = arith.constant 0 : i32
    %c0_i32_0 = arith.constant 0 : i32
    %c0_i32_1 = arith.constant 0 : i32
    return %c0_i32, %c0_i32_0 : i32, i32
  }
  func.func @transform_5(%arg0: i32) -> (i32, i32) {
    %c0_i32 = arith.constant 0 : i32
    %c0_i32_0 = arith.constant 0 : i32
    %c0_i32_1 = arith.constant 0 : i32
    return %c0_i32, %c0_i32_0 : i32, i32
  }
  func.func @transform_6(%arg0: i32) -> (i32, i32) {
    %c0_i32 = arith.constant 0 : i32
    %c0_i32_0 = arith.constant 0 : i32
    %c0_i32_1 = arith.constant 0 : i32
    return %c0_i32, %c0_i32_0 : i32, i32
  }
  func.func @transform_7(%arg0: i32) -> (i32, i32) {
    %c0_i32 = arith.constant 0 : i32
    %c0_i32_0 = arith.constant 0 : i32
    %c0_i32_1 = arith.constant 0 : i32
    return %c0_i32, %c0_i32_0 : i32, i32
  }
  func.func @transform_8(%arg0: i32) -> (i32, i32) {
    %c0_i32 = arith.constant 0 : i32
    %c0_i32_0 = arith.constant 0 : i32
    %c0_i32_1 = arith.constant 0 : i32
    return %c0_i32, %c0_i32_0 : i32, i32
  }
  func.func @transform_9(%arg0: i32) -> (i32, i32) {
    %c0_i32 = arith.constant 0 : i32
    %c0_i32_0 = arith.constant 0 : i32
    %c0_i32_1 = arith.constant 0 : i32
    return %c0_i32, %c0_i32_0 : i32, i32
  }
  func.func @transform_10(%arg0: i32) -> (i32, i32) {
    %c0_i32 = arith.constant 0 : i32
    %c0_i32_0 = arith.constant 0 : i32
    %c0_i32_1 = arith.constant 0 : i32
    return %c0_i32, %c0_i32_0 : i32, i32
  }
  func.func @transform_11(%arg0: i32) -> (i32, i32) {
    %c0_i32 = arith.constant 0 : i32
    %c0_i32_0 = arith.constant 0 : i32
    %c0_i32_1 = arith.constant 0 : i32
    return %c0_i32, %c0_i32_0 : i32, i32
  }
  func.func @transform_12(%arg0: i32) -> (i32, i32) {
    %c0_i32 = arith.constant 0 : i32
    %c0_i32_0 = arith.constant 0 : i32
    return %arg0, %c0_i32 : i32, i32
  }
  func.func @transform_13(%arg0: i32) -> (i32, i32) {
    %c0_i32 = arith.constant 0 : i32
    %c0_i32_0 = arith.constant 0 : i32
    return %arg0, %c0_i32 : i32, i32
  }
}

</mosaic_0001>

<llo_original>
// kernel: lcn100plain_forward.1
$region0: #{lcn100plain_forward.1}
  #allocation0 [shape = 'u32[]', space=smem, size = 0x4, offset = 0x4, fixed_abs, tag = 'smem constant byte address 0x4 - core index']
  #allocation1 [shape = 'u32[144,128]{1,0:T(1,128)}', space=vmem, size = 0x12000, scoped, tag = 'internal scratch']
  %s0 = inlined_call_operand.vmem [shape: f32[8,1024], index: 0, kind: input, shape index: {}]
  %s1 = inlined_call_operand.hbm [shape: bf16[1024,640], index: 1, kind: input, shape index: {}]
  %s2 = inlined_call_operand.hbm [shape: f32[1,512], index: 2, kind: input, shape index: {}]
  %s3 = inlined_call_operand.hbm [shape: bf16[512,256], index: 3, kind: input, shape index: {}]
  %s4 = inlined_call_operand.hbm [shape: f32[1,256], index: 4, kind: input, shape index: {}]
  %s5 = inlined_call_operand.hbm [shape: bf16[256,128], index: 5, kind: input, shape index: {}]
  %s6 = inlined_call_operand.hbm [shape: f32[1,128], index: 6, kind: input, shape index: {}]
  %s7 = inlined_call_operand.hbm [shape: bf16[128,384], index: 7, kind: input, shape index: {}]
  %s8 = inlined_call_operand.hbm [shape: f32[1,128], index: 8, kind: input, shape index: {}]
  %s9 = inlined_call_operand.hbm [shape: f32[1,256], index: 9, kind: input, shape index: {}]
  %s10 = inlined_call_operand.hbm [shape: bf16[256,1024], index: 10, kind: input, shape index: {}]
  %s11 = inlined_call_operand.hbm [shape: f32[1,1024], index: 11, kind: input, shape index: {}]
  %s12 = inlined_call_operand.vmem [shape: f32[8,128], index: 12, kind: output, shape index: {0}]
  %s13 = inlined_call_operand.vmem [shape: f32[8,1024], index: 13, kind: output, shape index: {1}]
  %14 = xla_tuple %s12, %s13
  %s15 = sld [smem:[#allocation0]]
  $region110: #{lcn100plain_forward.1} parent=0
    _
  %s17 = ssub.s32 1, %s15
  %s18 = scalar_select 0, %s17, %s15
  $region1: #{lcn100plain_forward.1} parent=0
    #allocation2 [shape = 'u8[1310720]{0}', space=vmem, size = 0x140000, scoped, tag = 'input window, operand 1, single buffered']
    #allocation3 [shape = 's32[1]{0}', space=sflag, size = 0x4, scoped, tag = 'scoped memory for lcn100plain_forward.1']
    #allocation4 [shape = 'u8[2048]{0}', space=vmem, size = 0x800, scoped, tag = 'input window, operand 2, single buffered']
    #allocation5 [shape = 's32[1]{0}', space=sflag, size = 0x4, scoped, tag = 'scoped memory for lcn100plain_forward.1']
    #allocation6 [shape = 'u8[262144]{0}', space=vmem, size = 0x40000, scoped, tag = 'input window, operand 3, single buffered']
    #allocation7 [shape = 'u8[1024]{0}', space=vmem, size = 0x400, scoped, tag = 'input window, operand 4, single buffered']
    #allocation8 [shape = 's32[1]{0}', space=sflag, size = 0x4, scoped, tag = 'scoped memory for lcn100plain_forward.1']
    #allocation9 [shape = 'u8[65536]{0}', space=vmem, size = 0x10000, scoped, tag = 'input window, operand 5, single buffered']
    #allocation10 [shape = 'u8[512]{0}', space=vmem, size = 0x400, scoped, tag = 'input window, operand 6, single buffered']
    #allocation11 [shape = 's32[1]{0}', space=sflag, size = 0x4, scoped, tag = 'scoped memory for lcn100plain_forward.1']
    #allocation12 [shape = 'u8[98304]{0}', space=vmem, size = 0x18000, scoped, tag = 'input window, operand 7, single buffered']
    #allocation13 [shape = 'u8[512]{0}', space=vmem, size = 0x400, scoped, tag = 'input window, operand 8, single buffered']
    #allocation14 [shape = 's32[1]{0}', space=sflag, size = 0x4, scoped, tag = 'scoped memory for lcn100plain_forward.1']
    #allocation15 [shape = 'u8[1024]{0}', space=vmem, size = 0x400, scoped, tag = 'input window, operand 9, single buffered']
    #allocation16 [shape = 'u8[524288]{0}', space=vmem, size = 0x80000, scoped, tag = 'input window, operand 10, single buffered']
    #allocation17 [shape = 's32[1]{0}', space=sflag, size = 0x4, scoped, tag = 'scoped memory for lcn100plain_forward.1']
    #allocation18 [shape = 'u8[4096]{0}', space=vmem, size = 0x1000, scoped, tag = 'input window, operand 11, single buffered']
    %19 = vsyncpa [#allocation3], 0
    %20 = vsyncpa [#allocation5], 0
    %21 = vsyncpa [#allocation8], 0
    %22 = vsyncpa [#allocation11], 0
    %23 = vsyncpa [#allocation14], 0
    %24 = vsyncpa [#allocation17], 0
    // Predicated region
    $region2: #{lcn100plain_forward.1} parent=1 // pred_check
      _
    $region3: #{lcn100plain_forward.1} parent=1 // pred_check_branch
      %26 = sbr.rel (0) target = $region5
    $region4: #{lcn100plain_forward.1} parent=1 // pred_region
      _
    $region5: #{lcn100plain_forward.1} parent=1 // pred_fallthru
      _
    // Predicated region
    $region6: #{lcn100plain_forward.1} parent=1 // pred_check
      _
    $region7: #{lcn100plain_forward.1} parent=1 // pred_check_branch
      %28 = sbr.rel (0) target = $region9
    $region8: #{lcn100plain_forward.1} parent=1 // pred_region
      %s30 = ssub.s32 40960, 40960
      %31 = vsyncadd [#allocation3], %s30
      %s32 = sshll.u32 [#allocation2], 4
      %s33 = int_to_ptr.vmem [resolvable:$true] %s32
      %38 = dma.hbm_to_vmem [thread:$0]  %s1, 40960, %s33, [#allocation3], 320, 320, 20
    $region9: #{lcn100plain_forward.1} parent=1 // pred_fallthru
      _
    // Predicated region
    $region10: #{lcn100plain_forward.1} parent=1 // pred_check
      _
    $region11: #{lcn100plain_forward.1} parent=1 // pred_check_branch
      %40 = sbr.rel (0) target = $region13
    $region12: #{lcn100plain_forward.1} parent=1 // pred_region
      %s42 = ssub.s32 64, 64
      %43 = vsyncadd [#allocation5], %s42
      %s45 = sshll.u32 [#allocation4], 4
      %s46 = int_to_ptr.vmem [resolvable:$true] %s45
      %48 = dma.hbm_to_vmem [thread:$0]  %s2, 64, %s46, [#allocation5]
    $region13: #{lcn100plain_forward.1} parent=1 // pred_fallthru
      _
    // Predicated region
    $region14: #{lcn100plain_forward.1} parent=1 // pred_check
      _
    $region15: #{lcn100plain_forward.1} parent=1 // pred_check_branch
      %50 = sbr.rel (0) target = $region17
    $region16: #{lcn100plain_forward.1} parent=1 // pred_region
      %s52 = ssub.s32 8192, 8192
      %53 = vsyncadd [#allocation5], %s52
      %s54 = sshll.u32 [#allocation6], 4
      %s55 = int_to_ptr.vmem [resolvable:$true] %s54
      %60 = dma.hbm_to_vmem [thread:$0]  %s3, 8192, %s55, [#allocation5], 128, 128, 8
    $region17: #{lcn100plain_forward.1} parent=1 // pred_fallthru
      _
    // Predicated region
    $region18: #{lcn100plain_forward.1} parent=1 // pred_check
      _
    $region19: #{lcn100plain_forward.1} parent=1 // pred_check_branch
      %62 = sbr.rel (0) target = $region21
    $region20: #{lcn100plain_forward.1} parent=1 // pred_region
      %s64 = ssub.s32 32, 32
      %65 = vsyncadd [#allocation8], %s64
      %s67 = sshll.u32 [#allocation7], 4
      %s68 = int_to_ptr.vmem [resolvable:$true] %s67
      %70 = dma.hbm_to_vmem [thread:$0]  %s4, 32, %s68, [#allocation8]
    $region21: #{lcn100plain_forward.1} parent=1 // pred_fallthru
      _
    // Predicated region
    $region22: #{lcn100plain_forward.1} parent=1 // pred_check
      _
    $region23: #{lcn100plain_forward.1} parent=1 // pred_check_branch
      %72 = sbr.rel (0) target = $region25
    $region24: #{lcn100plain_forward.1} parent=1 // pred_region
      %s74 = ssub.s32 2048, 2048
      %75 = vsyncadd [#allocation8], %s74
      %s76 = sshll.u32 [#allocation9], 4
      %s77 = int_to_ptr.vmem [resolvable:$true] %s76
      %82 = dma.hbm_to_vmem [thread:$0]  %s5, 2048, %s77, [#allocation8], 64, 64, 4
    $region25: #{lcn100plain_forward.1} parent=1 // pred_fallthru
      _
    // Predicated region
    $region26: #{lcn100plain_forward.1} parent=1 // pred_check
      _
    $region27: #{lcn100plain_forward.1} parent=1 // pred_check_branch
      %84 = sbr.rel (0) target = $region29
    $region28: #{lcn100plain_forward.1} parent=1 // pred_region
      %s86 = ssub.s32 16, 16
      %87 = vsyncadd [#allocation11], %s86
      %s89 = sshll.u32 [#allocation10], 4
      %s90 = int_to_ptr.vmem [resolvable:$true] %s89
      %92 = dma.hbm_to_vmem [thread:$0]  %s6, 16, %s90, [#allocation11]
    $region29: #{lcn100plain_forward.1} parent=1 // pred_fallthru
      _
    // Predicated region
    $region30: #{lcn100plain_forward.1} parent=1 // pred_check
      _
    $region31: #{lcn100plain_forward.1} parent=1 // pred_check_branch
      %94 = sbr.rel (0) target = $region33
    $region32: #{lcn100plain_forward.1} parent=1 // pred_region
      %s96 = ssub.s32 3072, 3072
      %97 = vsyncadd [#allocation11], %s96
      %s98 = sshll.u32 [#allocation12], 4
      %s99 = int_to_ptr.vmem [resolvable:$true] %s98
      %104 = dma.hbm_to_vmem [thread:$0]  %s7, 3072, %s99, [#allocation11], 192, 192, 12
    $region33: #{lcn100plain_forward.1} parent=1 // pred_fallthru
      _
    // Predicated region
    $region34: #{lcn100plain_forward.1} parent=1 // pred_check
      _
    $region35: #{lcn100plain_forward.1} parent=1 // pred_check_branch
      %106 = sbr.rel (0) target = $region37
    $region36: #{lcn100plain_forward.1} parent=1 // pred_region
      %s108 = ssub.s32 16, 16
      %109 = vsyncadd [#allocation14], %s108
      %s111 = sshll.u32 [#allocation13], 4
      %s112 = int_to_ptr.vmem [resolvable:$true] %s111
      %114 = dma.hbm_to_vmem [thread:$0]  %s8, 16, %s112, [#allocation14]
    $region37: #{lcn100plain_forward.1} parent=1 // pred_fallthru
      _
    // Predicated region
    $region38: #{lcn100plain_forward.1} parent=1 // pred_check
      _
    $region39: #{lcn100plain_forward.1} parent=1 // pred_check_branch
      %116 = sbr.rel (0) target = $region41
    $region40: #{lcn100plain_forward.1} parent=1 // pred_region
      %s118 = ssub.s32 32, 32
      %119 = vsyncadd [#allocation14], %s118
      %s121 = sshll.u32 [#allocation15], 4
      %s122 = int_to_ptr.vmem [resolvable:$true] %s121
      %124 = dma.hbm_to_vmem [thread:$0]  %s9, 32, %s122, [#allocation14]
    $region41: #{lcn100plain_forward.1} parent=1 // pred_fallthru
      _
    // Predicated region
    $region42: #{lcn100plain_forward.1} parent=1 // pred_check
      _
    $region43: #{lcn100plain_forward.1} parent=1 // pred_check_branch
      %126 = sbr.rel (0) target = $region45
    $region44: #{lcn100plain_forward.1} parent=1 // pred_region
      %s128 = ssub.s32 16384, 16384
      %129 = vsyncadd [#allocation17], %s128
      %s130 = sshll.u32 [#allocation16], 4
      %s131 = int_to_ptr.vmem [resolvable:$true] %s130
      %136 = dma.hbm_to_vmem [thread:$0]  %s10, 16384, %s131, [#allocation17], 512, 512, 32
    $region45: #{lcn100plain_forward.1} parent=1 // pred_fallthru
      _
    // Predicated region
    $region46: #{lcn100plain_forward.1} parent=1 // pred_check
      _
    $region47: #{lcn100plain_forward.1} parent=1 // pred_check_branch
      %138 = sbr.rel (0) target = $region49
    $region48: #{lcn100plain_forward.1} parent=1 // pred_region
      %s140 = ssub.s32 128, 128
      %141 = vsyncadd [#allocation17], %s140
      %s143 = sshll.u32 [#allocation18], 4
      %s144 = int_to_ptr.vmem [resolvable:$true] %s143
      %146 = dma.hbm_to_vmem [thread:$0]  %s11, 128, %s144, [#allocation17]
    $region49: #{lcn100plain_forward.1} parent=1 // pred_fallthru
      _
    // Predicated region
    $region50: #{lcn100plain_forward.1} parent=1 // pred_check
      _
    $region51: #{lcn100plain_forward.1} parent=1 // pred_check_branch
      %148 = sbr.rel (0) target = $region53
    $region52: #{lcn100plain_forward.1} parent=1 // pred_region
      %149 = dma.done [#allocation3], 40960
    $region53: #{lcn100plain_forward.1} parent=1 // pred_fallthru
      _
    // Predicated region
    $region54: #{lcn100plain_forward.1} parent=1 // pred_check
      _
    $region55: #{lcn100plain_forward.1} parent=1 // pred_check_branch
      %151 = sbr.rel (0) target = $region57
    $region56: #{lcn100plain_forward.1} parent=1 // pred_region
      %152 = dma.done [#allocation5], 64
    $region57: #{lcn100plain_forward.1} parent=1 // pred_fallthru
      _
    // Predicated region
    $region58: #{lcn100plain_forward.1} parent=1 // pred_check
      _
    $region59: #{lcn100plain_forward.1} parent=1 // pred_check_branch
      %154 = sbr.rel (0) target = $region61
    $region60: #{lcn100plain_forward.1} parent=1 // pred_region
      %155 = dma.done [#allocation5], 8192
    $region61: #{lcn100plain_forward.1} parent=1 // pred_fallthru
      _
    // Predicated region
    $region62: #{lcn100plain_forward.1} parent=1 // pred_check
      _
    $region63: #{lcn100plain_forward.1} parent=1 // pred_check_branch
      %157 = sbr.rel (0) target = $region65
    $region64: #{lcn100plain_forward.1} parent=1 // pred_region
      %158 = dma.done [#allocation8], 32
    $region65: #{lcn100plain_forward.1} parent=1 // pred_fallthru
      _
    // Predicated region
    $region66: #{lcn100plain_forward.1} parent=1 // pred_check
      _
    $region67: #{lcn100plain_forward.1} parent=1 // pred_check_branch
      %160 = sbr.rel (0) target = $region69
    $region68: #{lcn100plain_forward.1} parent=1 // pred_region
      %161 = dma.done [#allocation8], 2048
    $region69: #{lcn100plain_forward.1} parent=1 // pred_fallthru
      _
    // Predicated region
    $region70: #{lcn100plain_forward.1} parent=1 // pred_check
      _
    $region71: #{lcn100plain_forward.1} parent=1 // pred_check_branch
      %163 = sbr.rel (0) target = $region73
    $region72: #{lcn100plain_forward.1} parent=1 // pred_region
      %164 = dma.done [#allocation11], 16
    $region73: #{lcn100plain_forward.1} parent=1 // pred_fallthru
      _
    // Predicated region
    $region74: #{lcn100plain_forward.1} parent=1 // pred_check
      _
    $region75: #{lcn100plain_forward.1} parent=1 // pred_check_branch
      %166 = sbr.rel (0) target = $region77
    $region76: #{lcn100plain_forward.1} parent=1 // pred_region
      %167 = dma.done [#allocation11], 3072
    $region77: #{lcn100plain_forward.1} parent=1 // pred_fallthru
      _
    // Predicated region
    $region78: #{lcn100plain_forward.1} parent=1 // pred_check
      _
    $region79: #{lcn100plain_forward.1} parent=1 // pred_check_branch
      %169 = sbr.rel (0) target = $region81
    $region80: #{lcn100plain_forward.1} parent=1 // pred_region
      %170 = dma.done [#allocation14], 16
    $region81: #{lcn100plain_forward.1} parent=1 // pred_fallthru
      _
    // Predicated region
    $region82: #{lcn100plain_forward.1} parent=1 // pred_check
      _
    $region83: #{lcn100plain_forward.1} parent=1 // pred_check_branch
      %172 = sbr.rel (0) target = $region85
    $region84: #{lcn100plain_forward.1} parent=1 // pred_region
      %173 = dma.done [#allocation14], 32
    $region85: #{lcn100plain_forward.1} parent=1 // pred_fallthru
      _
    // Predicated region
    $region86: #{lcn100plain_forward.1} parent=1 // pred_check
      _
    $region87: #{lcn100plain_forward.1} parent=1 // pred_check_branch
      %175 = sbr.rel (0) target = $region89
    $region88: #{lcn100plain_forward.1} parent=1 // pred_region
      %176 = dma.done [#allocation17], 16384
    $region89: #{lcn100plain_forward.1} parent=1 // pred_fallthru
      _
    // Predicated region
    $region90: #{lcn100plain_forward.1} parent=1 // pred_check
      _
    $region91: #{lcn100plain_forward.1} parent=1 // pred_check_branch
      %178 = sbr.rel (0) target = $region93
    $region92: #{lcn100plain_forward.1} parent=1 // pred_region
      %179 = dma.done [#allocation17], 128
    $region93: #{lcn100plain_forward.1} parent=1 // pred_fallthru
      _
    %v181 = vld [vmem:[%s0] sm:$0xff]
    %v182 = vld [vmem:[%s0 + $0x8] sm:$0xff]
    %v183 = vld [vmem:[%s0 + $0x10] sm:$0xff]
    %v184 = vld [vmem:[%s0 + $0x18] sm:$0xff]
    %v185 = vld [vmem:[%s0 + $0x20] sm:$0xff]
    %v186 = vld [vmem:[%s0 + $0x28] sm:$0xff]
    %v187 = vld [vmem:[%s0 + $0x30] sm:$0xff]
    %v188 = vld [vmem:[%s0 + $0x38] sm:$0xff]
    %v189 = vpack.c.bf16 %v181, %v181
    %v190 = vpack.c.bf16 %v182, %v182
    %v191 = vpack.c.bf16 %v183, %v183
    %v192 = vpack.c.bf16 %v184, %v184
    %v193 = vpack.c.bf16 %v185, %v185
    %v194 = vpack.c.bf16 %v186, %v186
    %v195 = vpack.c.bf16 %v187, %v187
    %v196 = vpack.c.bf16 %v188, %v188
    %v197 = vld [vmem:[#allocation2] sm:$0xff]
    %v198 = vld [vmem:[#allocation2 + $0x8] sm:$0xff]
    %v199 = vld [vmem:[#allocation2 + $0x10] sm:$0xf]
    %v200 = vld [vmem:[#allocation2 + $0x14] sm:$0xff]
    %v201 = vld [vmem:[#allocation2 + $0x1c] sm:$0xff]
    %v202 = vld [vmem:[#allocation2 + $0x24] sm:$0xf]
    %v203 = vld [vmem:[#allocation2 + $0x28] sm:$0xff]
    %v204 = vld [vmem:[#allocation2 + $0x30] sm:$0xff]
    %v205 = vld [vmem:[#allocation2 + $0x38] sm:$0xf]
    %v206 = vld [vmem:[#allocation2 + $0x3c] sm:$0xff]
    %v207 = vld [vmem:[#allocation2 + $0x44] sm:$0xff]
    %v208 = vld [vmem:[#allocation2 + $0x4c] sm:$0xf]
    %v209 = vld [vmem:[#allocation2 + $0x50] sm:$0xff]
    %v210 = vld [vmem:[#allocation2 + $0x58] sm:$0xff]
    %v211 = vld [vmem:[#allocation2 + $0x60] sm:$0xf]
    %v212 = vld [vmem:[#allocation2 + $0x64] sm:$0xff]
    %v213 = vld [vmem:[#allocation2 + $0x6c] sm:$0xff]
    %v214 = vld [vmem:[#allocation2 + $0x74] sm:$0xf]
    %v215 = vld [vmem:[#allocation2 + $0x78] sm:$0xff]
    %v216 = vld [vmem:[#allocation2 + $0x80] sm:$0xff]
    %v217 = vld [vmem:[#allocation2 + $0x88] sm:$0xf]
    %v218 = vld [vmem:[#allocation2 + $0x8c] sm:$0xff]
    %v219 = vld [vmem:[#allocation2 + $0x94] sm:$0xff]
    %v220 = vld [vmem:[#allocation2 + $0x9c] sm:$0xf]
    %v221 = vld [vmem:[#allocation2 + $0xa0] sm:$0xff]
    %v222 = vld [vmem:[#allocation2 + $0xa8] sm:$0xff]
    %v223 = vld [vmem:[#allocation2 + $0xb0] sm:$0xf]
    %v224 = vld [vmem:[#allocation2 + $0xb4] sm:$0xff]
    %v225 = vld [vmem:[#allocation2 + $0xbc] sm:$0xff]
    %v226 = vld [vmem:[#allocation2 + $0xc4] sm:$0xf]
    %v227 = vld [vmem:[#allocation2 + $0xc8] sm:$0xff]
    %v228 = vld [vmem:[#allocation2 + $0xd0] sm:$0xff]
    %v229 = vld [vmem:[#allocation2 + $0xd8] sm:$0xf]
    %v230 = vld [vmem:[#allocation2 + $0xdc] sm:$0xff]
    %v231 = vld [vmem:[#allocation2 + $0xe4] sm:$0xff]
    %v232 = vld [vmem:[#allocation2 + $0xec] sm:$0xf]
    %v233 = vld [vmem:[#allocation2 + $0xf0] sm:$0xff]
    %v234 = vld [vmem:[#allocation2 + $0xf8] sm:$0xff]
    %v235 = vld [vmem:[#allocation2 + $0x100] sm:$0xf]
    %v236 = vld [vmem:[#allocation2 + $0x104] sm:$0xff]
    %v237 = vld [vmem:[#allocation2 + $0x10c] sm:$0xff]
    %v238 = vld [vmem:[#allocation2 + $0x114] sm:$0xf]
    %v239 = vld [vmem:[#allocation2 + $0x118] sm:$0xff]
    %v240 = vld [vmem:[#allocation2 + $0x120] sm:$0xff]
    %v241 = vld [vmem:[#allocation2 + $0x128] sm:$0xf]
    %v242 = vld [vmem:[#allocation2 + $0x12c] sm:$0xff]
    %v243 = vld [vmem:[#allocation2 + $0x134] sm:$0xff]
    %v244 = vld [vmem:[#allocation2 + $0x13c] sm:$0xf]
    %v245 = vld [vmem:[#allocation2 + $0x140] sm:$0xff]
    %v246 = vld [vmem:[#allocation2 + $0x148] sm:$0xff]
    %v247 = vld [vmem:[#allocation2 + $0x150] sm:$0xf]
    %v248 = vld [vmem:[#allocation2 + $0x154] sm:$0xff]
    %v249 = vld [vmem:[#allocation2 + $0x15c] sm:$0xff]
    %v250 = vld [vmem:[#allocation2 + $0x164] sm:$0xf]
    %v251 = vld [vmem:[#allocation2 + $0x168] sm:$0xff]
    %v252 = vld [vmem:[#allocation2 + $0x170] sm:$0xff]
    %v253 = vld [vmem:[#allocation2 + $0x178] sm:$0xf]
    %v254 = vld [vmem:[#allocation2 + $0x17c] sm:$0xff]
    %v255 = vld [vmem:[#allocation2 + $0x184] sm:$0xff]
    %v256 = vld [vmem:[#allocation2 + $0x18c] sm:$0xf]
    %v257 = vld [vmem:[#allocation2 + $0x190] sm:$0xff]
    %v258 = vld [vmem:[#allocation2 + $0x198] sm:$0xff]
    %v259 = vld [vmem:[#allocation2 + $0x1a0] sm:$0xf]
    %v260 = vld [vmem:[#allocation2 + $0x1a4] sm:$0xff]
    %v261 = vld [vmem:[#allocation2 + $0x1ac] sm:$0xff]
    %v262 = vld [vmem:[#allocation2 + $0x1b4] sm:$0xf]
    %v263 = vld [vmem:[#allocation2 + $0x1b8] sm:$0xff]
    %v264 = vld [vmem:[#allocation2 + $0x1c0] sm:$0xff]
    %v265 = vld [vmem:[#allocation2 + $0x1c8] sm:$0xf]
    %v266 = vld [vmem:[#allocation2 + $0x1cc] sm:$0xff]
    %v267 = vld [vmem:[#allocation2 + $0x1d4] sm:$0xff]
    %v268 = vld [vmem:[#allocation2 + $0x1dc] sm:$0xf]
    %v269 = vld [vmem:[#allocation2 + $0x1e0] sm:$0xff]
    %v270 = vld [vmem:[#allocation2 + $0x1e8] sm:$0xff]
    %v271 = vld [vmem:[#allocation2 + $0x1f0] sm:$0xf]
    %v272 = vld [vmem:[#allocation2 + $0x1f4] sm:$0xff]
    %v273 = vld [vmem:[#allocation2 + $0x1fc] sm:$0xff]
    %v274 = vld [vmem:[#allocation2 + $0x204] sm:$0xf]
    %v275 = vld [vmem:[#allocation2 + $0x208] sm:$0xff]
    %v276 = vld [vmem:[#allocation2 + $0x210] sm:$0xff]
    %v277 = vld [vmem:[#allocation2 + $0x218] sm:$0xf]
    %v278 = vld [vmem:[#allocation2 + $0x21c] sm:$0xff]
    %v279 = vld [vmem:[#allocation2 + $0x224] sm:$0xff]
    %v280 = vld [vmem:[#allocation2 + $0x22c] sm:$0xf]
    %v281 = vld [vmem:[#allocation2 + $0x230] sm:$0xff]
    %v282 = vld [vmem:[#allocation2 + $0x238] sm:$0xff]
    %v283 = vld [vmem:[#allocation2 + $0x240] sm:$0xf]
    %v284 = vld [vmem:[#allocation2 + $0x244] sm:$0xff]
    %v285 = vld [vmem:[#allocation2 + $0x24c] sm:$0xff]
    %v286 = vld [vmem:[#allocation2 + $0x254] sm:$0xf]
    %v287 = vld [vmem:[#allocation2 + $0x258] sm:$0xff]
    %v288 = vld [vmem:[#allocation2 + $0x260] sm:$0xff]
    %v289 = vld [vmem:[#allocation2 + $0x268] sm:$0xf]
    %v290 = vld [vmem:[#allocation2 + $0x26c] sm:$0xff]
    %v291 = vld [vmem:[#allocation2 + $0x274] sm:$0xff]
    %v292 = vld [vmem:[#allocation2 + $0x27c] sm:$0xf]
    %v293 = vld [vmem:[#allocation2 + $0x280] sm:$0xff]
    %v294 = vld [vmem:[#allocation2 + $0x288] sm:$0xff]
    %v295 = vld [vmem:[#allocation2 + $0x290] sm:$0xf]
    %v296 = vld [vmem:[#allocation2 + $0x294] sm:$0xff]
    %v297 = vld [vmem:[#allocation2 + $0x29c] sm:$0xff]
    %v298 = vld [vmem:[#allocation2 + $0x2a4] sm:$0xf]
    %v299 = vld [vmem:[#allocation2 + $0x2a8] sm:$0xff]
    %v300 = vld [vmem:[#allocation2 + $0x2b0] sm:$0xff]
    %v301 = vld [vmem:[#allocation2 + $0x2b8] sm:$0xf]
    %v302 = vld [vmem:[#allocation2 + $0x2bc] sm:$0xff]
    %v303 = vld [vmem:[#allocation2 + $0x2c4] sm:$0xff]
    %v304 = vld [vmem:[#allocation2 + $0x2cc] sm:$0xf]
    %v305 = vld [vmem:[#allocation2 + $0x2d0] sm:$0xff]
    %v306 = vld [vmem:[#allocation2 + $0x2d8] sm:$0xff]
    %v307 = vld [vmem:[#allocation2 + $0x2e0] sm:$0xf]
    %v308 = vld [vmem:[#allocation2 + $0x2e4] sm:$0xff]
    %v309 = vld [vmem:[#allocation2 + $0x2ec] sm:$0xff]
    %v310 = vld [vmem:[#allocation2 + $0x2f4] sm:$0xf]
    %v311 = vld [vmem:[#allocation2 + $0x2f8] sm:$0xff]
    %v312 = vld [vmem:[#allocation2 + $0x300] sm:$0xff]
    %v313 = vld [vmem:[#allocation2 + $0x308] sm:$0xf]
    %v314 = vld [vmem:[#allocation2 + $0x30c] sm:$0xff]
    %v315 = vld [vmem:[#allocation2 + $0x314] sm:$0xff]
    %v316 = vld [vmem:[#allocation2 + $0x31c] sm:$0xf]
    %v317 = vld [vmem:[#allocation2 + $0x320] sm:$0xff]
    %v318 = vld [vmem:[#allocation2 + $0x328] sm:$0xff]
    %v319 = vld [vmem:[#allocation2 + $0x330] sm:$0xf]
    %v320 = vld [vmem:[#allocation2 + $0x334] sm:$0xff]
    %v321 = vld [vmem:[#allocation2 + $0x33c] sm:$0xff]
    %v322 = vld [vmem:[#allocation2 + $0x344] sm:$0xf]
    %v323 = vld [vmem:[#allocation2 + $0x348] sm:$0xff]
    %v324 = vld [vmem:[#allocation2 + $0x350] sm:$0xff]
    %v325 = vld [vmem:[#allocation2 + $0x358] sm:$0xf]
    %v326 = vld [vmem:[#allocation2 + $0x35c] sm:$0xff]
    %v327 = vld [vmem:[#allocation2 + $0x364] sm:$0xff]
    %v328 = vld [vmem:[#allocation2 + $0x36c] sm:$0xf]
    %v329 = vld [vmem:[#allocation2 + $0x370] sm:$0xff]
    %v330 = vld [vmem:[#allocation2 + $0x378] sm:$0xff]
    %v331 = vld [vmem:[#allocation2 + $0x380] sm:$0xf]
    %v332 = vld [vmem:[#allocation2 + $0x384] sm:$0xff]
    %v333 = vld [vmem:[#allocation2 + $0x38c] sm:$0xff]
    %v334 = vld [vmem:[#allocation2 + $0x394] sm:$0xf]
    %v335 = vld [vmem:[#allocation2 + $0x398] sm:$0xff]
    %v336 = vld [vmem:[#allocation2 + $0x3a0] sm:$0xff]
    %v337 = vld [vmem:[#allocation2 + $0x3a8] sm:$0xf]
    %v338 = vld [vmem:[#allocation2 + $0x3ac] sm:$0xff]
    %v339 = vld [vmem:[#allocation2 + $0x3b4] sm:$0xff]
    %v340 = vld [vmem:[#allocation2 + $0x3bc] sm:$0xf]
    %v341 = vld [vmem:[#allocation2 + $0x3c0] sm:$0xff]
    %v342 = vld [vmem:[#allocation2 + $0x3c8] sm:$0xff]
    %v343 = vld [vmem:[#allocation2 + $0x3d0] sm:$0xf]
    %v344 = vld [vmem:[#allocation2 + $0x3d4] sm:$0xff]
    %v345 = vld [vmem:[#allocation2 + $0x3dc] sm:$0xff]
    %v346 = vld [vmem:[#allocation2 + $0x3e4] sm:$0xf]
    %v347 = vld [vmem:[#allocation2 + $0x3e8] sm:$0xff]
    %v348 = vld [vmem:[#allocation2 + $0x3f0] sm:$0xff]
    %v349 = vld [vmem:[#allocation2 + $0x3f8] sm:$0xf]
    %v350 = vld [vmem:[#allocation2 + $0x3fc] sm:$0xff]
    %v351 = vld [vmem:[#allocation2 + $0x404] sm:$0xff]
    %v352 = vld [vmem:[#allocation2 + $0x40c] sm:$0xf]
    %v353 = vld [vmem:[#allocation2 + $0x410] sm:$0xff]
    %v354 = vld [vmem:[#allocation2 + $0x418] sm:$0xff]
    %v355 = vld [vmem:[#allocation2 + $0x420] sm:$0xf]
    %v356 = vld [vmem:[#allocation2 + $0x424] sm:$0xff]
    %v357 = vld [vmem:[#allocation2 + $0x42c] sm:$0xff]
    %v358 = vld [vmem:[#allocation2 + $0x434] sm:$0xf]
    %v359 = vld [vmem:[#allocation2 + $0x438] sm:$0xff]
    %v360 = vld [vmem:[#allocation2 + $0x440] sm:$0xff]
    %v361 = vld [vmem:[#allocation2 + $0x448] sm:$0xf]
    %v362 = vld [vmem:[#allocation2 + $0x44c] sm:$0xff]
    %v363 = vld [vmem:[#allocation2 + $0x454] sm:$0xff]
    %v364 = vld [vmem:[#allocation2 + $0x45c] sm:$0xf]
    %v365 = vld [vmem:[#allocation2 + $0x460] sm:$0xff]
    %v366 = vld [vmem:[#allocation2 + $0x468] sm:$0xff]
    %v367 = vld [vmem:[#allocation2 + $0x470] sm:$0xf]
    %v368 = vld [vmem:[#allocation2 + $0x474] sm:$0xff]
    %v369 = vld [vmem:[#allocation2 + $0x47c] sm:$0xff]
    %v370 = vld [vmem:[#allocation2 + $0x484] sm:$0xf]
    %v371 = vld [vmem:[#allocation2 + $0x488] sm:$0xff]
    %v372 = vld [vmem:[#allocation2 + $0x490] sm:$0xff]
    %v373 = vld [vmem:[#allocation2 + $0x498] sm:$0xf]
    %v374 = vld [vmem:[#allocation2 + $0x49c] sm:$0xff]
    %v375 = vld [vmem:[#allocation2 + $0x4a4] sm:$0xff]
    %v376 = vld [vmem:[#allocation2 + $0x4ac] sm:$0xf]
    %v377 = vld [vmem:[#allocation2 + $0x4b0] sm:$0xff]
    %v378 = vld [vmem:[#allocation2 + $0x4b8] sm:$0xff]
    %v379 = vld [vmem:[#allocation2 + $0x4c0] sm:$0xf]
    %v380 = vld [vmem:[#allocation2 + $0x4c4] sm:$0xff]
    %v381 = vld [vmem:[#allocation2 + $0x4cc] sm:$0xff]
    %v382 = vld [vmem:[#allocation2 + $0x4d4] sm:$0xf]
    %v383 = vld [vmem:[#allocation2 + $0x4d8] sm:$0xff]
    %v384 = vld [vmem:[#allocation2 + $0x4e0] sm:$0xff]
    %v385 = vld [vmem:[#allocation2 + $0x4e8] sm:$0xf]
    %v386 = vld [vmem:[#allocation2 + $0x4ec] sm:$0xff]
    %v387 = vld [vmem:[#allocation2 + $0x4f4] sm:$0xff]
    %v388 = vld [vmem:[#allocation2 + $0x4fc] sm:$0xf]
    %v389 = vld [vmem:[#allocation2 + $0x500] sm:$0xff]
    %v390 = vld [vmem:[#allocation2 + $0x508] sm:$0xff]
    %v391 = vld [vmem:[#allocation2 + $0x510] sm:$0xf]
    %v392 = vld [vmem:[#allocation2 + $0x514] sm:$0xff]
    %v393 = vld [vmem:[#allocation2 + $0x51c] sm:$0xff]
    %v394 = vld [vmem:[#allocation2 + $0x524] sm:$0xf]
    %v395 = vld [vmem:[#allocation2 + $0x528] sm:$0xff]
    %v396 = vld [vmem:[#allocation2 + $0x530] sm:$0xff]
    %v397 = vld [vmem:[#allocation2 + $0x538] sm:$0xf]
    %v398 = vld [vmem:[#allocation2 + $0x53c] sm:$0xff]
    %v399 = vld [vmem:[#allocation2 + $0x544] sm:$0xff]
    %v400 = vld [vmem:[#allocation2 + $0x54c] sm:$0xf]
    %v401 = vld [vmem:[#allocation2 + $0x550] sm:$0xff]
    %v402 = vld [vmem:[#allocation2 + $0x558] sm:$0xff]
    %v403 = vld [vmem:[#allocation2 + $0x560] sm:$0xf]
    %v404 = vld [vmem:[#allocation2 + $0x564] sm:$0xff]
    %v405 = vld [vmem:[#allocation2 + $0x56c] sm:$0xff]
    %v406 = vld [vmem:[#allocation2 + $0x574] sm:$0xf]
    %v407 = vld [vmem:[#allocation2 + $0x578] sm:$0xff]
    %v408 = vld [vmem:[#allocation2 + $0x580] sm:$0xff]
    %v409 = vld [vmem:[#allocation2 + $0x588] sm:$0xf]
    %v410 = vld [vmem:[#allocation2 + $0x58c] sm:$0xff]
    %v411 = vld [vmem:[#allocation2 + $0x594] sm:$0xff]
    %v412 = vld [vmem:[#allocation2 + $0x59c] sm:$0xf]
    %v413 = vld [vmem:[#allocation2 + $0x5a0] sm:$0xff]
    %v414 = vld [vmem:[#allocation2 + $0x5a8] sm:$0xff]
    %v415 = vld [vmem:[#allocation2 + $0x5b0] sm:$0xf]
    %v416 = vld [vmem:[#allocation2 + $0x5b4] sm:$0xff]
    %v417 = vld [vmem:[#allocation2 + $0x5bc] sm:$0xff]
    %v418 = vld [vmem:[#allocation2 + $0x5c4] sm:$0xf]
    %v419 = vld [vmem:[#allocation2 + $0x5c8] sm:$0xff]
    %v420 = vld [vmem:[#allocation2 + $0x5d0] sm:$0xff]
    %v421 = vld [vmem:[#allocation2 + $0x5d8] sm:$0xf]
    %v422 = vld [vmem:[#allocation2 + $0x5dc] sm:$0xff]
    %v423 = vld [vmem:[#allocation2 + $0x5e4] sm:$0xff]
    %v424 = vld [vmem:[#allocation2 + $0x5ec] sm:$0xf]
    %v425 = vld [vmem:[#allocation2 + $0x5f0] sm:$0xff]
    %v426 = vld [vmem:[#allocation2 + $0x5f8] sm:$0xff]
    %v427 = vld [vmem:[#allocation2 + $0x600] sm:$0xf]
    %v428 = vld [vmem:[#allocation2 + $0x604] sm:$0xff]
    %v429 = vld [vmem:[#allocation2 + $0x60c] sm:$0xff]
    %v430 = vld [vmem:[#allocation2 + $0x614] sm:$0xf]
    %v431 = vld [vmem:[#allocation2 + $0x618] sm:$0xff]
    %v432 = vld [vmem:[#allocation2 + $0x620] sm:$0xff]
    %v433 = vld [vmem:[#allocation2 + $0x628] sm:$0xf]
    %v434 = vld [vmem:[#allocation2 + $0x62c] sm:$0xff]
    %v435 = vld [vmem:[#allocation2 + $0x634] sm:$0xff]
    %v436 = vld [vmem:[#allocation2 + $0x63c] sm:$0xf]
    %v437 = vld [vmem:[#allocation2 + $0x640] sm:$0xff]
    %v438 = vld [vmem:[#allocation2 + $0x648] sm:$0xff]
    %v439 = vld [vmem:[#allocation2 + $0x650] sm:$0xf]
    %v440 = vld [vmem:[#allocation2 + $0x654] sm:$0xff]
    %v441 = vld [vmem:[#allocation2 + $0x65c] sm:$0xff]
    %v442 = vld [vmem:[#allocation2 + $0x664] sm:$0xf]
    %v443 = vld [vmem:[#allocation2 + $0x668] sm:$0xff]
    %v444 = vld [vmem:[#allocation2 + $0x670] sm:$0xff]
    %v445 = vld [vmem:[#allocation2 + $0x678] sm:$0xf]
    %v446 = vld [vmem:[#allocation2 + $0x67c] sm:$0xff]
    %v447 = vld [vmem:[#allocation2 + $0x684] sm:$0xff]
    %v448 = vld [vmem:[#allocation2 + $0x68c] sm:$0xf]
    %v449 = vld [vmem:[#allocation2 + $0x690] sm:$0xff]
    %v450 = vld [vmem:[#allocation2 + $0x698] sm:$0xff]
    %v451 = vld [vmem:[#allocation2 + $0x6a0] sm:$0xf]
    %v452 = vld [vmem:[#allocation2 + $0x6a4] sm:$0xff]
    %v453 = vld [vmem:[#allocation2 + $0x6ac] sm:$0xff]
    %v454 = vld [vmem:[#allocation2 + $0x6b4] sm:$0xf]
    %v455 = vld [vmem:[#allocation2 + $0x6b8] sm:$0xff]
    %v456 = vld [vmem:[#allocation2 + $0x6c0] sm:$0xff]
    %v457 = vld [vmem:[#allocation2 + $0x6c8] sm:$0xf]
    %v458 = vld [vmem:[#allocation2 + $0x6cc] sm:$0xff]
    %v459 = vld [vmem:[#allocation2 + $0x6d4] sm:$0xff]
    %v460 = vld [vmem:[#allocation2 + $0x6dc] sm:$0xf]
    %v461 = vld [vmem:[#allocation2 + $0x6e0] sm:$0xff]
    %v462 = vld [vmem:[#allocation2 + $0x6e8] sm:$0xff]
    %v463 = vld [vmem:[#allocation2 + $0x6f0] sm:$0xf]
    %v464 = vld [vmem:[#allocation2 + $0x6f4] sm:$0xff]
    %v465 = vld [vmem:[#allocation2 + $0x6fc] sm:$0xff]
    %v466 = vld [vmem:[#allocation2 + $0x704] sm:$0xf]
    %v467 = vld [vmem:[#allocation2 + $0x708] sm:$0xff]
    %v468 = vld [vmem:[#allocation2 + $0x710] sm:$0xff]
    %v469 = vld [vmem:[#allocation2 + $0x718] sm:$0xf]
    %v470 = vld [vmem:[#allocation2 + $0x71c] sm:$0xff]
    %v471 = vld [vmem:[#allocation2 + $0x724] sm:$0xff]
    %v472 = vld [vmem:[#allocation2 + $0x72c] sm:$0xf]
    %v473 = vld [vmem:[#allocation2 + $0x730] sm:$0xff]
    %v474 = vld [vmem:[#allocation2 + $0x738] sm:$0xff]
    %v475 = vld [vmem:[#allocation2 + $0x740] sm:$0xf]
    %v476 = vld [vmem:[#allocation2 + $0x744] sm:$0xff]
    %v477 = vld [vmem:[#allocation2 + $0x74c] sm:$0xff]
    %v478 = vld [vmem:[#allocation2 + $0x754] sm:$0xf]
    %v479 = vld [vmem:[#allocation2 + $0x758] sm:$0xff]
    %v480 = vld [vmem:[#allocation2 + $0x760] sm:$0xff]
    %v481 = vld [vmem:[#allocation2 + $0x768] sm:$0xf]
    %v482 = vld [vmem:[#allocation2 + $0x76c] sm:$0xff]
    %v483 = vld [vmem:[#allocation2 + $0x774] sm:$0xff]
    %v484 = vld [vmem:[#allocation2 + $0x77c] sm:$0xf]
    %v485 = vld [vmem:[#allocation2 + $0x780] sm:$0xff]
    %v486 = vld [vmem:[#allocation2 + $0x788] sm:$0xff]
    %v487 = vld [vmem:[#allocation2 + $0x790] sm:$0xf]
    %v488 = vld [vmem:[#allocation2 + $0x794] sm:$0xff]
    %v489 = vld [vmem:[#allocation2 + $0x79c] sm:$0xff]
    %v490 = vld [vmem:[#allocation2 + $0x7a4] sm:$0xf]
    %v491 = vld [vmem:[#allocation2 + $0x7a8] sm:$0xff]
    %v492 = vld [vmem:[#allocation2 + $0x7b0] sm:$0xff]
    %v493 = vld [vmem:[#allocation2 + $0x7b8] sm:$0xf]
    %v494 = vld [vmem:[#allocation2 + $0x7bc] sm:$0xff]
    %v495 = vld [vmem:[#allocation2 + $0x7c4] sm:$0xff]
    %v496 = vld [vmem:[#allocation2 + $0x7cc] sm:$0xf]
    %v497 = vld [vmem:[#allocation2 + $0x7d0] sm:$0xff]
    %v498 = vld [vmem:[#allocation2 + $0x7d8] sm:$0xff]
    %v499 = vld [vmem:[#allocation2 + $0x7e0] sm:$0xf]
    %v500 = vld [vmem:[#allocation2 + $0x7e4] sm:$0xff]
    %v501 = vld [vmem:[#allocation2 + $0x7ec] sm:$0xff]
    %v502 = vld [vmem:[#allocation2 + $0x7f4] sm:$0xf]
    %v503 = vld [vmem:[#allocation2 + $0x7f8] sm:$0xff]
    %v504 = vld [vmem:[#allocation2 + $0x800] sm:$0xff]
    %v505 = vld [vmem:[#allocation2 + $0x808] sm:$0xf]
    %v506 = vld [vmem:[#allocation2 + $0x80c] sm:$0xff]
    %v507 = vld [vmem:[#allocation2 + $0x814] sm:$0xff]
    %v508 = vld [vmem:[#allocation2 + $0x81c] sm:$0xf]
    %v509 = vld [vmem:[#allocation2 + $0x820] sm:$0xff]
    %v510 = vld [vmem:[#allocation2 + $0x828] sm:$0xff]
    %v511 = vld [vmem:[#allocation2 + $0x830] sm:$0xf]
    %v512 = vld [vmem:[#allocation2 + $0x834] sm:$0xff]
    %v513 = vld [vmem:[#allocation2 + $0x83c] sm:$0xff]
    %v514 = vld [vmem:[#allocation2 + $0x844] sm:$0xf]
    %v515 = vld [vmem:[#allocation2 + $0x848] sm:$0xff]
    %v516 = vld [vmem:[#allocation2 + $0x850] sm:$0xff]
    %v517 = vld [vmem:[#allocation2 + $0x858] sm:$0xf]
    %v518 = vld [vmem:[#allocation2 + $0x85c] sm:$0xff]
    %v519 = vld [vmem:[#allocation2 + $0x864] sm:$0xff]
    %v520 = vld [vmem:[#allocation2 + $0x86c] sm:$0xf]
    %v521 = vld [vmem:[#allocation2 + $0x870] sm:$0xff]
    %v522 = vld [vmem:[#allocation2 + $0x878] sm:$0xff]
    %v523 = vld [vmem:[#allocation2 + $0x880] sm:$0xf]
    %v524 = vld [vmem:[#allocation2 + $0x884] sm:$0xff]
    %v525 = vld [vmem:[#allocation2 + $0x88c] sm:$0xff]
    %v526 = vld [vmem:[#allocation2 + $0x894] sm:$0xf]
    %v527 = vld [vmem:[#allocation2 + $0x898] sm:$0xff]
    %v528 = vld [vmem:[#allocation2 + $0x8a0] sm:$0xff]
    %v529 = vld [vmem:[#allocation2 + $0x8a8] sm:$0xf]
    %v530 = vld [vmem:[#allocation2 + $0x8ac] sm:$0xff]
    %v531 = vld [vmem:[#allocation2 + $0x8b4] sm:$0xff]
    %v532 = vld [vmem:[#allocation2 + $0x8bc] sm:$0xf]
    %v533 = vld [vmem:[#allocation2 + $0x8c0] sm:$0xff]
    %v534 = vld [vmem:[#allocation2 + $0x8c8] sm:$0xff]
    %v535 = vld [vmem:[#allocation2 + $0x8d0] sm:$0xf]
    %v536 = vld [vmem:[#allocation2 + $0x8d4] sm:$0xff]
    %v537 = vld [vmem:[#allocation2 + $0x8dc] sm:$0xff]
    %v538 = vld [vmem:[#allocation2 + $0x8e4] sm:$0xf]
    %v539 = vld [vmem:[#allocation2 + $0x8e8] sm:$0xff]
    %v540 = vld [vmem:[#allocation2 + $0x8f0] sm:$0xff]
    %v541 = vld [vmem:[#allocation2 + $0x8f8] sm:$0xf]
    %v542 = vld [vmem:[#allocation2 + $0x8fc] sm:$0xff]
    %v543 = vld [vmem:[#allocation2 + $0x904] sm:$0xff]
    %v544 = vld [vmem:[#allocation2 + $0x90c] sm:$0xf]
    %v545 = vld [vmem:[#allocation2 + $0x910] sm:$0xff]
    %v546 = vld [vmem:[#allocation2 + $0x918] sm:$0xff]
    %v547 = vld [vmem:[#allocation2 + $0x920] sm:$0xf]
    %v548 = vld [vmem:[#allocation2 + $0x924] sm:$0xff]
    %v549 = vld [vmem:[#allocation2 + $0x92c] sm:$0xff]
    %v550 = vld [vmem:[#allocation2 + $0x934] sm:$0xf]
    %v551 = vld [vmem:[#allocation2 + $0x938] sm:$0xff]
    %v552 = vld [vmem:[#allocation2 + $0x940] sm:$0xff]
    %v553 = vld [vmem:[#allocation2 + $0x948] sm:$0xf]
    %v554 = vld [vmem:[#allocation2 + $0x94c] sm:$0xff]
    %v555 = vld [vmem:[#allocation2 + $0x954] sm:$0xff]
    %v556 = vld [vmem:[#allocation2 + $0x95c] sm:$0xf]
    %v557 = vld [vmem:[#allocation2 + $0x960] sm:$0xff]
    %v558 = vld [vmem:[#allocation2 + $0x968] sm:$0xff]
    %v559 = vld [vmem:[#allocation2 + $0x970] sm:$0xf]
    %v560 = vld [vmem:[#allocation2 + $0x974] sm:$0xff]
    %v561 = vld [vmem:[#allocation2 + $0x97c] sm:$0xff]
    %v562 = vld [vmem:[#allocation2 + $0x984] sm:$0xf]
    %v563 = vld [vmem:[#allocation2 + $0x988] sm:$0xff]
    %v564 = vld [vmem:[#allocation2 + $0x990] sm:$0xff]
    %v565 = vld [vmem:[#allocation2 + $0x998] sm:$0xf]
    %v566 = vld [vmem:[#allocation2 + $0x99c] sm:$0xff]
    %v567 = vld [vmem:[#allocation2 + $0x9a4] sm:$0xff]
    %v568 = vld [vmem:[#allocation2 + $0x9ac] sm:$0xf]
    %v569 = vld [vmem:[#allocation2 + $0x9b0] sm:$0xff]
    %v570 = vld [vmem:[#allocation2 + $0x9b8] sm:$0xff]
    %v571 = vld [vmem:[#allocation2 + $0x9c0] sm:$0xf]
    %v572 = vld [vmem:[#allocation2 + $0x9c4] sm:$0xff]
    %v573 = vld [vmem:[#allocation2 + $0x9cc] sm:$0xff]
    %v574 = vld [vmem:[#allocation2 + $0x9d4] sm:$0xf]
    %v575 = vld [vmem:[#allocation2 + $0x9d8] sm:$0xff]
    %v576 = vld [vmem:[#allocation2 + $0x9e0] sm:$0xff]
    %v577 = vld [vmem:[#allocation2 + $0x9e8] sm:$0xf]
    %v578 = vld [vmem:[#allocation2 + $0x9ec] sm:$0xff]
    %v579 = vld [vmem:[#allocation2 + $0x9f4] sm:$0xff]
    %v580 = vld [vmem:[#allocation2 + $0x9fc] sm:$0xf]
    %v965 = vunpack.c.l.b16 %v197
    %v966 = vunpack.c.h.b16 %v197
    %v967 = vunpack.c.l.b16 %v198
    %v968 = vunpack.c.h.b16 %v198
    %v969 = vunpack.c.l.b16 %v199
    %v970 = vunpack.c.l.b16 %v200
    %v971 = vunpack.c.h.b16 %v200
    %v972 = vunpack.c.l.b16 %v201
    %v973 = vunpack.c.h.b16 %v201
    %v974 = vunpack.c.l.b16 %v202
    %v975 = vunpack.c.l.b16 %v203
    %v976 = vunpack.c.h.b16 %v203
    %v977 = vunpack.c.l.b16 %v204
    %v978 = vunpack.c.h.b16 %v204
    %v979 = vunpack.c.l.b16 %v205
    %v980 = vunpack.c.l.b16 %v206
    %v981 = vunpack.c.h.b16 %v206
    %v982 = vunpack.c.l.b16 %v207
    %v983 = vunpack.c.h.b16 %v207
    %v984 = vunpack.c.l.b16 %v208
    %v985 = vunpack.c.l.b16 %v209
    %v986 = vunpack.c.h.b16 %v209
    %v987 = vunpack.c.l.b16 %v210
    %v988 = vunpack.c.h.b16 %v210
    %v989 = vunpack.c.l.b16 %v211
    %v990 = vunpack.c.l.b16 %v212
    %v991 = vunpack.c.h.b16 %v212
    %v992 = vunpack.c.l.b16 %v213
    %v993 = vunpack.c.h.b16 %v213
    %v994 = vunpack.c.l.b16 %v214
    %v995 = vunpack.c.l.b16 %v215
    %v996 = vunpack.c.h.b16 %v215
    %v997 = vunpack.c.l.b16 %v216
    %v998 = vunpack.c.h.b16 %v216
    %v999 = vunpack.c.l.b16 %v217
    %v1000 = vunpack.c.l.b16 %v218
    %v1001 = vunpack.c.h.b16 %v218
    %v1002 = vunpack.c.l.b16 %v219
    %v1003 = vunpack.c.h.b16 %v219
    %v1004 = vunpack.c.l.b16 %v220
    %v1005 = vunpack.c.l.b16 %v221
    %v1006 = vunpack.c.h.b16 %v221
    %v1007 = vunpack.c.l.b16 %v222
    %v1008 = vunpack.c.h.b16 %v222
    %v1009 = vunpack.c.l.b16 %v223
    %v1010 = vunpack.c.l.b16 %v224
    %v1011 = vunpack.c.h.b16 %v224
    %v1012 = vunpack.c.l.b16 %v225
    %v1013 = vunpack.c.h.b16 %v225
    %v1014 = vunpack.c.l.b16 %v226
    %v1015 = vunpack.c.l.b16 %v227
    %v1016 = vunpack.c.h.b16 %v227
    %v1017 = vunpack.c.l.b16 %v228
    %v1018 = vunpack.c.h.b16 %v228
    %v1019 = vunpack.c.l.b16 %v229
    %v1020 = vunpack.c.l.b16 %v230
    %v1021 = vunpack.c.h.b16 %v230
    %v1022 = vunpack.c.l.b16 %v231
    %v1023 = vunpack.c.h.b16 %v231
    %v1024 = vunpack.c.l.b16 %v232
    %v1025 = vunpack.c.l.b16 %v233
    %v1026 = vunpack.c.h.b16 %v233
    %v1027 = vunpack.c.l.b16 %v234
    %v1028 = vunpack.c.h.b16 %v234
    %v1029 = vunpack.c.l.b16 %v235
    %v1030 = vunpack.c.l.b16 %v236
    %v1031 = vunpack.c.h.b16 %v236
    %v1032 = vunpack.c.l.b16 %v237
    %v1033 = vunpack.c.h.b16 %v237
    %v1034 = vunpack.c.l.b16 %v238
    %v1035 = vunpack.c.l.b16 %v239
    %v1036 = vunpack.c.h.b16 %v239
    %v1037 = vunpack.c.l.b16 %v240
    %v1038 = vunpack.c.h.b16 %v240
    %v1039 = vunpack.c.l.b16 %v241
    %v1040 = vunpack.c.l.b16 %v242
    %v1041 = vunpack.c.h.b16 %v242
    %v1042 = vunpack.c.l.b16 %v243
    %v1043 = vunpack.c.h.b16 %v243
    %v1044 = vunpack.c.l.b16 %v244
    %v1045 = vunpack.c.l.b16 %v245
    %v1046 = vunpack.c.h.b16 %v245
    %v1047 = vunpack.c.l.b16 %v246
    %v1048 = vunpack.c.h.b16 %v246
    %v1049 = vunpack.c.l.b16 %v247
    %v1050 = vunpack.c.l.b16 %v248
    %v1051 = vunpack.c.h.b16 %v248
    %v1052 = vunpack.c.l.b16 %v249
    %v1053 = vunpack.c.h.b16 %v249
    %v1054 = vunpack.c.l.b16 %v250
    %v1055 = vunpack.c.l.b16 %v251
    %v1056 = vunpack.c.h.b16 %v251
    %v1057 = vunpack.c.l.b16 %v252
    %v1058 = vunpack.c.h.b16 %v252
    %v1059 = vunpack.c.l.b16 %v253
    %v1060 = vunpack.c.l.b16 %v254
    %v1061 = vunpack.c.h.b16 %v254
    %v1062 = vunpack.c.l.b16 %v255
    %v1063 = vunpack.c.h.b16 %v255
    %v1064 = vunpack.c.l.b16 %v256
    %v1065 = vunpack.c.l.b16 %v257
    %v1066 = vunpack.c.h.b16 %v257
    %v1067 = vunpack.c.l.b16 %v258
    %v1068 = vunpack.c.h.b16 %v258
    %v1069 = vunpack.c.l.b16 %v259
    %v1070 = vunpack.c.l.b16 %v260
    %v1071 = vunpack.c.h.b16 %v260
    %v1072 = vunpack.c.l.b16 %v261
    %v1073 = vunpack.c.h.b16 %v261
    %v1074 = vunpack.c.l.b16 %v262
    %v1075 = vunpack.c.l.b16 %v263
    %v1076 = vunpack.c.h.b16 %v263
    %v1077 = vunpack.c.l.b16 %v264
    %v1078 = vunpack.c.h.b16 %v264
    %v1079 = vunpack.c.l.b16 %v265
    %v1080 = vunpack.c.l.b16 %v266
    %v1081 = vunpack.c.h.b16 %v266
    %v1082 = vunpack.c.l.b16 %v267
    %v1083 = vunpack.c.h.b16 %v267
    %v1084 = vunpack.c.l.b16 %v268
    %v1085 = vunpack.c.l.b16 %v269
    %v1086 = vunpack.c.h.b16 %v269
    %v1087 = vunpack.c.l.b16 %v270
    %v1088 = vunpack.c.h.b16 %v270
    %v1089 = vunpack.c.l.b16 %v271
    %v1090 = vunpack.c.l.b16 %v272
    %v1091 = vunpack.c.h.b16 %v272
    %v1092 = vunpack.c.l.b16 %v273
    %v1093 = vunpack.c.h.b16 %v273
    %v1094 = vunpack.c.l.b16 %v274
    %v1095 = vunpack.c.l.b16 %v275
    %v1096 = vunpack.c.h.b16 %v275
    %v1097 = vunpack.c.l.b16 %v276
    %v1098 = vunpack.c.h.b16 %v276
    %v1099 = vunpack.c.l.b16 %v277
    %v1100 = vunpack.c.l.b16 %v278
    %v1101 = vunpack.c.h.b16 %v278
    %v1102 = vunpack.c.l.b16 %v279
    %v1103 = vunpack.c.h.b16 %v279
    %v1104 = vunpack.c.l.b16 %v280
    %v1105 = vunpack.c.l.b16 %v281
    %v1106 = vunpack.c.h.b16 %v281
    %v1107 = vunpack.c.l.b16 %v282
    %v1108 = vunpack.c.h.b16 %v282
    %v1109 = vunpack.c.l.b16 %v283
    %v1110 = vunpack.c.l.b16 %v284
    %v1111 = vunpack.c.h.b16 %v284
    %v1112 = vunpack.c.l.b16 %v285
    %v1113 = vunpack.c.h.b16 %v285
    %v1114 = vunpack.c.l.b16 %v286
    %v1115 = vunpack.c.l.b16 %v287
    %v1116 = vunpack.c.h.b16 %v287
    %v1117 = vunpack.c.l.b16 %v288
    %v1118 = vunpack.c.h.b16 %v288
    %v1119 = vunpack.c.l.b16 %v289
    %v1120 = vunpack.c.l.b16 %v290
    %v1121 = vunpack.c.h.b16 %v290
    %v1122 = vunpack.c.l.b16 %v291
    %v1123 = vunpack.c.h.b16 %v291
    %v1124 = vunpack.c.l.b16 %v292
    %v1125 = vunpack.c.l.b16 %v293
    %v1126 = vunpack.c.h.b16 %v293
    %v1127 = vunpack.c.l.b16 %v294
    %v1128 = vunpack.c.h.b16 %v294
    %v1129 = vunpack.c.l.b16 %v295
    %v1130 = vunpack.c.l.b16 %v296
    %v1131 = vunpack.c.h.b16 %v296
    %v1132 = vunpack.c.l.b16 %v297
    %v1133 = vunpack.c.h.b16 %v297
    %v1134 = vunpack.c.l.b16 %v298
    %v1135 = vunpack.c.l.b16 %v299
    %v1136 = vunpack.c.h.b16 %v299
    %v1137 = vunpack.c.l.b16 %v300
    %v1138 = vunpack.c.h.b16 %v300
    %v1139 = vunpack.c.l.b16 %v301
    %v1140 = vunpack.c.l.b16 %v302
    %v1141 = vunpack.c.h.b16 %v302
    %v1142 = vunpack.c.l.b16 %v303
    %v1143 = vunpack.c.h.b16 %v303
    %v1144 = vunpack.c.l.b16 %v304
    %v1145 = vunpack.c.l.b16 %v305
    %v1146 = vunpack.c.h.b16 %v305
    %v1147 = vunpack.c.l.b16 %v306
    %v1148 = vunpack.c.h.b16 %v306
    %v1149 = vunpack.c.l.b16 %v307
    %v1150 = vunpack.c.l.b16 %v308
    %v1151 = vunpack.c.h.b16 %v308
    %v1152 = vunpack.c.l.b16 %v309
    %v1153 = vunpack.c.h.b16 %v309
    %v1154 = vunpack.c.l.b16 %v310
    %v1155 = vunpack.c.l.b16 %v311
    %v1156 = vunpack.c.h.b16 %v311
    %v1157 = vunpack.c.l.b16 %v312
    %v1158 = vunpack.c.h.b16 %v312
    %v1159 = vunpack.c.l.b16 %v313
    %v1160 = vunpack.c.l.b16 %v314
    %v1161 = vunpack.c.h.b16 %v314
    %v1162 = vunpack.c.l.b16 %v315
    %v1163 = vunpack.c.h.b16 %v315
    %v1164 = vunpack.c.l.b16 %v316
    %v1165 = vunpack.c.l.b16 %v317
    %v1166 = vunpack.c.h.b16 %v317
    %v1167 = vunpack.c.l.b16 %v318
    %v1168 = vunpack.c.h.b16 %v318
    %v1169 = vunpack.c.l.b16 %v319
    %v1170 = vunpack.c.l.b16 %v320
    %v1171 = vunpack.c.h.b16 %v320
    %v1172 = vunpack.c.l.b16 %v321
    %v1173 = vunpack.c.h.b16 %v321
    %v1174 = vunpack.c.l.b16 %v322
    %v1175 = vunpack.c.l.b16 %v323
    %v1176 = vunpack.c.h.b16 %v323
    %v1177 = vunpack.c.l.b16 %v324
    %v1178 = vunpack.c.h.b16 %v324
    %v1179 = vunpack.c.l.b16 %v325
    %v1180 = vunpack.c.l.b16 %v326
    %v1181 = vunpack.c.h.b16 %v326
    %v1182 = vunpack.c.l.b16 %v327
    %v1183 = vunpack.c.h.b16 %v327
    %v1184 = vunpack.c.l.b16 %v328
    %v1185 = vunpack.c.l.b16 %v329
    %v1186 = vunpack.c.h.b16 %v329
    %v1187 = vunpack.c.l.b16 %v330
    %v1188 = vunpack.c.h.b16 %v330
    %v1189 = vunpack.c.l.b16 %v331
    %v1190 = vunpack.c.l.b16 %v332
    %v1191 = vunpack.c.h.b16 %v332
    %v1192 = vunpack.c.l.b16 %v333
    %v1193 = vunpack.c.h.b16 %v333
    %v1194 = vunpack.c.l.b16 %v334
    %v1195 = vunpack.c.l.b16 %v335
    %v1196 = vunpack.c.h.b16 %v335
    %v1197 = vunpack.c.l.b16 %v336
    %v1198 = vunpack.c.h.b16 %v336
    %v1199 = vunpack.c.l.b16 %v337
    %v1200 = vunpack.c.l.b16 %v338
    %v1201 = vunpack.c.h.b16 %v338
    %v1202 = vunpack.c.l.b16 %v339
    %v1203 = vunpack.c.h.b16 %v339
    %v1204 = vunpack.c.l.b16 %v340
    %v1205 = vunpack.c.l.b16 %v341
    %v1206 = vunpack.c.h.b16 %v341
    %v1207 = vunpack.c.l.b16 %v342
    %v1208 = vunpack.c.h.b16 %v342
    %v1209 = vunpack.c.l.b16 %v343
    %v1210 = vunpack.c.l.b16 %v344
    %v1211 = vunpack.c.h.b16 %v344
    %v1212 = vunpack.c.l.b16 %v345
    %v1213 = vunpack.c.h.b16 %v345
    %v1214 = vunpack.c.l.b16 %v346
    %v1215 = vunpack.c.l.b16 %v347
    %v1216 = vunpack.c.h.b16 %v347
    %v1217 = vunpack.c.l.b16 %v348
    %v1218 = vunpack.c.h.b16 %v348
    %v1219 = vunpack.c.l.b16 %v349
    %v1220 = vunpack.c.l.b16 %v350
    %v1221 = vunpack.c.h.b16 %v350
    %v1222 = vunpack.c.l.b16 %v351
    %v1223 = vunpack.c.h.b16 %v351
    %v1224 = vunpack.c.l.b16 %v352
    %v1225 = vunpack.c.l.b16 %v353
    %v1226 = vunpack.c.h.b16 %v353
    %v1227 = vunpack.c.l.b16 %v354
    %v1228 = vunpack.c.h.b16 %v354
    %v1229 = vunpack.c.l.b16 %v355
    %v1230 = vunpack.c.l.b16 %v356
    %v1231 = vunpack.c.h.b16 %v356
    %v1232 = vunpack.c.l.b16 %v357
    %v1233 = vunpack.c.h.b16 %v357
    %v1234 = vunpack.c.l.b16 %v358
    %v1235 = vunpack.c.l.b16 %v359
    %v1236 = vunpack.c.h.b16 %v359
    %v1237 = vunpack.c.l.b16 %v360
    %v1238 = vunpack.c.h.b16 %v360
    %v1239 = vunpack.c.l.b16 %v361
    %v1240 = vunpack.c.l.b16 %v362
    %v1241 = vunpack.c.h.b16 %v362
    %v1242 = vunpack.c.l.b16 %v363
    %v1243 = vunpack.c.h.b16 %v363
    %v1244 = vunpack.c.l.b16 %v364
    %v1245 = vunpack.c.l.b16 %v365
    %v1246 = vunpack.c.h.b16 %v365
    %v1247 = vunpack.c.l.b16 %v366
    %v1248 = vunpack.c.h.b16 %v366
    %v1249 = vunpack.c.l.b16 %v367
    %v1250 = vunpack.c.l.b16 %v368
    %v1251 = vunpack.c.h.b16 %v368
    %v1252 = vunpack.c.l.b16 %v369
    %v1253 = vunpack.c.h.b16 %v369
    %v1254 = vunpack.c.l.b16 %v370
    %v1255 = vunpack.c.l.b16 %v371
    %v1256 = vunpack.c.h.b16 %v371
    %v1257 = vunpack.c.l.b16 %v372
    %v1258 = vunpack.c.h.b16 %v372
    %v1259 = vunpack.c.l.b16 %v373
    %v1260 = vunpack.c.l.b16 %v374
    %v1261 = vunpack.c.h.b16 %v374
    %v1262 = vunpack.c.l.b16 %v375
    %v1263 = vunpack.c.h.b16 %v375
    %v1264 = vunpack.c.l.b16 %v376
    %v1265 = vunpack.c.l.b16 %v377
    %v1266 = vunpack.c.h.b16 %v377
    %v1267 = vunpack.c.l.b16 %v378
    %v1268 = vunpack.c.h.b16 %v378
    %v1269 = vunpack.c.l.b16 %v379
    %v1270 = vunpack.c.l.b16 %v380
    %v1271 = vunpack.c.h.b16 %v380
    %v1272 = vunpack.c.l.b16 %v381
    %v1273 = vunpack.c.h.b16 %v381
    %v1274 = vunpack.c.l.b16 %v382
    %v1275 = vunpack.c.l.b16 %v383
    %v1276 = vunpack.c.h.b16 %v383
    %v1277 = vunpack.c.l.b16 %v384
    %v1278 = vunpack.c.h.b16 %v384
    %v1279 = vunpack.c.l.b16 %v385
    %v1280 = vunpack.c.l.b16 %v386
    %v1281 = vunpack.c.h.b16 %v386
    %v1282 = vunpack.c.l.b16 %v387
    %v1283 = vunpack.c.h.b16 %v387
    %v1284 = vunpack.c.l.b16 %v388
    %v1285 = vunpack.c.l.b16 %v389
    %v1286 = vunpack.c.h.b16 %v389
    %v1287 = vunpack.c.l.b16 %v390
    %v1288 = vunpack.c.h.b16 %v390
    %v1289 = vunpack.c.l.b16 %v391
    %v1290 = vunpack.c.l.b16 %v392
    %v1291 = vunpack.c.h.b16 %v392
    %v1292 = vunpack.c.l.b16 %v393
    %v1293 = vunpack.c.h.b16 %v393
    %v1294 = vunpack.c.l.b16 %v394
    %v1295 = vunpack.c.l.b16 %v395
    %v1296 = vunpack.c.h.b16 %v395
    %v1297 = vunpack.c.l.b16 %v396
    %v1298 = vunpack.c.h.b16 %v396
    %v1299 = vunpack.c.l.b16 %v397
    %v1300 = vunpack.c.l.b16 %v398
    %v1301 = vunpack.c.h.b16 %v398
    %v1302 = vunpack.c.l.b16 %v399
    %v1303 = vunpack.c.h.b16 %v399
    %v1304 = vunpack.c.l.b16 %v400
    %v1305 = vunpack.c.l.b16 %v401
    %v1306 = vunpack.c.h.b16 %v401
    %v1307 = vunpack.c.l.b16 %v402
    %v1308 = vunpack.c.h.b16 %v402
    %v1309 = vunpack.c.l.b16 %v403
    %v1310 = vunpack.c.l.b16 %v404
    %v1311 = vunpack.c.h.b16 %v404
    %v1312 = vunpack.c.l.b16 %v405
    %v1313 = vunpack.c.h.b16 %v405
    %v1314 = vunpack.c.l.b16 %v406
    %v1315 = vunpack.c.l.b16 %v407
    %v1316 = vunpack.c.h.b16 %v407
    %v1317 = vunpack.c.l.b16 %v408
    %v1318 = vunpack.c.h.b16 %v408
    %v1319 = vunpack.c.l.b16 %v409
    %v1320 = vunpack.c.l.b16 %v410
    %v1321 = vunpack.c.h.b16 %v410
    %v1322 = vunpack.c.l.b16 %v411
    %v1323 = vunpack.c.h.b16 %v411
    %v1324 = vunpack.c.l.b16 %v412
    %v1325 = vunpack.c.l.b16 %v413
    %v1326 = vunpack.c.h.b16 %v413
    %v1327 = vunpack.c.l.b16 %v414
    %v1328 = vunpack.c.h.b16 %v414
    %v1329 = vunpack.c.l.b16 %v415
    %v1330 = vunpack.c.l.b16 %v416
    %v1331 = vunpack.c.h.b16 %v416
    %v1332 = vunpack.c.l.b16 %v417
    %v1333 = vunpack.c.h.b16 %v417
    %v1334 = vunpack.c.l.b16 %v418
    %v1335 = vunpack.c.l.b16 %v419
    %v1336 = vunpack.c.h.b16 %v419
    %v1337 = vunpack.c.l.b16 %v420
    %v1338 = vunpack.c.h.b16 %v420
    %v1339 = vunpack.c.l.b16 %v421
    %v1340 = vunpack.c.l.b16 %v422
    %v1341 = vunpack.c.h.b16 %v422
    %v1342 = vunpack.c.l.b16 %v423
    %v1343 = vunpack.c.h.b16 %v423
    %v1344 = vunpack.c.l.b16 %v424
    %v1345 = vunpack.c.l.b16 %v425
    %v1346 = vunpack.c.h.b16 %v425
    %v1347 = vunpack.c.l.b16 %v426
    %v1348 = vunpack.c.h.b16 %v426
    %v1349 = vunpack.c.l.b16 %v427
    %v1350 = vunpack.c.l.b16 %v428
    %v1351 = vunpack.c.h.b16 %v428
    %v1352 = vunpack.c.l.b16 %v429
    %v1353 = vunpack.c.h.b16 %v429
    %v1354 = vunpack.c.l.b16 %v430
    %v1355 = vunpack.c.l.b16 %v431
    %v1356 = vunpack.c.h.b16 %v431
    %v1357 = vunpack.c.l.b16 %v432
    %v1358 = vunpack.c.h.b16 %v432
    %v1359 = vunpack.c.l.b16 %v433
    %v1360 = vunpack.c.l.b16 %v434
    %v1361 = vunpack.c.h.b16 %v434
    %v1362 = vunpack.c.l.b16 %v435
    %v1363 = vunpack.c.h.b16 %v435
    %v1364 = vunpack.c.l.b16 %v436
    %v1365 = vunpack.c.l.b16 %v437
    %v1366 = vunpack.c.h.b16 %v437
    %v1367 = vunpack.c.l.b16 %v438
    %v1368 = vunpack.c.h.b16 %v438
    %v1369 = vunpack.c.l.b16 %v439
    %v1370 = vunpack.c.l.b16 %v440
    %v1371 = vunpack.c.h.b16 %v440
    %v1372 = vunpack.c.l.b16 %v441
    %v1373 = vunpack.c.h.b16 %v441
    %v1374 = vunpack.c.l.b16 %v442
    %v1375 = vunpack.c.l.b16 %v443
    %v1376 = vunpack.c.h.b16 %v443
    %v1377 = vunpack.c.l.b16 %v444
    %v1378 = vunpack.c.h.b16 %v444
    %v1379 = vunpack.c.l.b16 %v445
    %v1380 = vunpack.c.l.b16 %v446
    %v1381 = vunpack.c.h.b16 %v446
    %v1382 = vunpack.c.l.b16 %v447
    %v1383 = vunpack.c.h.b16 %v447
    %v1384 = vunpack.c.l.b16 %v448
    %v1385 = vunpack.c.l.b16 %v449
    %v1386 = vunpack.c.h.b16 %v449
    %v1387 = vunpack.c.l.b16 %v450
    %v1388 = vunpack.c.h.b16 %v450
    %v1389 = vunpack.c.l.b16 %v451
    %v1390 = vunpack.c.l.b16 %v452
    %v1391 = vunpack.c.h.b16 %v452
    %v1392 = vunpack.c.l.b16 %v453
    %v1393 = vunpack.c.h.b16 %v453
    %v1394 = vunpack.c.l.b16 %v454
    %v1395 = vunpack.c.l.b16 %v455
    %v1396 = vunpack.c.h.b16 %v455
    %v1397 = vunpack.c.l.b16 %v456
    %v1398 = vunpack.c.h.b16 %v456
    %v1399 = vunpack.c.l.b16 %v457
    %v1400 = vunpack.c.l.b16 %v458
    %v1401 = vunpack.c.h.b16 %v458
    %v1402 = vunpack.c.l.b16 %v459
    %v1403 = vunpack.c.h.b16 %v459
    %v1404 = vunpack.c.l.b16 %v460
    %v1405 = vunpack.c.l.b16 %v461
    %v1406 = vunpack.c.h.b16 %v461
    %v1407 = vunpack.c.l.b16 %v462
    %v1408 = vunpack.c.h.b16 %v462
    %v1409 = vunpack.c.l.b16 %v463
    %v1410 = vunpack.c.l.b16 %v464
    %v1411 = vunpack.c.h.b16 %v464
    %v1412 = vunpack.c.l.b16 %v465
    %v1413 = vunpack.c.h.b16 %v465
    %v1414 = vunpack.c.l.b16 %v466
    %v1415 = vunpack.c.l.b16 %v467
    %v1416 = vunpack.c.h.b16 %v467
    %v1417 = vunpack.c.l.b16 %v468
    %v1418 = vunpack.c.h.b16 %v468
    %v1419 = vunpack.c.l.b16 %v469
    %v1420 = vunpack.c.l.b16 %v470
    %v1421 = vunpack.c.h.b16 %v470
    %v1422 = vunpack.c.l.b16 %v471
    %v1423 = vunpack.c.h.b16 %v471
    %v1424 = vunpack.c.l.b16 %v472
    %v1425 = vunpack.c.l.b16 %v473
    %v1426 = vunpack.c.h.b16 %v473
    %v1427 = vunpack.c.l.b16 %v474
    %v1428 = vunpack.c.h.b16 %v474
    %v1429 = vunpack.c.l.b16 %v475
    %v1430 = vunpack.c.l.b16 %v476
    %v1431 = vunpack.c.h.b16 %v476
    %v1432 = vunpack.c.l.b16 %v477
    %v1433 = vunpack.c.h.b16 %v477
    %v1434 = vunpack.c.l.b16 %v478
    %v1435 = vunpack.c.l.b16 %v479
    %v1436 = vunpack.c.h.b16 %v479
    %v1437 = vunpack.c.l.b16 %v480
    %v1438 = vunpack.c.h.b16 %v480
    %v1439 = vunpack.c.l.b16 %v481
    %v1440 = vunpack.c.l.b16 %v482
    %v1441 = vunpack.c.h.b16 %v482
    %v1442 = vunpack.c.l.b16 %v483
    %v1443 = vunpack.c.h.b16 %v483
    %v1444 = vunpack.c.l.b16 %v484
    %v1445 = vunpack.c.l.b16 %v485
    %v1446 = vunpack.c.h.b16 %v485
    %v1447 = vunpack.c.l.b16 %v486
    %v1448 = vunpack.c.h.b16 %v486
    %v1449 = vunpack.c.l.b16 %v487
    %v1450 = vunpack.c.l.b16 %v488
    %v1451 = vunpack.c.h.b16 %v488
    %v1452 = vunpack.c.l.b16 %v489
    %v1453 = vunpack.c.h.b16 %v489
    %v1454 = vunpack.c.l.b16 %v490
    %v1455 = vunpack.c.l.b16 %v491
    %v1456 = vunpack.c.h.b16 %v491
    %v1457 = vunpack.c.l.b16 %v492
    %v1458 = vunpack.c.h.b16 %v492
    %v1459 = vunpack.c.l.b16 %v493
    %v1460 = vunpack.c.l.b16 %v494
    %v1461 = vunpack.c.h.b16 %v494
    %v1462 = vunpack.c.l.b16 %v495
    %v1463 = vunpack.c.h.b16 %v495
    %v1464 = vunpack.c.l.b16 %v496
    %v1465 = vunpack.c.l.b16 %v497
    %v1466 = vunpack.c.h.b16 %v497
    %v1467 = vunpack.c.l.b16 %v498
    %v1468 = vunpack.c.h.b16 %v498
    %v1469 = vunpack.c.l.b16 %v499
    %v1470 = vunpack.c.l.b16 %v500
    %v1471 = vunpack.c.h.b16 %v500
    %v1472 = vunpack.c.l.b16 %v501
    %v1473 = vunpack.c.h.b16 %v501
    %v1474 = vunpack.c.l.b16 %v502
    %v1475 = vunpack.c.l.b16 %v503
    %v1476 = vunpack.c.h.b16 %v503
    %v1477 = vunpack.c.l.b16 %v504
    %v1478 = vunpack.c.h.b16 %v504
    %v1479 = vunpack.c.l.b16 %v505
    %v1480 = vunpack.c.l.b16 %v506
    %v1481 = vunpack.c.h.b16 %v506
    %v1482 = vunpack.c.l.b16 %v507
    %v1483 = vunpack.c.h.b16 %v507
    %v1484 = vunpack.c.l.b16 %v508
    %v1485 = vunpack.c.l.b16 %v509
    %v1486 = vunpack.c.h.b16 %v509
    %v1487 = vunpack.c.l.b16 %v510
    %v1488 = vunpack.c.h.b16 %v510
    %v1489 = vunpack.c.l.b16 %v511
    %v1490 = vunpack.c.l.b16 %v512
    %v1491 = vunpack.c.h.b16 %v512
    %v1492 = vunpack.c.l.b16 %v513
    %v1493 = vunpack.c.h.b16 %v513
    %v1494 = vunpack.c.l.b16 %v514
    %v1495 = vunpack.c.l.b16 %v515
    %v1496 = vunpack.c.h.b16 %v515
    %v1497 = vunpack.c.l.b16 %v516
    %v1498 = vunpack.c.h.b16 %v516
    %v1499 = vunpack.c.l.b16 %v517
    %v1500 = vunpack.c.l.b16 %v518
    %v1501 = vunpack.c.h.b16 %v518
    %v1502 = vunpack.c.l.b16 %v519
    %v1503 = vunpack.c.h.b16 %v519
    %v1504 = vunpack.c.l.b16 %v520
    %v1505 = vunpack.c.l.b16 %v521
    %v1506 = vunpack.c.h.b16 %v521
    %v1507 = vunpack.c.l.b16 %v522
    %v1508 = vunpack.c.h.b16 %v522
    %v1509 = vunpack.c.l.b16 %v523
    %v1510 = vunpack.c.l.b16 %v524
    %v1511 = vunpack.c.h.b16 %v524
    %v1512 = vunpack.c.l.b16 %v525
    %v1513 = vunpack.c.h.b16 %v525
    %v1514 = vunpack.c.l.b16 %v526
    %v1515 = vunpack.c.l.b16 %v527
    %v1516 = vunpack.c.h.b16 %v527
    %v1517 = vunpack.c.l.b16 %v528
    %v1518 = vunpack.c.h.b16 %v528
    %v1519 = vunpack.c.l.b16 %v529
    %v1520 = vunpack.c.l.b16 %v530
    %v1521 = vunpack.c.h.b16 %v530
    %v1522 = vunpack.c.l.b16 %v531
    %v1523 = vunpack.c.h.b16 %v531
    %v1524 = vunpack.c.l.b16 %v532
    %v1525 = vunpack.c.l.b16 %v533
    %v1526 = vunpack.c.h.b16 %v533
    %v1527 = vunpack.c.l.b16 %v534
    %v1528 = vunpack.c.h.b16 %v534
    %v1529 = vunpack.c.l.b16 %v535
    %v1530 = vunpack.c.l.b16 %v536
    %v1531 = vunpack.c.h.b16 %v536
    %v1532 = vunpack.c.l.b16 %v537
    %v1533 = vunpack.c.h.b16 %v537
    %v1534 = vunpack.c.l.b16 %v538
    %v1535 = vunpack.c.l.b16 %v539
    %v1536 = vunpack.c.h.b16 %v539
    %v1537 = vunpack.c.l.b16 %v540
    %v1538 = vunpack.c.h.b16 %v540
    %v1539 = vunpack.c.l.b16 %v541
    %v1540 = vunpack.c.l.b16 %v542
    %v1541 = vunpack.c.h.b16 %v542
    %v1542 = vunpack.c.l.b16 %v543
    %v1543 = vunpack.c.h.b16 %v543
    %v1544 = vunpack.c.l.b16 %v544
    %v1545 = vunpack.c.l.b16 %v545
    %v1546 = vunpack.c.h.b16 %v545
    %v1547 = vunpack.c.l.b16 %v546
    %v1548 = vunpack.c.h.b16 %v546
    %v1549 = vunpack.c.l.b16 %v547
    %v1550 = vunpack.c.l.b16 %v548
    %v1551 = vunpack.c.h.b16 %v548
    %v1552 = vunpack.c.l.b16 %v549
    %v1553 = vunpack.c.h.b16 %v549
    %v1554 = vunpack.c.l.b16 %v550
    %v1555 = vunpack.c.l.b16 %v551
    %v1556 = vunpack.c.h.b16 %v551
    %v1557 = vunpack.c.l.b16 %v552
    %v1558 = vunpack.c.h.b16 %v552
    %v1559 = vunpack.c.l.b16 %v553
    %v1560 = vunpack.c.l.b16 %v554
    %v1561 = vunpack.c.h.b16 %v554
    %v1562 = vunpack.c.l.b16 %v555
    %v1563 = vunpack.c.h.b16 %v555
    %v1564 = vunpack.c.l.b16 %v556
    %v1565 = vunpack.c.l.b16 %v557
    %v1566 = vunpack.c.h.b16 %v557
    %v1567 = vunpack.c.l.b16 %v558
    %v1568 = vunpack.c.h.b16 %v558
    %v1569 = vunpack.c.l.b16 %v559
    %v1570 = vunpack.c.l.b16 %v560
    %v1571 = vunpack.c.h.b16 %v560
    %v1572 = vunpack.c.l.b16 %v561
    %v1573 = vunpack.c.h.b16 %v561
    %v1574 = vunpack.c.l.b16 %v562
    %v1575 = vunpack.c.l.b16 %v563
    %v1576 = vunpack.c.h.b16 %v563
    %v1577 = vunpack.c.l.b16 %v564
    %v1578 = vunpack.c.h.b16 %v564
    %v1579 = vunpack.c.l.b16 %v565
    %v1580 = vunpack.c.l.b16 %v566
    %v1581 = vunpack.c.h.b16 %v566
    %v1582 = vunpack.c.l.b16 %v567
    %v1583 = vunpack.c.h.b16 %v567
    %v1584 = vunpack.c.l.b16 %v568
    %v1585 = vunpack.c.l.b16 %v569
    %v1586 = vunpack.c.h.b16 %v569
    %v1587 = vunpack.c.l.b16 %v570
    %v1588 = vunpack.c.h.b16 %v570
    %v1589 = vunpack.c.l.b16 %v571
    %v1590 = vunpack.c.l.b16 %v572
    %v1591 = vunpack.c.h.b16 %v572
    %v1592 = vunpack.c.l.b16 %v573
    %v1593 = vunpack.c.h.b16 %v573
    %v1594 = vunpack.c.l.b16 %v574
    %v1595 = vunpack.c.l.b16 %v575
    %v1596 = vunpack.c.h.b16 %v575
    %v1597 = vunpack.c.l.b16 %v576
    %v1598 = vunpack.c.h.b16 %v576
    %v1599 = vunpack.c.l.b16 %v577
    %v1600 = vunpack.c.l.b16 %v578
    %v1601 = vunpack.c.h.b16 %v578
    %v1602 = vunpack.c.l.b16 %v579
    %v1603 = vunpack.c.h.b16 %v579
    %v1604 = vunpack.c.l.b16 %v580
    %v1605 = vpack.c.b16 %v970, %v965
    %v1606 = vpack.c.b16 %v971, %v966
    %v1607 = vpack.c.b16 %v972, %v967
    %v1608 = vpack.c.b16 %v973, %v968
    %v1609 = vpack.c.b16 %v974, %v969
    %v1610 = vpack.c.b16 %v980, %v975
    %v1611 = vpack.c.b16 %v981, %v976
    %v1612 = vpack.c.b16 %v982, %v977
    %v1613 = vpack.c.b16 %v983, %v978
    %v1614 = vpack.c.b16 %v984, %v979
    %v1615 = vpack.c.b16 %v990, %v985
    %v1616 = vpack.c.b16 %v991, %v986
    %v1617 = vpack.c.b16 %v992, %v987
    %v1618 = vpack.c.b16 %v993, %v988
    %v1619 = vpack.c.b16 %v994, %v989
    %v1620 = vpack.c.b16 %v1000, %v995
    %v1621 = vpack.c.b16 %v1001, %v996
    %v1622 = vpack.c.b16 %v1002, %v997
    %v1623 = vpack.c.b16 %v1003, %v998
    %v1624 = vpack.c.b16 %v1004, %v999
    %v1625 = vpack.c.b16 %v1010, %v1005
    %v1626 = vpack.c.b16 %v1011, %v1006
    %v1627 = vpack.c.b16 %v1012, %v1007
    %v1628 = vpack.c.b16 %v1013, %v1008
    %v1629 = vpack.c.b16 %v1014, %v1009
    %v1630 = vpack.c.b16 %v1020, %v1015
    %v1631 = vpack.c.b16 %v1021, %v1016
    %v1632 = vpack.c.b16 %v1022, %v1017
    %v1633 = vpack.c.b16 %v1023, %v1018
    %v1634 = vpack.c.b16 %v1024, %v1019
    %v1635 = vpack.c.b16 %v1030, %v1025
    %v1636 = vpack.c.b16 %v1031, %v1026
    %v1637 = vpack.c.b16 %v1032, %v1027
    %v1638 = vpack.c.b16 %v1033, %v1028
    %v1639 = vpack.c.b16 %v1034, %v1029
    %v1640 = vpack.c.b16 %v1040, %v1035
    %v1641 = vpack.c.b16 %v1041, %v1036
    %v1642 = vpack.c.b16 %v1042, %v1037
    %v1643 = vpack.c.b16 %v1043, %v1038
    %v1644 = vpack.c.b16 %v1044, %v1039
    %v1645 = vpack.c.b16 %v1050, %v1045
    %v1646 = vpack.c.b16 %v1051, %v1046
    %v1647 = vpack.c.b16 %v1052, %v1047
    %v1648 = vpack.c.b16 %v1053, %v1048
    %v1649 = vpack.c.b16 %v1054, %v1049
    %v1650 = vpack.c.b16 %v1060, %v1055
    %v1651 = vpack.c.b16 %v1061, %v1056
    %v1652 = vpack.c.b16 %v1062, %v1057
    %v1653 = vpack.c.b16 %v1063, %v1058
    %v1654 = vpack.c.b16 %v1064, %v1059
    %v1655 = vpack.c.b16 %v1070, %v1065
    %v1656 = vpack.c.b16 %v1071, %v1066
    %v1657 = vpack.c.b16 %v1072, %v1067
    %v1658 = vpack.c.b16 %v1073, %v1068
    %v1659 = vpack.c.b16 %v1074, %v1069
    %v1660 = vpack.c.b16 %v1080, %v1075
    %v1661 = vpack.c.b16 %v1081, %v1076
    %v1662 = vpack.c.b16 %v1082, %v1077
    %v1663 = vpack.c.b16 %v1083, %v1078
    %v1664 = vpack.c.b16 %v1084, %v1079
    %v1665 = vpack.c.b16 %v1090, %v1085
    %v1666 = vpack.c.b16 %v1091, %v1086
    %v1667 = vpack.c.b16 %v1092, %v1087
    %v1668 = vpack.c.b16 %v1093, %v1088
    %v1669 = vpack.c.b16 %v1094, %v1089
    %v1670 = vpack.c.b16 %v1100, %v1095
    %v1671 = vpack.c.b16 %v1101, %v1096
    %v1672 = vpack.c.b16 %v1102, %v1097
    %v1673 = vpack.c.b16 %v1103, %v1098
    %v1674 = vpack.c.b16 %v1104, %v1099
    %v1675 = vpack.c.b16 %v1110, %v1105
    %v1676 = vpack.c.b16 %v1111, %v1106
    %v1677 = vpack.c.b16 %v1112, %v1107
    %v1678 = vpack.c.b16 %v1113, %v1108
    %v1679 = vpack.c.b16 %v1114, %v1109
    %v1680 = vpack.c.b16 %v1120, %v1115
    %v1681 = vpack.c.b16 %v1121, %v1116
    %v1682 = vpack.c.b16 %v1122, %v1117
    %v1683 = vpack.c.b16 %v1123, %v1118
    %v1684 = vpack.c.b16 %v1124, %v1119
    %v1685 = vpack.c.b16 %v1130, %v1125
    %v1686 = vpack.c.b16 %v1131, %v1126
    %v1687 = vpack.c.b16 %v1132, %v1127
    %v1688 = vpack.c.b16 %v1133, %v1128
    %v1689 = vpack.c.b16 %v1134, %v1129
    %v1690 = vpack.c.b16 %v1140, %v1135
    %v1691 = vpack.c.b16 %v1141, %v1136
    %v1692 = vpack.c.b16 %v1142, %v1137
    %v1693 = vpack.c.b16 %v1143, %v1138
    %v1694 = vpack.c.b16 %v1144, %v1139
    %v1695 = vpack.c.b16 %v1150, %v1145
    %v1696 = vpack.c.b16 %v1151, %v1146
    %v1697 = vpack.c.b16 %v1152, %v1147
    %v1698 = vpack.c.b16 %v1153, %v1148
    %v1699 = vpack.c.b16 %v1154, %v1149
    %v1700 = vpack.c.b16 %v1160, %v1155
    %v1701 = vpack.c.b16 %v1161, %v1156
    %v1702 = vpack.c.b16 %v1162, %v1157
    %v1703 = vpack.c.b16 %v1163, %v1158
    %v1704 = vpack.c.b16 %v1164, %v1159
    %v1705 = vpack.c.b16 %v1170, %v1165
    %v1706 = vpack.c.b16 %v1171, %v1166
    %v1707 = vpack.c.b16 %v1172, %v1167
    %v1708 = vpack.c.b16 %v1173, %v1168
    %v1709 = vpack.c.b16 %v1174, %v1169
    %v1710 = vpack.c.b16 %v1180, %v1175
    %v1711 = vpack.c.b16 %v1181, %v1176
    %v1712 = vpack.c.b16 %v1182, %v1177
    %v1713 = vpack.c.b16 %v1183, %v1178
    %v1714 = vpack.c.b16 %v1184, %v1179
    %v1715 = vpack.c.b16 %v1190, %v1185
    %v1716 = vpack.c.b16 %v1191, %v1186
    %v1717 = vpack.c.b16 %v1192, %v1187
    %v1718 = vpack.c.b16 %v1193, %v1188
    %v1719 = vpack.c.b16 %v1194, %v1189
    %v1720 = vpack.c.b16 %v1200, %v1195
    %v1721 = vpack.c.b16 %v1201, %v1196
    %v1722 = vpack.c.b16 %v1202, %v1197
    %v1723 = vpack.c.b16 %v1203, %v1198
    %v1724 = vpack.c.b16 %v1204, %v1199
    %v1725 = vpack.c.b16 %v1210, %v1205
    %v1726 = vpack.c.b16 %v1211, %v1206
    %v1727 = vpack.c.b16 %v1212, %v1207
    %v1728 = vpack.c.b16 %v1213, %v1208
    %v1729 = vpack.c.b16 %v1214, %v1209
    %v1730 = vpack.c.b16 %v1220, %v1215
    %v1731 = vpack.c.b16 %v1221, %v1216
    %v1732 = vpack.c.b16 %v1222, %v1217
    %v1733 = vpack.c.b16 %v1223, %v1218
    %v1734 = vpack.c.b16 %v1224, %v1219
    %v1735 = vpack.c.b16 %v1230, %v1225
    %v1736 = vpack.c.b16 %v1231, %v1226
    %v1737 = vpack.c.b16 %v1232, %v1227
    %v1738 = vpack.c.b16 %v1233, %v1228
    %v1739 = vpack.c.b16 %v1234, %v1229
    %v1740 = vpack.c.b16 %v1240, %v1235
    %v1741 = vpack.c.b16 %v1241, %v1236
    %v1742 = vpack.c.b16 %v1242, %v1237
    %v1743 = vpack.c.b16 %v1243, %v1238
    %v1744 = vpack.c.b16 %v1244, %v1239
    %v1745 = vpack.c.b16 %v1250, %v1245
    %v1746 = vpack.c.b16 %v1251, %v1246
    %v1747 = vpack.c.b16 %v1252, %v1247
    %v1748 = vpack.c.b16 %v1253, %v1248
    %v1749 = vpack.c.b16 %v1254, %v1249
    %v1750 = vpack.c.b16 %v1260, %v1255
    %v1751 = vpack.c.b16 %v1261, %v1256
    %v1752 = vpack.c.b16 %v1262, %v1257
    %v1753 = vpack.c.b16 %v1263, %v1258
    %v1754 = vpack.c.b16 %v1264, %v1259
    %v1755 = vpack.c.b16 %v1270, %v1265
    %v1756 = vpack.c.b16 %v1271, %v1266
    %v1757 = vpack.c.b16 %v1272, %v1267
    %v1758 = vpack.c.b16 %v1273, %v1268
    %v1759 = vpack.c.b16 %v1274, %v1269
    %v1760 = vpack.c.b16 %v1280, %v1275
    %v1761 = vpack.c.b16 %v1281, %v1276
    %v1762 = vpack.c.b16 %v1282, %v1277
    %v1763 = vpack.c.b16 %v1283, %v1278
    %v1764 = vpack.c.b16 %v1284, %v1279
    %v1765 = vpack.c.b16 %v1290, %v1285
    %v1766 = vpack.c.b16 %v1291, %v1286
    %v1767 = vpack.c.b16 %v1292, %v1287
    %v1768 = vpack.c.b16 %v1293, %v1288
    %v1769 = vpack.c.b16 %v1294, %v1289
    %v1770 = vpack.c.b16 %v1300, %v1295
    %v1771 = vpack.c.b16 %v1301, %v1296
    %v1772 = vpack.c.b16 %v1302, %v1297
    %v1773 = vpack.c.b16 %v1303, %v1298
    %v1774 = vpack.c.b16 %v1304, %v1299
    %v1775 = vpack.c.b16 %v1310, %v1305
    %v1776 = vpack.c.b16 %v1311, %v1306
    %v1777 = vpack.c.b16 %v1312, %v1307
    %v1778 = vpack.c.b16 %v1313, %v1308
    %v1779 = vpack.c.b16 %v1314, %v1309
    %v1780 = vpack.c.b16 %v1320, %v1315
    %v1781 = vpack.c.b16 %v1321, %v1316
    %v1782 = vpack.c.b16 %v1322, %v1317
    %v1783 = vpack.c.b16 %v1323, %v1318
    %v1784 = vpack.c.b16 %v1324, %v1319
    %v1785 = vpack.c.b16 %v1330, %v1325
    %v1786 = vpack.c.b16 %v1331, %v1326
    %v1787 = vpack.c.b16 %v1332, %v1327
    %v1788 = vpack.c.b16 %v1333, %v1328
    %v1789 = vpack.c.b16 %v1334, %v1329
    %v1790 = vpack.c.b16 %v1340, %v1335
    %v1791 = vpack.c.b16 %v1341, %v1336
    %v1792 = vpack.c.b16 %v1342, %v1337
    %v1793 = vpack.c.b16 %v1343, %v1338
    %v1794 = vpack.c.b16 %v1344, %v1339
    %v1795 = vpack.c.b16 %v1350, %v1345
    %v1796 = vpack.c.b16 %v1351, %v1346
    %v1797 = vpack.c.b16 %v1352, %v1347
    %v1798 = vpack.c.b16 %v1353, %v1348
    %v1799 = vpack.c.b16 %v1354, %v1349
    %v1800 = vpack.c.b16 %v1360, %v1355
    %v1801 = vpack.c.b16 %v1361, %v1356
    %v1802 = vpack.c.b16 %v1362, %v1357
    %v1803 = vpack.c.b16 %v1363, %v1358
    %v1804 = vpack.c.b16 %v1364, %v1359
    %v1805 = vpack.c.b16 %v1370, %v1365
    %v1806 = vpack.c.b16 %v1371, %v1366
    %v1807 = vpack.c.b16 %v1372, %v1367
    %v1808 = vpack.c.b16 %v1373, %v1368
    %v1809 = vpack.c.b16 %v1374, %v1369
    %v1810 = vpack.c.b16 %v1380, %v1375
    %v1811 = vpack.c.b16 %v1381, %v1376
    %v1812 = vpack.c.b16 %v1382, %v1377
    %v1813 = vpack.c.b16 %v1383, %v1378
    %v1814 = vpack.c.b16 %v1384, %v1379
    %v1815 = vpack.c.b16 %v1390, %v1385
    %v1816 = vpack.c.b16 %v1391, %v1386
    %v1817 = vpack.c.b16 %v1392, %v1387
    %v1818 = vpack.c.b16 %v1393, %v1388
    %v1819 = vpack.c.b16 %v1394, %v1389
    %v1820 = vpack.c.b16 %v1400, %v1395
    %v1821 = vpack.c.b16 %v1401, %v1396
    %v1822 = vpack.c.b16 %v1402, %v1397
    %v1823 = vpack.c.b16 %v1403, %v1398
    %v1824 = vpack.c.b16 %v1404, %v1399
    %v1825 = vpack.c.b16 %v1410, %v1405
    %v1826 = vpack.c.b16 %v1411, %v1406
    %v1827 = vpack.c.b16 %v1412, %v1407
    %v1828 = vpack.c.b16 %v1413, %v1408
    %v1829 = vpack.c.b16 %v1414, %v1409
    %v1830 = vpack.c.b16 %v1420, %v1415
    %v1831 = vpack.c.b16 %v1421, %v1416
    %v1832 = vpack.c.b16 %v1422, %v1417
    %v1833 = vpack.c.b16 %v1423, %v1418
    %v1834 = vpack.c.b16 %v1424, %v1419
    %v1835 = vpack.c.b16 %v1430, %v1425
    %v1836 = vpack.c.b16 %v1431, %v1426
    %v1837 = vpack.c.b16 %v1432, %v1427
    %v1838 = vpack.c.b16 %v1433, %v1428
    %v1839 = vpack.c.b16 %v1434, %v1429
    %v1840 = vpack.c.b16 %v1440, %v1435
    %v1841 = vpack.c.b16 %v1441, %v1436
    %v1842 = vpack.c.b16 %v1442, %v1437
    %v1843 = vpack.c.b16 %v1443, %v1438
    %v1844 = vpack.c.b16 %v1444, %v1439
    %v1845 = vpack.c.b16 %v1450, %v1445
    %v1846 = vpack.c.b16 %v1451, %v1446
    %v1847 = vpack.c.b16 %v1452, %v1447
    %v1848 = vpack.c.b16 %v1453, %v1448
    %v1849 = vpack.c.b16 %v1454, %v1449
    %v1850 = vpack.c.b16 %v1460, %v1455
    %v1851 = vpack.c.b16 %v1461, %v1456
    %v1852 = vpack.c.b16 %v1462, %v1457
    %v1853 = vpack.c.b16 %v1463, %v1458
    %v1854 = vpack.c.b16 %v1464, %v1459
    %v1855 = vpack.c.b16 %v1470, %v1465
    %v1856 = vpack.c.b16 %v1471, %v1466
    %v1857 = vpack.c.b16 %v1472, %v1467
    %v1858 = vpack.c.b16 %v1473, %v1468
    %v1859 = vpack.c.b16 %v1474, %v1469
    %v1860 = vpack.c.b16 %v1480, %v1475
    %v1861 = vpack.c.b16 %v1481, %v1476
    %v1862 = vpack.c.b16 %v1482, %v1477
    %v1863 = vpack.c.b16 %v1483, %v1478
    %v1864 = vpack.c.b16 %v1484, %v1479
    %v1865 = vpack.c.b16 %v1490, %v1485
    %v1866 = vpack.c.b16 %v1491, %v1486
    %v1867 = vpack.c.b16 %v1492, %v1487
    %v1868 = vpack.c.b16 %v1493, %v1488
    %v1869 = vpack.c.b16 %v1494, %v1489
    %v1870 = vpack.c.b16 %v1500, %v1495
    %v1871 = vpack.c.b16 %v1501, %v1496
    %v1872 = vpack.c.b16 %v1502, %v1497
    %v1873 = vpack.c.b16 %v1503, %v1498
    %v1874 = vpack.c.b16 %v1504, %v1499
    %v1875 = vpack.c.b16 %v1510, %v1505
    %v1876 = vpack.c.b16 %v1511, %v1506
    %v1877 = vpack.c.b16 %v1512, %v1507
    %v1878 = vpack.c.b16 %v1513, %v1508
    %v1879 = vpack.c.b16 %v1514, %v1509
    %v1880 = vpack.c.b16 %v1520, %v1515
    %v1881 = vpack.c.b16 %v1521, %v1516
    %v1882 = vpack.c.b16 %v1522, %v1517
    %v1883 = vpack.c.b16 %v1523, %v1518
    %v1884 = vpack.c.b16 %v1524, %v1519
    %v1885 = vpack.c.b16 %v1530, %v1525
    %v1886 = vpack.c.b16 %v1531, %v1526
    %v1887 = vpack.c.b16 %v1532, %v1527
    %v1888 = vpack.c.b16 %v1533, %v1528
    %v1889 = vpack.c.b16 %v1534, %v1529
    %v1890 = vpack.c.b16 %v1540, %v1535
    %v1891 = vpack.c.b16 %v1541, %v1536
    %v1892 = vpack.c.b16 %v1542, %v1537
    %v1893 = vpack.c.b16 %v1543, %v1538
    %v1894 = vpack.c.b16 %v1544, %v1539
    %v1895 = vpack.c.b16 %v1550, %v1545
    %v1896 = vpack.c.b16 %v1551, %v1546
    %v1897 = vpack.c.b16 %v1552, %v1547
    %v1898 = vpack.c.b16 %v1553, %v1548
    %v1899 = vpack.c.b16 %v1554, %v1549
    %v1900 = vpack.c.b16 %v1560, %v1555
    %v1901 = vpack.c.b16 %v1561, %v1556
    %v1902 = vpack.c.b16 %v1562, %v1557
    %v1903 = vpack.c.b16 %v1563, %v1558
    %v1904 = vpack.c.b16 %v1564, %v1559
    %v1905 = vpack.c.b16 %v1570, %v1565
    %v1906 = vpack.c.b16 %v1571, %v1566
    %v1907 = vpack.c.b16 %v1572, %v1567
    %v1908 = vpack.c.b16 %v1573, %v1568
    %v1909 = vpack.c.b16 %v1574, %v1569
    %v1910 = vpack.c.b16 %v1580, %v1575
    %v1911 = vpack.c.b16 %v1581, %v1576
    %v1912 = vpack.c.b16 %v1582, %v1577
    %v1913 = vpack.c.b16 %v1583, %v1578
    %v1914 = vpack.c.b16 %v1584, %v1579
    %v1915 = vpack.c.b16 %v1590, %v1585
    %v1916 = vpack.c.b16 %v1591, %v1586
    %v1917 = vpack.c.b16 %v1592, %v1587
    %v1918 = vpack.c.b16 %v1593, %v1588
    %v1919 = vpack.c.b16 %v1594, %v1589
    %v1920 = vpack.c.b16 %v1600, %v1595
    %v1921 = vpack.c.b16 %v1601, %v1596
    %v1922 = vpack.c.b16 %v1602, %v1597
    %v1923 = vpack.c.b16 %v1603, %v1598
    %v1924 = vpack.c.b16 %v1604, %v1599
    %2245 = vmatprep.subr.bf16.mxu0 %v1641
    %2246 = vmatpush1.bf16.msra.mxu0 %v1640
    %2247 = vmatprep.subr.bf16.mxu0 %v1636
    %2248 = vmatpush1.bf16.msra.mxu0 %v1635
    %2249 = vmatprep.subr.bf16.mxu0 %v1631
    %2250 = vmatpush1.bf16.msra.mxu0 %v1630
    %2251 = vmatprep.subr.bf16.mxu0 %v1626
    %2252 = vmatpush1.bf16.msra.mxu0 %v1625
    %2253 = vmatprep.subr.bf16.mxu0 %v1621
    %2254 = vmatpush1.bf16.msra.mxu0 %v1620
    %2255 = vmatprep.subr.bf16.mxu0 %v1616
    %2256 = vmatpush1.bf16.msra.mxu0 %v1615
    %2257 = vmatprep.subr.bf16.mxu0 %v1611
    %2258 = vmatpush1.bf16.msra.mxu0 %v1610
    %2259 = vmatprep.subr.bf16.mxu0 %v1606
    %2260 = vmatpush1.bf16.msra.mxu0 %v1605
    %2261 = vmatprep.subr.bf16.mxu0 %v1681
    %2262 = vmatpush2.bf16.msra.mxu0 %v1680
    %2263 = vmatprep.subr.bf16.mxu0 %v1676
    %2264 = vmatpush2.bf16.msra.mxu0 %v1675
    %2265 = vmatprep.subr.bf16.mxu0 %v1671
    %2266 = vmatpush2.bf16.msra.mxu0 %v1670
    %2267 = vmatprep.subr.bf16.mxu0 %v1666
    %2268 = vmatpush2.bf16.msra.mxu0 %v1665
    %2269 = vmatprep.subr.bf16.mxu0 %v1661
    %2270 = vmatpush2.bf16.msra.mxu0 %v1660
    %2271 = vmatprep.subr.bf16.mxu0 %v1656
    %2272 = vmatpush2.bf16.msra.mxu0 %v1655
    %2273 = vmatprep.subr.bf16.mxu0 %v1651
    %2274 = vmatpush2.bf16.msra.mxu0 %v1650
    %2275 = vmatprep.subr.bf16.mxu0 %v1646
    %2276 = vmatpush2.bf16.msra.mxu0 %v1645
    %2277 = vmatprep.mubr.bf16.mxu0 %v190
    %2278 = vmatmul.mubr.bf16.gmra.mxu0 %v189
    %v2279 = vpop.f32.mrf.mxu0
    %v2280 = vadd.f32 0.0, %v2279
    %v2281 = vpop.f32.mrf.mxu0
    %v2282 = vadd.f32 0.0, %v2281
    %v2283 = vpop.f32.mrf.mxu0
    %v2284 = vpop.f32.mrf.mxu0
    %2285 = vdwg.mxu0
    %2286 = vmatprep.subr.bf16.mxu0 %v1721
    %2287 = vmatpush1.bf16.msra.mxu0 %v1720
    %2288 = vmatprep.subr.bf16.mxu0 %v1716
    %2289 = vmatpush1.bf16.msra.mxu0 %v1715
    %2290 = vmatprep.subr.bf16.mxu0 %v1711
    %2291 = vmatpush1.bf16.msra.mxu0 %v1710
    %2292 = vmatprep.subr.bf16.mxu0 %v1706
    %2293 = vmatpush1.bf16.msra.mxu0 %v1705
    %2294 = vmatprep.subr.bf16.mxu0 %v1701
    %2295 = vmatpush1.bf16.msra.mxu0 %v1700
    %2296 = vmatprep.subr.bf16.mxu0 %v1696
    %2297 = vmatpush1.bf16.msra.mxu0 %v1695
    %2298 = vmatprep.subr.bf16.mxu0 %v1691
    %2299 = vmatpush1.bf16.msra.mxu0 %v1690
    %2300 = vmatprep.subr.bf16.mxu0 %v1686
    %2301 = vmatpush1.bf16.msra.mxu0 %v1685
    %2302 = vmatprep.subr.bf16.mxu0 %v1761
    %2303 = vmatpush2.bf16.msra.mxu0 %v1760
    %2304 = vmatprep.subr.bf16.mxu0 %v1756
    %2305 = vmatpush2.bf16.msra.mxu0 %v1755
    %2306 = vmatprep.subr.bf16.mxu0 %v1751
    %2307 = vmatpush2.bf16.msra.mxu0 %v1750
    %2308 = vmatprep.subr.bf16.mxu0 %v1746
    %2309 = vmatpush2.bf16.msra.mxu0 %v1745
    %2310 = vmatprep.subr.bf16.mxu0 %v1741
    %2311 = vmatpush2.bf16.msra.mxu0 %v1740
    %2312 = vmatprep.subr.bf16.mxu0 %v1736
    %2313 = vmatpush2.bf16.msra.mxu0 %v1735
    %2314 = vmatprep.subr.bf16.mxu0 %v1731
    %2315 = vmatpush2.bf16.msra.mxu0 %v1730
    %2316 = vmatprep.subr.bf16.mxu0 %v1726
    %2317 = vmatpush2.bf16.msra.mxu0 %v1725
    %2318 = vmatprep.mubr.bf16.mxu0 %v192
    %2319 = vmatmul.mubr.bf16.gmra.mxu0 %v191
    %v2320 = vpop.f32.mrf.mxu0
    %v2321 = vadd.f32 %v2280, %v2320
    %v2322 = vpop.f32.mrf.mxu0
    %v2323 = vadd.f32 %v2282, %v2322
    %v2324 = vpop.f32.mrf.mxu0
    %v2325 = vpop.f32.mrf.mxu0
    %2326 = vdwg.mxu0
    %2327 = vmatprep.subr.bf16.mxu0 %v1801
    %2328 = vmatpush1.bf16.msra.mxu0 %v1800
    %2329 = vmatprep.subr.bf16.mxu0 %v1796
    %2330 = vmatpush1.bf16.msra.mxu0 %v1795
    %2331 = vmatprep.subr.bf16.mxu0 %v1791
    %2332 = vmatpush1.bf16.msra.mxu0 %v1790
    %2333 = vmatprep.subr.bf16.mxu0 %v1786
    %2334 = vmatpush1.bf16.msra.mxu0 %v1785
    %2335 = vmatprep.subr.bf16.mxu0 %v1781
    %2336 = vmatpush1.bf16.msra.mxu0 %v1780
    %2337 = vmatprep.subr.bf16.mxu0 %v1776
    %2338 = vmatpush1.bf16.msra.mxu0 %v1775
    %2339 = vmatprep.subr.bf16.mxu0 %v1771
    %2340 = vmatpush1.bf16.msra.mxu0 %v1770
    %2341 = vmatprep.subr.bf16.mxu0 %v1766
    %2342 = vmatpush1.bf16.msra.mxu0 %v1765
    %2343 = vmatprep.subr.bf16.mxu0 %v1841
    %2344 = vmatpush2.bf16.msra.mxu0 %v1840
    %2345 = vmatprep.subr.bf16.mxu0 %v1836
    %2346 = vmatpush2.bf16.msra.mxu0 %v1835
    %2347 = vmatprep.subr.bf16.mxu0 %v1831
    %2348 = vmatpush2.bf16.msra.mxu0 %v1830
    %2349 = vmatprep.subr.bf16.mxu0 %v1826
    %2350 = vmatpush2.bf16.msra.mxu0 %v1825
    %2351 = vmatprep.subr.bf16.mxu0 %v1821
    %2352 = vmatpush2.bf16.msra.mxu0 %v1820
    %2353 = vmatprep.subr.bf16.mxu0 %v1816
    %2354 = vmatpush2.bf16.msra.mxu0 %v1815
    %2355 = vmatprep.subr.bf16.mxu0 %v1811
    %2356 = vmatpush2.bf16.msra.mxu0 %v1810
    %2357 = vmatprep.subr.bf16.mxu0 %v1806
    %2358 = vmatpush2.bf16.msra.mxu0 %v1805
    %2359 = vmatprep.mubr.bf16.mxu0 %v194
    %2360 = vmatmul.mubr.bf16.gmra.mxu0 %v193
    %v2361 = vpop.f32.mrf.mxu0
    %v2362 = vadd.f32 %v2321, %v2361
    %v2363 = vpop.f32.mrf.mxu0
    %v2364 = vadd.f32 %v2323, %v2363
    %v2365 = vpop.f32.mrf.mxu0
    %v2366 = vpop.f32.mrf.mxu0
    %2367 = vdwg.mxu0
    %2368 = vmatprep.subr.bf16.mxu0 %v1881
    %2369 = vmatpush1.bf16.msra.mxu0 %v1880
    %2370 = vmatprep.subr.bf16.mxu0 %v1876
    %2371 = vmatpush1.bf16.msra.mxu0 %v1875
    %2372 = vmatprep.subr.bf16.mxu0 %v1871
    %2373 = vmatpush1.bf16.msra.mxu0 %v1870
    %2374 = vmatprep.subr.bf16.mxu0 %v1866
    %2375 = vmatpush1.bf16.msra.mxu0 %v1865
    %2376 = vmatprep.subr.bf16.mxu0 %v1861
    %2377 = vmatpush1.bf16.msra.mxu0 %v1860
    %2378 = vmatprep.subr.bf16.mxu0 %v1856
    %2379 = vmatpush1.bf16.msra.mxu0 %v1855
    %2380 = vmatprep.subr.bf16.mxu0 %v1851
    %2381 = vmatpush1.bf16.msra.mxu0 %v1850
    %2382 = vmatprep.subr.bf16.mxu0 %v1846
    %2383 = vmatpush1.bf16.msra.mxu0 %v1845
    %2384 = vmatprep.subr.bf16.mxu0 %v1921
    %2385 = vmatpush2.bf16.msra.mxu0 %v1920
    %2386 = vmatprep.subr.bf16.mxu0 %v1916
    %2387 = vmatpush2.bf16.msra.mxu0 %v1915
    %2388 = vmatprep.subr.bf16.mxu0 %v1911
    %2389 = vmatpush2.bf16.msra.mxu0 %v1910
    %2390 = vmatprep.subr.bf16.mxu0 %v1906
    %2391 = vmatpush2.bf16.msra.mxu0 %v1905
    %2392 = vmatprep.subr.bf16.mxu0 %v1901
    %2393 = vmatpush2.bf16.msra.mxu0 %v1900
    %2394 = vmatprep.subr.bf16.mxu0 %v1896
    %2395 = vmatpush2.bf16.msra.mxu0 %v1895
    %2396 = vmatprep.subr.bf16.mxu0 %v1891
    %2397 = vmatpush2.bf16.msra.mxu0 %v1890
    %2398 = vmatprep.subr.bf16.mxu0 %v1886
    %2399 = vmatpush2.bf16.msra.mxu0 %v1885
    %2400 = vmatprep.mubr.bf16.mxu0 %v196
    %2401 = vmatmul.mubr.bf16.gmra.mxu0 %v195
    %v2402 = vpop.f32.mrf.mxu0
    %v2403 = vadd.f32 %v2362, %v2402
    %v2404 = vpop.f32.mrf.mxu0
    %v2405 = vadd.f32 %v2364, %v2404
    %v2406 = vpop.f32.mrf.mxu0
    %v2407 = vpop.f32.mrf.mxu0
    %2408 = vdwg.mxu0
    %2409 = vmatprep.subr.bf16.mxu0 %v1643
    %2410 = vmatpush1.bf16.msra.mxu0 %v1642
    %2411 = vmatprep.subr.bf16.mxu0 %v1638
    %2412 = vmatpush1.bf16.msra.mxu0 %v1637
    %2413 = vmatprep.subr.bf16.mxu0 %v1633
    %2414 = vmatpush1.bf16.msra.mxu0 %v1632
    %2415 = vmatprep.subr.bf16.mxu0 %v1628
    %2416 = vmatpush1.bf16.msra.mxu0 %v1627
    %2417 = vmatprep.subr.bf16.mxu0 %v1623
    %2418 = vmatpush1.bf16.msra.mxu0 %v1622
    %2419 = vmatprep.subr.bf16.mxu0 %v1618
    %2420 = vmatpush1.bf16.msra.mxu0 %v1617
    %2421 = vmatprep.subr.bf16.mxu0 %v1613
    %2422 = vmatpush1.bf16.msra.mxu0 %v1612
    %2423 = vmatprep.subr.bf16.mxu0 %v1608
    %2424 = vmatpush1.bf16.msra.mxu0 %v1607
    %2425 = vmatprep.subr.bf16.mxu0 %v1683
    %2426 = vmatpush2.bf16.msra.mxu0 %v1682
    %2427 = vmatprep.subr.bf16.mxu0 %v1678
    %2428 = vmatpush2.bf16.msra.mxu0 %v1677
    %2429 = vmatprep.subr.bf16.mxu0 %v1673
    %2430 = vmatpush2.bf16.msra.mxu0 %v1672
    %2431 = vmatprep.subr.bf16.mxu0 %v1668
    %2432 = vmatpush2.bf16.msra.mxu0 %v1667
    %2433 = vmatprep.subr.bf16.mxu0 %v1663
    %2434 = vmatpush2.bf16.msra.mxu0 %v1662
    %2435 = vmatprep.subr.bf16.mxu0 %v1658
    %2436 = vmatpush2.bf16.msra.mxu0 %v1657
    %2437 = vmatprep.subr.bf16.mxu0 %v1653
    %2438 = vmatpush2.bf16.msra.mxu0 %v1652
    %2439 = vmatprep.subr.bf16.mxu0 %v1648
    %2440 = vmatpush2.bf16.msra.mxu0 %v1647
    %2441 = vmatprep.mubr.bf16.mxu0 %v190
    %2442 = vmatmul.mubr.bf16.gmra.mxu0 %v189
    %v2443 = vpop.f32.mrf.mxu0
    %v2444 = vadd.f32 0.0, %v2443
    %v2445 = vpop.f32.mrf.mxu0
    %v2446 = vadd.f32 0.0, %v2445
    %v2447 = vpop.f32.mrf.mxu0
    %v2448 = vpop.f32.mrf.mxu0
    %2449 = vdwg.mxu0
    %2450 = vmatprep.subr.bf16.mxu0 %v1723
    %2451 = vmatpush1.bf16.msra.mxu0 %v1722
    %2452 = vmatprep.subr.bf16.mxu0 %v1718
    %2453 = vmatpush1.bf16.msra.mxu0 %v1717
    %2454 = vmatprep.subr.bf16.mxu0 %v1713
    %2455 = vmatpush1.bf16.msra.mxu0 %v1712
    %2456 = vmatprep.subr.bf16.mxu0 %v1708
    %2457 = vmatpush1.bf16.msra.mxu0 %v1707
    %2458 = vmatprep.subr.bf16.mxu0 %v1703
    %2459 = vmatpush1.bf16.msra.mxu0 %v1702
    %2460 = vmatprep.subr.bf16.mxu0 %v1698
    %2461 = vmatpush1.bf16.msra.mxu0 %v1697
    %2462 = vmatprep.subr.bf16.mxu0 %v1693
    %2463 = vmatpush1.bf16.msra.mxu0 %v1692
    %2464 = vmatprep.subr.bf16.mxu0 %v1688
    %2465 = vmatpush1.bf16.msra.mxu0 %v1687
    %2466 = vmatprep.subr.bf16.mxu0 %v1763
    %2467 = vmatpush2.bf16.msra.mxu0 %v1762
    %2468 = vmatprep.subr.bf16.mxu0 %v1758
    %2469 = vmatpush2.bf16.msra.mxu0 %v1757
    %2470 = vmatprep.subr.bf16.mxu0 %v1753
    %2471 = vmatpush2.bf16.msra.mxu0 %v1752
    %2472 = vmatprep.subr.bf16.mxu0 %v1748
    %2473 = vmatpush2.bf16.msra.mxu0 %v1747
    %2474 = vmatprep.subr.bf16.mxu0 %v1743
    %2475 = vmatpush2.bf16.msra.mxu0 %v1742
    %2476 = vmatprep.subr.bf16.mxu0 %v1738
    %2477 = vmatpush2.bf16.msra.mxu0 %v1737
    %2478 = vmatprep.subr.bf16.mxu0 %v1733
    %2479 = vmatpush2.bf16.msra.mxu0 %v1732
    %2480 = vmatprep.subr.bf16.mxu0 %v1728
    %2481 = vmatpush2.bf16.msra.mxu0 %v1727
    %2482 = vmatprep.mubr.bf16.mxu0 %v192
    %2483 = vmatmul.mubr.bf16.gmra.mxu0 %v191
    %v2484 = vpop.f32.mrf.mxu0
    %v2485 = vadd.f32 %v2444, %v2484
    %v2486 = vpop.f32.mrf.mxu0
    %v2487 = vadd.f32 %v2446, %v2486
    %v2488 = vpop.f32.mrf.mxu0
    %v2489 = vpop.f32.mrf.mxu0
    %2490 = vdwg.mxu0
    %2491 = vmatprep.subr.bf16.mxu0 %v1803
    %2492 = vmatpush1.bf16.msra.mxu0 %v1802
    %2493 = vmatprep.subr.bf16.mxu0 %v1798
    %2494 = vmatpush1.bf16.msra.mxu0 %v1797
    %2495 = vmatprep.subr.bf16.mxu0 %v1793
    %2496 = vmatpush1.bf16.msra.mxu0 %v1792
    %2497 = vmatprep.subr.bf16.mxu0 %v1788
    %2498 = vmatpush1.bf16.msra.mxu0 %v1787
    %2499 = vmatprep.subr.bf16.mxu0 %v1783
    %2500 = vmatpush1.bf16.msra.mxu0 %v1782
    %2501 = vmatprep.subr.bf16.mxu0 %v1778
    %2502 = vmatpush1.bf16.msra.mxu0 %v1777
    %2503 = vmatprep.subr.bf16.mxu0 %v1773
    %2504 = vmatpush1.bf16.msra.mxu0 %v1772
    %2505 = vmatprep.subr.bf16.mxu0 %v1768
    %2506 = vmatpush1.bf16.msra.mxu0 %v1767
    %2507 = vmatprep.subr.bf16.mxu0 %v1843
    %2508 = vmatpush2.bf16.msra.mxu0 %v1842
    %2509 = vmatprep.subr.bf16.mxu0 %v1838
    %2510 = vmatpush2.bf16.msra.mxu0 %v1837
    %2511 = vmatprep.subr.bf16.mxu0 %v1833
    %2512 = vmatpush2.bf16.msra.mxu0 %v1832
    %2513 = vmatprep.subr.bf16.mxu0 %v1828
    %2514 = vmatpush2.bf16.msra.mxu0 %v1827
    %2515 = vmatprep.subr.bf16.mxu0 %v1823
    %2516 = vmatpush2.bf16.msra.mxu0 %v1822
    %2517 = vmatprep.subr.bf16.mxu0 %v1818
    %2518 = vmatpush2.bf16.msra.mxu0 %v1817
    %2519 = vmatprep.subr.bf16.mxu0 %v1813
    %2520 = vmatpush2.bf16.msra.mxu0 %v1812
    %2521 = vmatprep.subr.bf16.mxu0 %v1808
    %2522 = vmatpush2.bf16.msra.mxu0 %v1807
    %2523 = vmatprep.mubr.bf16.mxu0 %v194
    %2524 = vmatmul.mubr.bf16.gmra.mxu0 %v193
    %v2525 = vpop.f32.mrf.mxu0
    %v2526 = vadd.f32 %v2485, %v2525
    %v2527 = vpop.f32.mrf.mxu0
    %v2528 = vadd.f32 %v2487, %v2527
    %v2529 = vpop.f32.mrf.mxu0
    %v2530 = vpop.f32.mrf.mxu0
    %2531 = vdwg.mxu0
    %2532 = vmatprep.subr.bf16.mxu0 %v1883
    %2533 = vmatpush1.bf16.msra.mxu0 %v1882
    %2534 = vmatprep.subr.bf16.mxu0 %v1878
    %2535 = vmatpush1.bf16.msra.mxu0 %v1877
    %2536 = vmatprep.subr.bf16.mxu0 %v1873
    %2537 = vmatpush1.bf16.msra.mxu0 %v1872
    %2538 = vmatprep.subr.bf16.mxu0 %v1868
    %2539 = vmatpush1.bf16.msra.mxu0 %v1867
    %2540 = vmatprep.subr.bf16.mxu0 %v1863
    %2541 = vmatpush1.bf16.msra.mxu0 %v1862
    %2542 = vmatprep.subr.bf16.mxu0 %v1858
    %2543 = vmatpush1.bf16.msra.mxu0 %v1857
    %2544 = vmatprep.subr.bf16.mxu0 %v1853
    %2545 = vmatpush1.bf16.msra.mxu0 %v1852
    %2546 = vmatprep.subr.bf16.mxu0 %v1848
    %2547 = vmatpush1.bf16.msra.mxu0 %v1847
    %2548 = vmatprep.subr.bf16.mxu0 %v1923
    %2549 = vmatpush2.bf16.msra.mxu0 %v1922
    %2550 = vmatprep.subr.bf16.mxu0 %v1918
    %2551 = vmatpush2.bf16.msra.mxu0 %v1917
    %2552 = vmatprep.subr.bf16.mxu0 %v1913
    %2553 = vmatpush2.bf16.msra.mxu0 %v1912
    %2554 = vmatprep.subr.bf16.mxu0 %v1908
    %2555 = vmatpush2.bf16.msra.mxu0 %v1907
    %2556 = vmatprep.subr.bf16.mxu0 %v1903
    %2557 = vmatpush2.bf16.msra.mxu0 %v1902
    %2558 = vmatprep.subr.bf16.mxu0 %v1898
    %2559 = vmatpush2.bf16.msra.mxu0 %v1897
    %2560 = vmatprep.subr.bf16.mxu0 %v1893
    %2561 = vmatpush2.bf16.msra.mxu0 %v1892
    %2562 = vmatprep.subr.bf16.mxu0 %v1888
    %2563 = vmatpush2.bf16.msra.mxu0 %v1887
    %2564 = vmatprep.mubr.bf16.mxu0 %v196
    %2565 = vmatmul.mubr.bf16.gmra.mxu0 %v195
    %v2566 = vpop.f32.mrf.mxu0
    %v2567 = vadd.f32 %v2526, %v2566
    %v2568 = vpop.f32.mrf.mxu0
    %v2569 = vadd.f32 %v2528, %v2568
    %v2570 = vpop.f32.mrf.mxu0
    %v2571 = vpop.f32.mrf.mxu0
    %2572 = vdwg.mxu0
    %2573 = vmatprep.subr.bf16.mxu0 0
    %2574 = vmatpush1.bf16.msra.mxu0 %v1644
    %2575 = vmatprep.subr.bf16.mxu0 0
    %2576 = vmatpush1.bf16.msra.mxu0 %v1639
    %2577 = vmatprep.subr.bf16.mxu0 0
    %2578 = vmatpush1.bf16.msra.mxu0 %v1634
    %2579 = vmatprep.subr.bf16.mxu0 0
    %2580 = vmatpush1.bf16.msra.mxu0 %v1629
    %2581 = vmatprep.subr.bf16.mxu0 0
    %2582 = vmatpush1.bf16.msra.mxu0 %v1624
    %2583 = vmatprep.subr.bf16.mxu0 0
    %2584 = vmatpush1.bf16.msra.mxu0 %v1619
    %2585 = vmatprep.subr.bf16.mxu0 0
    %2586 = vmatpush1.bf16.msra.mxu0 %v1614
    %2587 = vmatprep.subr.bf16.mxu0 0
    %2588 = vmatpush1.bf16.msra.mxu0 %v1609
    %2589 = vmatprep.subr.bf16.mxu0 0
    %2590 = vmatpush2.bf16.msra.mxu0 %v1684
    %2591 = vmatprep.subr.bf16.mxu0 0
    %2592 = vmatpush2.bf16.msra.mxu0 %v1679
    %2593 = vmatprep.subr.bf16.mxu0 0
    %2594 = vmatpush2.bf16.msra.mxu0 %v1674
    %2595 = vmatprep.subr.bf16.mxu0 0
    %2596 = vmatpush2.bf16.msra.mxu0 %v1669
    %2597 = vmatprep.subr.bf16.mxu0 0
    %2598 = vmatpush2.bf16.msra.mxu0 %v1664
    %2599 = vmatprep.subr.bf16.mxu0 0
    %2600 = vmatpush2.bf16.msra.mxu0 %v1659
    %2601 = vmatprep.subr.bf16.mxu0 0
    %2602 = vmatpush2.bf16.msra.mxu0 %v1654
    %2603 = vmatprep.subr.bf16.mxu0 0
    %2604 = vmatpush2.bf16.msra.mxu0 %v1649
    %2605 = vmatprep.mubr.bf16.mxu0 %v190
    %2606 = vmatmul.mubr.bf16.gmra.mxu0 %v189
    %v2607 = vpop.f32.mrf.mxu0
    %v2608 = vadd.f32 0.0, %v2607
    %v2609 = vpop.f32.mrf.mxu0
    %v2610 = vpop.f32.mrf.mxu0
    %v2611 = vpop.f32.mrf.mxu0
    %2612 = vdwg.mxu0
    %2613 = vmatprep.subr.bf16.mxu0 0
    %2614 = vmatpush1.bf16.msra.mxu0 %v1724
    %2615 = vmatprep.subr.bf16.mxu0 0
    %2616 = vmatpush1.bf16.msra.mxu0 %v1719
    %2617 = vmatprep.subr.bf16.mxu0 0
    %2618 = vmatpush1.bf16.msra.mxu0 %v1714
    %2619 = vmatprep.subr.bf16.mxu0 0
    %2620 = vmatpush1.bf16.msra.mxu0 %v1709
    %2621 = vmatprep.subr.bf16.mxu0 0
    %2622 = vmatpush1.bf16.msra.mxu0 %v1704
    %2623 = vmatprep.subr.bf16.mxu0 0
    %2624 = vmatpush1.bf16.msra.mxu0 %v1699
    %2625 = vmatprep.subr.bf16.mxu0 0
    %2626 = vmatpush1.bf16.msra.mxu0 %v1694
    %2627 = vmatprep.subr.bf16.mxu0 0
    %2628 = vmatpush1.bf16.msra.mxu0 %v1689
    %2629 = vmatprep.subr.bf16.mxu0 0
    %2630 = vmatpush2.bf16.msra.mxu0 %v1764
    %2631 = vmatprep.subr.bf16.mxu0 0
    %2632 = vmatpush2.bf16.msra.mxu0 %v1759
    %2633 = vmatprep.subr.bf16.mxu0 0
    %2634 = vmatpush2.bf16.msra.mxu0 %v1754
    %2635 = vmatprep.subr.bf16.mxu0 0
    %2636 = vmatpush2.bf16.msra.mxu0 %v1749
    %2637 = vmatprep.subr.bf16.mxu0 0
    %2638 = vmatpush2.bf16.msra.mxu0 %v1744
    %2639 = vmatprep.subr.bf16.mxu0 0
    %2640 = vmatpush2.bf16.msra.mxu0 %v1739
    %2641 = vmatprep.subr.bf16.mxu0 0
    %2642 = vmatpush2.bf16.msra.mxu0 %v1734
    %2643 = vmatprep.subr.bf16.mxu0 0
    %2644 = vmatpush2.bf16.msra.mxu0 %v1729
    %2645 = vmatprep.mubr.bf16.mxu0 %v192
    %2646 = vmatmul.mubr.bf16.gmra.mxu0 %v191
    %v2647 = vpop.f32.mrf.mxu0
    %v2648 = vadd.f32 %v2608, %v2647
    %v2649 = vpop.f32.mrf.mxu0
    %v2650 = vpop.f32.mrf.mxu0
    %v2651 = vpop.f32.mrf.mxu0
    %2652 = vdwg.mxu0
    %2653 = vmatprep.subr.bf16.mxu0 0
    %2654 = vmatpush1.bf16.msra.mxu0 %v1804
    %2655 = vmatprep.subr.bf16.mxu0 0
    %2656 = vmatpush1.bf16.msra.mxu0 %v1799
    %2657 = vmatprep.subr.bf16.mxu0 0
    %2658 = vmatpush1.bf16.msra.mxu0 %v1794
    %2659 = vmatprep.subr.bf16.mxu0 0
    %2660 = vmatpush1.bf16.msra.mxu0 %v1789
    %2661 = vmatprep.subr.bf16.mxu0 0
    %2662 = vmatpush1.bf16.msra.mxu0 %v1784
    %2663 = vmatprep.subr.bf16.mxu0 0
    %2664 = vmatpush1.bf16.msra.mxu0 %v1779
    %2665 = vmatprep.subr.bf16.mxu0 0
    %2666 = vmatpush1.bf16.msra.mxu0 %v1774
    %2667 = vmatprep.subr.bf16.mxu0 0
    %2668 = vmatpush1.bf16.msra.mxu0 %v1769
    %2669 = vmatprep.subr.bf16.mxu0 0
    %2670 = vmatpush2.bf16.msra.mxu0 %v1844
    %2671 = vmatprep.subr.bf16.mxu0 0
    %2672 = vmatpush2.bf16.msra.mxu0 %v1839
    %2673 = vmatprep.subr.bf16.mxu0 0
    %2674 = vmatpush2.bf16.msra.mxu0 %v1834
    %2675 = vmatprep.subr.bf16.mxu0 0
    %2676 = vmatpush2.bf16.msra.mxu0 %v1829
    %2677 = vmatprep.subr.bf16.mxu0 0
    %2678 = vmatpush2.bf16.msra.mxu0 %v1824
    %2679 = vmatprep.subr.bf16.mxu0 0
    %2680 = vmatpush2.bf16.msra.mxu0 %v1819
    %2681 = vmatprep.subr.bf16.mxu0 0
    %2682 = vmatpush2.bf16.msra.mxu0 %v1814
    %2683 = vmatprep.subr.bf16.mxu0 0
    %2684 = vmatpush2.bf16.msra.mxu0 %v1809
    %2685 = vmatprep.mubr.bf16.mxu0 %v194
    %2686 = vmatmul.mubr.bf16.gmra.mxu0 %v193
    %v2687 = vpop.f32.mrf.mxu0
    %v2688 = vadd.f32 %v2648, %v2687
    %v2689 = vpop.f32.mrf.mxu0
    %v2690 = vpop.f32.mrf.mxu0
    %v2691 = vpop.f32.mrf.mxu0
    %2692 = vdwg.mxu0
    %2693 = vmatprep.subr.bf16.mxu0 0
    %2694 = vmatpush1.bf16.msra.mxu0 %v1884
    %2695 = vmatprep.subr.bf16.mxu0 0
    %2696 = vmatpush1.bf16.msra.mxu0 %v1879
    %2697 = vmatprep.subr.bf16.mxu0 0
    %2698 = vmatpush1.bf16.msra.mxu0 %v1874
    %2699 = vmatprep.subr.bf16.mxu0 0
    %2700 = vmatpush1.bf16.msra.mxu0 %v1869
    %2701 = vmatprep.subr.bf16.mxu0 0
    %2702 = vmatpush1.bf16.msra.mxu0 %v1864
    %2703 = vmatprep.subr.bf16.mxu0 0
    %2704 = vmatpush1.bf16.msra.mxu0 %v1859
    %2705 = vmatprep.subr.bf16.mxu0 0
    %2706 = vmatpush1.bf16.msra.mxu0 %v1854
    %2707 = vmatprep.subr.bf16.mxu0 0
    %2708 = vmatpush1.bf16.msra.mxu0 %v1849
    %2709 = vmatprep.subr.bf16.mxu0 0
    %2710 = vmatpush2.bf16.msra.mxu0 %v1924
    %2711 = vmatprep.subr.bf16.mxu0 0
    %2712 = vmatpush2.bf16.msra.mxu0 %v1919
    %2713 = vmatprep.subr.bf16.mxu0 0
    %2714 = vmatpush2.bf16.msra.mxu0 %v1914
    %2715 = vmatprep.subr.bf16.mxu0 0
    %2716 = vmatpush2.bf16.msra.mxu0 %v1909
    %2717 = vmatprep.subr.bf16.mxu0 0
    %2718 = vmatpush2.bf16.msra.mxu0 %v1904
    %2719 = vmatprep.subr.bf16.mxu0 0
    %2720 = vmatpush2.bf16.msra.mxu0 %v1899
    %2721 = vmatprep.subr.bf16.mxu0 0
    %2722 = vmatpush2.bf16.msra.mxu0 %v1894
    %2723 = vmatprep.subr.bf16.mxu0 0
    %2724 = vmatpush2.bf16.msra.mxu0 %v1889
    %2725 = vmatprep.mubr.bf16.mxu0 %v196
    %2726 = vmatmul.mubr.bf16.gmra.mxu0 %v195
    %v2727 = vpop.f32.mrf.mxu0
    %v2728 = vadd.f32 %v2688, %v2727
    %v2729 = vpop.f32.mrf.mxu0
    %v2730 = vpop.f32.mrf.mxu0
    %v2731 = vpop.f32.mrf.mxu0
    %2732 = vdwg.mxu0
    %v2733 = vld [vmem:[#allocation4] sm:$0xf]
    %v2735 = vlaneseq
    %v2736 = vshrl.u32 %v2735, 7
    %v2737 = vsub.s32 0, %v2736
    %v2738 = vrot.slane %v2733, %v2737
    %v2739 = vlaneseq
    %v2740 = vshrl.u32 %v2739, 7
    %v2741 = vsub.s32 1, %v2740
    %v2742 = vrot.slane %v2733, %v2741
    %v2743 = vlaneseq
    %v2744 = vshrl.u32 %v2743, 7
    %v2745 = vsub.s32 2, %v2744
    %v2746 = vrot.slane %v2733, %v2745
    %v2747 = vlaneseq
    %v2748 = vshrl.u32 %v2747, 7
    %v2749 = vsub.s32 3, %v2748
    %v2750 = vrot.slane %v2733, %v2749
    %v2755 = vadd.f32 %v2403, %v2738
    %v2756 = vadd.f32 %v2405, %v2742
    %v2757 = vadd.f32 %v2567, %v2746
    %v2758 = vadd.f32 %v2569, %v2750
    %v2759 = vmax.f32 %v2755, 0.0
    %v2760 = vmax.f32 %v2756, 0.0
    %v2761 = vmax.f32 %v2757, 0.0
    %v2762 = vmax.f32 %v2758, 0.0
    %v2763 = vpack.c.bf16 %v2759, %v2759
    %v2764 = vpack.c.bf16 %v2760, %v2760
    %v2765 = vpack.c.bf16 %v2761, %v2761
    %v2766 = vpack.c.bf16 %v2762, %v2762
    %v2767 = vld [vmem:[#allocation6] sm:$0xff]
    %v2768 = vld [vmem:[#allocation6 + $0x8] sm:$0xff]
    %v2769 = vld [vmem:[#allocation6 + $0x10] sm:$0xff]
    %v2770 = vld [vmem:[#allocation6 + $0x18] sm:$0xff]
    %v2771 = vld [vmem:[#allocation6 + $0x20] sm:$0xff]
    %v2772 = vld [vmem:[#allocation6 + $0x28] sm:$0xff]
    %v2773 = vld [vmem:[#allocation6 + $0x30] sm:$0xff]
    %v2774 = vld [vmem:[#allocation6 + $0x38] sm:$0xff]
    %v2775 = vld [vmem:[#allocation6 + $0x40] sm:$0xff]
    %v2776 = vld [vmem:[#allocation6 + $0x48] sm:$0xff]
    %v2777 = vld [vmem:[#allocation6 + $0x50] sm:$0xff]
    %v2778 = vld [vmem:[#allocation6 + $0x58] sm:$0xff]
    %v2779 = vld [vmem:[#allocation6 + $0x60] sm:$0xff]
    %v2780 = vld [vmem:[#allocation6 + $0x68] sm:$0xff]
    %v2781 = vld [vmem:[#allocation6 + $0x70] sm:$0xff]
    %v2782 = vld [vmem:[#allocation6 + $0x78] sm:$0xff]
    %v2783 = vld [vmem:[#allocation6 + $0x80] sm:$0xff]
    %v2784 = vld [vmem:[#allocation6 + $0x88] sm:$0xff]
    %v2785 = vld [vmem:[#allocation6 + $0x90] sm:$0xff]
    %v2786 = vld [vmem:[#allocation6 + $0x98] sm:$0xff]
    %v2787 = vld [vmem:[#allocation6 + $0xa0] sm:$0xff]
    %v2788 = vld [vmem:[#allocation6 + $0xa8] sm:$0xff]
    %v2789 = vld [vmem:[#allocation6 + $0xb0] sm:$0xff]
    %v2790 = vld [vmem:[#allocation6 + $0xb8] sm:$0xff]
    %v2791 = vld [vmem:[#allocation6 + $0xc0] sm:$0xff]
    %v2792 = vld [vmem:[#allocation6 + $0xc8] sm:$0xff]
    %v2793 = vld [vmem:[#allocation6 + $0xd0] sm:$0xff]
    %v2794 = vld [vmem:[#allocation6 + $0xd8] sm:$0xff]
    %v2795 = vld [vmem:[#allocation6 + $0xe0] sm:$0xff]
    %v2796 = vld [vmem:[#allocation6 + $0xe8] sm:$0xff]
    %v2797 = vld [vmem:[#allocation6 + $0xf0] sm:$0xff]
    %v2798 = vld [vmem:[#allocation6 + $0xf8] sm:$0xff]
    %v2799 = vld [vmem:[#allocation6 + $0x100] sm:$0xff]
    %v2800 = vld [vmem:[#allocation6 + $0x108] sm:$0xff]
    %v2801 = vld [vmem:[#allocation6 + $0x110] sm:$0xff]
    %v2802 = vld [vmem:[#allocation6 + $0x118] sm:$0xff]
    %v2803 = vld [vmem:[#allocation6 + $0x120] sm:$0xff]
    %v2804 = vld [vmem:[#allocation6 + $0x128] sm:$0xff]
    %v2805 = vld [vmem:[#allocation6 + $0x130] sm:$0xff]
    %v2806 = vld [vmem:[#allocation6 + $0x138] sm:$0xff]
    %v2807 = vld [vmem:[#allocation6 + $0x140] sm:$0xff]
    %v2808 = vld [vmem:[#allocation6 + $0x148] sm:$0xff]
    %v2809 = vld [vmem:[#allocation6 + $0x150] sm:$0xff]
    %v2810 = vld [vmem:[#allocation6 + $0x158] sm:$0xff]
    %v2811 = vld [vmem:[#allocation6 + $0x160] sm:$0xff]
    %v2812 = vld [vmem:[#allocation6 + $0x168] sm:$0xff]
    %v2813 = vld [vmem:[#allocation6 + $0x170] sm:$0xff]
    %v2814 = vld [vmem:[#allocation6 + $0x178] sm:$0xff]
    %v2815 = vld [vmem:[#allocation6 + $0x180] sm:$0xff]
    %v2816 = vld [vmem:[#allocation6 + $0x188] sm:$0xff]
    %v2817 = vld [vmem:[#allocation6 + $0x190] sm:$0xff]
    %v2818 = vld [vmem:[#allocation6 + $0x198] sm:$0xff]
    %v2819 = vld [vmem:[#allocation6 + $0x1a0] sm:$0xff]
    %v2820 = vld [vmem:[#allocation6 + $0x1a8] sm:$0xff]
    %v2821 = vld [vmem:[#allocation6 + $0x1b0] sm:$0xff]
    %v2822 = vld [vmem:[#allocation6 + $0x1b8] sm:$0xff]
    %v2823 = vld [vmem:[#allocation6 + $0x1c0] sm:$0xff]
    %v2824 = vld [vmem:[#allocation6 + $0x1c8] sm:$0xff]
    %v2825 = vld [vmem:[#allocation6 + $0x1d0] sm:$0xff]
    %v2826 = vld [vmem:[#allocation6 + $0x1d8] sm:$0xff]
    %v2827 = vld [vmem:[#allocation6 + $0x1e0] sm:$0xff]
    %v2828 = vld [vmem:[#allocation6 + $0x1e8] sm:$0xff]
    %v2829 = vld [vmem:[#allocation6 + $0x1f0] sm:$0xff]
    %v2830 = vld [vmem:[#allocation6 + $0x1f8] sm:$0xff]
    %v2831 = vld [vmem:[#allocation7] sm:$0x3]
    %v2833 = vlaneseq
    %v2834 = vshrl.u32 %v2833, 7
    %v2835 = vsub.s32 0, %v2834
    %v2836 = vrot.slane %v2831, %v2835
    %v2837 = vlaneseq
    %v2838 = vshrl.u32 %v2837, 7
    %v2839 = vsub.s32 1, %v2838
    %v2840 = vrot.slane %v2831, %v2839
    %v2907 = vunpack.c.l.b16 %v2767
    %v2908 = vunpack.c.h.b16 %v2767
    %v2909 = vunpack.c.l.b16 %v2768
    %v2910 = vunpack.c.h.b16 %v2768
    %v2911 = vunpack.c.l.b16 %v2769
    %v2912 = vunpack.c.h.b16 %v2769
    %v2913 = vunpack.c.l.b16 %v2770
    %v2914 = vunpack.c.h.b16 %v2770
    %v2915 = vunpack.c.l.b16 %v2771
    %v2916 = vunpack.c.h.b16 %v2771
    %v2917 = vunpack.c.l.b16 %v2772
    %v2918 = vunpack.c.h.b16 %v2772
    %v2919 = vunpack.c.l.b16 %v2773
    %v2920 = vunpack.c.h.b16 %v2773
    %v2921 = vunpack.c.l.b16 %v2774
    %v2922 = vunpack.c.h.b16 %v2774
    %v2923 = vunpack.c.l.b16 %v2775
    %v2924 = vunpack.c.h.b16 %v2775
    %v2925 = vunpack.c.l.b16 %v2776
    %v2926 = vunpack.c.h.b16 %v2776
    %v2927 = vunpack.c.l.b16 %v2777
    %v2928 = vunpack.c.h.b16 %v2777
    %v2929 = vunpack.c.l.b16 %v2778
    %v2930 = vunpack.c.h.b16 %v2778
    %v2931 = vunpack.c.l.b16 %v2779
    %v2932 = vunpack.c.h.b16 %v2779
    %v2933 = vunpack.c.l.b16 %v2780
    %v2934 = vunpack.c.h.b16 %v2780
    %v2935 = vunpack.c.l.b16 %v2781
    %v2936 = vunpack.c.h.b16 %v2781
    %v2937 = vunpack.c.l.b16 %v2782
    %v2938 = vunpack.c.h.b16 %v2782
    %v2939 = vunpack.c.l.b16 %v2783
    %v2940 = vunpack.c.h.b16 %v2783
    %v2941 = vunpack.c.l.b16 %v2784
    %v2942 = vunpack.c.h.b16 %v2784
    %v2943 = vunpack.c.l.b16 %v2785
    %v2944 = vunpack.c.h.b16 %v2785
    %v2945 = vunpack.c.l.b16 %v2786
    %v2946 = vunpack.c.h.b16 %v2786
    %v2947 = vunpack.c.l.b16 %v2787
    %v2948 = vunpack.c.h.b16 %v2787
    %v2949 = vunpack.c.l.b16 %v2788
    %v2950 = vunpack.c.h.b16 %v2788
    %v2951 = vunpack.c.l.b16 %v2789
    %v2952 = vunpack.c.h.b16 %v2789
    %v2953 = vunpack.c.l.b16 %v2790
    %v2954 = vunpack.c.h.b16 %v2790
    %v2955 = vunpack.c.l.b16 %v2791
    %v2956 = vunpack.c.h.b16 %v2791
    %v2957 = vunpack.c.l.b16 %v2792
    %v2958 = vunpack.c.h.b16 %v2792
    %v2959 = vunpack.c.l.b16 %v2793
    %v2960 = vunpack.c.h.b16 %v2793
    %v2961 = vunpack.c.l.b16 %v2794
    %v2962 = vunpack.c.h.b16 %v2794
    %v2963 = vunpack.c.l.b16 %v2795
    %v2964 = vunpack.c.h.b16 %v2795
    %v2965 = vunpack.c.l.b16 %v2796
    %v2966 = vunpack.c.h.b16 %v2796
    %v2967 = vunpack.c.l.b16 %v2797
    %v2968 = vunpack.c.h.b16 %v2797
    %v2969 = vunpack.c.l.b16 %v2798
    %v2970 = vunpack.c.h.b16 %v2798
    %v2971 = vunpack.c.l.b16 %v2799
    %v2972 = vunpack.c.h.b16 %v2799
    %v2973 = vunpack.c.l.b16 %v2800
    %v2974 = vunpack.c.h.b16 %v2800
    %v2975 = vunpack.c.l.b16 %v2801
    %v2976 = vunpack.c.h.b16 %v2801
    %v2977 = vunpack.c.l.b16 %v2802
    %v2978 = vunpack.c.h.b16 %v2802
    %v2979 = vunpack.c.l.b16 %v2803
    %v2980 = vunpack.c.h.b16 %v2803
    %v2981 = vunpack.c.l.b16 %v2804
    %v2982 = vunpack.c.h.b16 %v2804
    %v2983 = vunpack.c.l.b16 %v2805
    %v2984 = vunpack.c.h.b16 %v2805
    %v2985 = vunpack.c.l.b16 %v2806
    %v2986 = vunpack.c.h.b16 %v2806
    %v2987 = vunpack.c.l.b16 %v2807
    %v2988 = vunpack.c.h.b16 %v2807
    %v2989 = vunpack.c.l.b16 %v2808
    %v2990 = vunpack.c.h.b16 %v2808
    %v2991 = vunpack.c.l.b16 %v2809
    %v2992 = vunpack.c.h.b16 %v2809
    %v2993 = vunpack.c.l.b16 %v2810
    %v2994 = vunpack.c.h.b16 %v2810
    %v2995 = vunpack.c.l.b16 %v2811
    %v2996 = vunpack.c.h.b16 %v2811
    %v2997 = vunpack.c.l.b16 %v2812
    %v2998 = vunpack.c.h.b16 %v2812
    %v2999 = vunpack.c.l.b16 %v2813
    %v3000 = vunpack.c.h.b16 %v2813
    %v3001 = vunpack.c.l.b16 %v2814
    %v3002 = vunpack.c.h.b16 %v2814
    %v3003 = vunpack.c.l.b16 %v2815
    %v3004 = vunpack.c.h.b16 %v2815
    %v3005 = vunpack.c.l.b16 %v2816
    %v3006 = vunpack.c.h.b16 %v2816
    %v3007 = vunpack.c.l.b16 %v2817
    %v3008 = vunpack.c.h.b16 %v2817
    %v3009 = vunpack.c.l.b16 %v2818
    %v3010 = vunpack.c.h.b16 %v2818
    %v3011 = vunpack.c.l.b16 %v2819
    %v3012 = vunpack.c.h.b16 %v2819
    %v3013 = vunpack.c.l.b16 %v2820
    %v3014 = vunpack.c.h.b16 %v2820
    %v3015 = vunpack.c.l.b16 %v2821
    %v3016 = vunpack.c.h.b16 %v2821
    %v3017 = vunpack.c.l.b16 %v2822
    %v3018 = vunpack.c.h.b16 %v2822
    %v3019 = vunpack.c.l.b16 %v2823
    %v3020 = vunpack.c.h.b16 %v2823
    %v3021 = vunpack.c.l.b16 %v2824
    %v3022 = vunpack.c.h.b16 %v2824
    %v3023 = vunpack.c.l.b16 %v2825
    %v3024 = vunpack.c.h.b16 %v2825
    %v3025 = vunpack.c.l.b16 %v2826
    %v3026 = vunpack.c.h.b16 %v2826
    %v3027 = vunpack.c.l.b16 %v2827
    %v3028 = vunpack.c.h.b16 %v2827
    %v3029 = vunpack.c.l.b16 %v2828
    %v3030 = vunpack.c.h.b16 %v2828
    %v3031 = vunpack.c.l.b16 %v2829
    %v3032 = vunpack.c.h.b16 %v2829
    %v3033 = vunpack.c.l.b16 %v2830
    %v3034 = vunpack.c.h.b16 %v2830
    %v3035 = vpack.c.b16 %v2909, %v2907
    %v3036 = vpack.c.b16 %v2910, %v2908
    %v3037 = vpack.c.b16 %v2913, %v2911
    %v3038 = vpack.c.b16 %v2914, %v2912
    %v3039 = vpack.c.b16 %v2917, %v2915
    %v3040 = vpack.c.b16 %v2918, %v2916
    %v3041 = vpack.c.b16 %v2921, %v2919
    %v3042 = vpack.c.b16 %v2922, %v2920
    %v3043 = vpack.c.b16 %v2925, %v2923
    %v3044 = vpack.c.b16 %v2926, %v2924
    %v3045 = vpack.c.b16 %v2929, %v2927
    %v3046 = vpack.c.b16 %v2930, %v2928
    %v3047 = vpack.c.b16 %v2933, %v2931
    %v3048 = vpack.c.b16 %v2934, %v2932
    %v3049 = vpack.c.b16 %v2937, %v2935
    %v3050 = vpack.c.b16 %v2938, %v2936
    %v3051 = vpack.c.b16 %v2941, %v2939
    %v3052 = vpack.c.b16 %v2942, %v2940
    %v3053 = vpack.c.b16 %v2945, %v2943
    %v3054 = vpack.c.b16 %v2946, %v2944
    %v3055 = vpack.c.b16 %v2949, %v2947
    %v3056 = vpack.c.b16 %v2950, %v2948
    %v3057 = vpack.c.b16 %v2953, %v2951
    %v3058 = vpack.c.b16 %v2954, %v2952
    %v3059 = vpack.c.b16 %v2957, %v2955
    %v3060 = vpack.c.b16 %v2958, %v2956
    %v3061 = vpack.c.b16 %v2961, %v2959
    %v3062 = vpack.c.b16 %v2962, %v2960
    %v3063 = vpack.c.b16 %v2965, %v2963
    %v3064 = vpack.c.b16 %v2966, %v2964
    %v3065 = vpack.c.b16 %v2969, %v2967
    %v3066 = vpack.c.b16 %v2970, %v2968
    %v3067 = vpack.c.b16 %v2973, %v2971
    %v3068 = vpack.c.b16 %v2974, %v2972
    %v3069 = vpack.c.b16 %v2977, %v2975
    %v3070 = vpack.c.b16 %v2978, %v2976
    %v3071 = vpack.c.b16 %v2981, %v2979
    %v3072 = vpack.c.b16 %v2982, %v2980
    %v3073 = vpack.c.b16 %v2985, %v2983
    %v3074 = vpack.c.b16 %v2986, %v2984
    %v3075 = vpack.c.b16 %v2989, %v2987
    %v3076 = vpack.c.b16 %v2990, %v2988
    %v3077 = vpack.c.b16 %v2993, %v2991
    %v3078 = vpack.c.b16 %v2994, %v2992
    %v3079 = vpack.c.b16 %v2997, %v2995
    %v3080 = vpack.c.b16 %v2998, %v2996
    %v3081 = vpack.c.b16 %v3001, %v2999
    %v3082 = vpack.c.b16 %v3002, %v3000
    %v3083 = vpack.c.b16 %v3005, %v3003
    %v3084 = vpack.c.b16 %v3006, %v3004
    %v3085 = vpack.c.b16 %v3009, %v3007
    %v3086 = vpack.c.b16 %v3010, %v3008
    %v3087 = vpack.c.b16 %v3013, %v3011
    %v3088 = vpack.c.b16 %v3014, %v3012
    %v3089 = vpack.c.b16 %v3017, %v3015
    %v3090 = vpack.c.b16 %v3018, %v3016
    %v3091 = vpack.c.b16 %v3021, %v3019
    %v3092 = vpack.c.b16 %v3022, %v3020
    %v3093 = vpack.c.b16 %v3025, %v3023
    %v3094 = vpack.c.b16 %v3026, %v3024
    %v3095 = vpack.c.b16 %v3029, %v3027
    %v3096 = vpack.c.b16 %v3030, %v3028
    %v3097 = vpack.c.b16 %v3033, %v3031
    %v3098 = vpack.c.b16 %v3034, %v3032
    %3163 = vmatprep.subr.bf16.mxu0 %v3050
    %3164 = vmatpush1.bf16.msra.mxu0 %v3049
    %3165 = vmatprep.subr.bf16.mxu0 %v3048
    %3166 = vmatpush1.bf16.msra.mxu0 %v3047
    %3167 = vmatprep.subr.bf16.mxu0 %v3046
    %3168 = vmatpush1.bf16.msra.mxu0 %v3045
    %3169 = vmatprep.subr.bf16.mxu0 %v3044
    %3170 = vmatpush1.bf16.msra.mxu0 %v3043
    %3171 = vmatprep.subr.bf16.mxu0 %v3042
    %3172 = vmatpush1.bf16.msra.mxu0 %v3041
    %3173 = vmatprep.subr.bf16.mxu0 %v3040
    %3174 = vmatpush1.bf16.msra.mxu0 %v3039
    %3175 = vmatprep.subr.bf16.mxu0 %v3038
    %3176 = vmatpush1.bf16.msra.mxu0 %v3037
    %3177 = vmatprep.subr.bf16.mxu0 %v3036
    %3178 = vmatpush1.bf16.msra.mxu0 %v3035
    %3179 = vmatprep.subr.bf16.mxu0 %v3066
    %3180 = vmatpush2.bf16.msra.mxu0 %v3065
    %3181 = vmatprep.subr.bf16.mxu0 %v3064
    %3182 = vmatpush2.bf16.msra.mxu0 %v3063
    %3183 = vmatprep.subr.bf16.mxu0 %v3062
    %3184 = vmatpush2.bf16.msra.mxu0 %v3061
    %3185 = vmatprep.subr.bf16.mxu0 %v3060
    %3186 = vmatpush2.bf16.msra.mxu0 %v3059
    %3187 = vmatprep.subr.bf16.mxu0 %v3058
    %3188 = vmatpush2.bf16.msra.mxu0 %v3057
    %3189 = vmatprep.subr.bf16.mxu0 %v3056
    %3190 = vmatpush2.bf16.msra.mxu0 %v3055
    %3191 = vmatprep.subr.bf16.mxu0 %v3054
    %3192 = vmatpush2.bf16.msra.mxu0 %v3053
    %3193 = vmatprep.subr.bf16.mxu0 %v3052
    %3194 = vmatpush2.bf16.msra.mxu0 %v3051
    %3195 = vmatprep.mubr.bf16.mxu0 %v2764
    %3196 = vmatmul.mubr.bf16.gmra.mxu0 %v2763
    %v3197 = vpop.f32.mrf.mxu0
    %v3198 = vadd.f32 %v2836, %v3197
    %v3199 = vpop.f32.mrf.mxu0
    %v3200 = vadd.f32 %v2840, %v3199
    %v3201 = vpop.f32.mrf.mxu0
    %v3202 = vpop.f32.mrf.mxu0
    %3203 = vdwg.mxu0
    %3204 = vmatprep.subr.bf16.mxu0 %v3082
    %3205 = vmatpush1.bf16.msra.mxu0 %v3081
    %3206 = vmatprep.subr.bf16.mxu0 %v3080
    %3207 = vmatpush1.bf16.msra.mxu0 %v3079
    %3208 = vmatprep.subr.bf16.mxu0 %v3078
    %3209 = vmatpush1.bf16.msra.mxu0 %v3077
    %3210 = vmatprep.subr.bf16.mxu0 %v3076
    %3211 = vmatpush1.bf16.msra.mxu0 %v3075
    %3212 = vmatprep.subr.bf16.mxu0 %v3074
    %3213 = vmatpush1.bf16.msra.mxu0 %v3073
    %3214 = vmatprep.subr.bf16.mxu0 %v3072
    %3215 = vmatpush1.bf16.msra.mxu0 %v3071
    %3216 = vmatprep.subr.bf16.mxu0 %v3070
    %3217 = vmatpush1.bf16.msra.mxu0 %v3069
    %3218 = vmatprep.subr.bf16.mxu0 %v3068
    %3219 = vmatpush1.bf16.msra.mxu0 %v3067
    %3220 = vmatprep.subr.bf16.mxu0 %v3098
    %3221 = vmatpush2.bf16.msra.mxu0 %v3097
    %3222 = vmatprep.subr.bf16.mxu0 %v3096
    %3223 = vmatpush2.bf16.msra.mxu0 %v3095
    %3224 = vmatprep.subr.bf16.mxu0 %v3094
    %3225 = vmatpush2.bf16.msra.mxu0 %v3093
    %3226 = vmatprep.subr.bf16.mxu0 %v3092
    %3227 = vmatpush2.bf16.msra.mxu0 %v3091
    %3228 = vmatprep.subr.bf16.mxu0 %v3090
    %3229 = vmatpush2.bf16.msra.mxu0 %v3089
    %3230 = vmatprep.subr.bf16.mxu0 %v3088
    %3231 = vmatpush2.bf16.msra.mxu0 %v3087
    %3232 = vmatprep.subr.bf16.mxu0 %v3086
    %3233 = vmatpush2.bf16.msra.mxu0 %v3085
    %3234 = vmatprep.subr.bf16.mxu0 %v3084
    %3235 = vmatpush2.bf16.msra.mxu0 %v3083
    %3236 = vmatprep.mubr.bf16.mxu0 %v2766
    %3237 = vmatmul.mubr.bf16.gmra.mxu0 %v2765
    %v3238 = vpop.f32.mrf.mxu0
    %v3239 = vadd.f32 %v3198, %v3238
    %v3240 = vpop.f32.mrf.mxu0
    %v3241 = vadd.f32 %v3200, %v3240
    %v3242 = vpop.f32.mrf.mxu0
    %v3243 = vpop.f32.mrf.mxu0
    %3244 = vdwg.mxu0
    %v3245 = vmax.f32 %v3239, 0.0
    %v3246 = vmax.f32 %v3241, 0.0
    %v3247 = vpack.c.bf16 %v3245, %v3245
    %v3248 = vpack.c.bf16 %v3246, %v3246
    %v3249 = vld [vmem:[#allocation9] sm:$0xf]
    %v3250 = vld [vmem:[#allocation9 + $0x4] sm:$0xf]
    %v3251 = vld [vmem:[#allocation9 + $0x8] sm:$0xf]
    %v3252 = vld [vmem:[#allocation9 + $0xc] sm:$0xf]
    %v3253 = vld [vmem:[#allocation9 + $0x10] sm:$0xf]
    %v3254 = vld [vmem:[#allocation9 + $0x14] sm:$0xf]
    %v3255 = vld [vmem:[#allocation9 + $0x18] sm:$0xf]
    %v3256 = vld [vmem:[#allocation9 + $0x1c] sm:$0xf]
    %v3257 = vld [vmem:[#allocation9 + $0x20] sm:$0xf]
    %v3258 = vld [vmem:[#allocation9 + $0x24] sm:$0xf]
    %v3259 = vld [vmem:[#allocation9 + $0x28] sm:$0xf]
    %v3260 = vld [vmem:[#allocation9 + $0x2c] sm:$0xf]
    %v3261 = vld [vmem:[#allocation9 + $0x30] sm:$0xf]
    %v3262 = vld [vmem:[#allocation9 + $0x34] sm:$0xf]
    %v3263 = vld [vmem:[#allocation9 + $0x38] sm:$0xf]
    %v3264 = vld [vmem:[#allocation9 + $0x3c] sm:$0xf]
    %v3265 = vld [vmem:[#allocation9 + $0x40] sm:$0xf]
    %v3266 = vld [vmem:[#allocation9 + $0x44] sm:$0xf]
    %v3267 = vld [vmem:[#allocation9 + $0x48] sm:$0xf]
    %v3268 = vld [vmem:[#allocation9 + $0x4c] sm:$0xf]
    %v3269 = vld [vmem:[#allocation9 + $0x50] sm:$0xf]
    %v3270 = vld [vmem:[#allocation9 + $0x54] sm:$0xf]
    %v3271 = vld [vmem:[#allocation9 + $0x58] sm:$0xf]
    %v3272 = vld [vmem:[#allocation9 + $0x5c] sm:$0xf]
    %v3273 = vld [vmem:[#allocation9 + $0x60] sm:$0xf]
    %v3274 = vld [vmem:[#allocation9 + $0x64] sm:$0xf]
    %v3275 = vld [vmem:[#allocation9 + $0x68] sm:$0xf]
    %v3276 = vld [vmem:[#allocation9 + $0x6c] sm:$0xf]
    %v3277 = vld [vmem:[#allocation9 + $0x70] sm:$0xf]
    %v3278 = vld [vmem:[#allocation9 + $0x74] sm:$0xf]
    %v3279 = vld [vmem:[#allocation9 + $0x78] sm:$0xf]
    %v3280 = vld [vmem:[#allocation9 + $0x7c] sm:$0xf]
    %v3281 = vld [vmem:[#allocation10] sm:$0x1]
    %v3283 = vlaneseq
    %v3284 = vshrl.u32 %v3283, 7
    %v3285 = vsub.s32 0, %v3284
    %v3286 = vrot.slane %v3281, %v3285
    %v3320 = vunpack.c.l.b16 %v3249
    %v3321 = vunpack.c.l.b16 %v3250
    %v3322 = vunpack.c.l.b16 %v3251
    %v3323 = vunpack.c.l.b16 %v3252
    %v3324 = vunpack.c.l.b16 %v3253
    %v3325 = vunpack.c.l.b16 %v3254
    %v3326 = vunpack.c.l.b16 %v3255
    %v3327 = vunpack.c.l.b16 %v3256
    %v3328 = vunpack.c.l.b16 %v3257
    %v3329 = vunpack.c.l.b16 %v3258
    %v3330 = vunpack.c.l.b16 %v3259
    %v3331 = vunpack.c.l.b16 %v3260
    %v3332 = vunpack.c.l.b16 %v3261
    %v3333 = vunpack.c.l.b16 %v3262
    %v3334 = vunpack.c.l.b16 %v3263
    %v3335 = vunpack.c.l.b16 %v3264
    %v3336 = vunpack.c.l.b16 %v3265
    %v3337 = vunpack.c.l.b16 %v3266
    %v3338 = vunpack.c.l.b16 %v3267
    %v3339 = vunpack.c.l.b16 %v3268
    %v3340 = vunpack.c.l.b16 %v3269
    %v3341 = vunpack.c.l.b16 %v3270
    %v3342 = vunpack.c.l.b16 %v3271
    %v3343 = vunpack.c.l.b16 %v3272
    %v3344 = vunpack.c.l.b16 %v3273
    %v3345 = vunpack.c.l.b16 %v3274
    %v3346 = vunpack.c.l.b16 %v3275
    %v3347 = vunpack.c.l.b16 %v3276
    %v3348 = vunpack.c.l.b16 %v3277
    %v3349 = vunpack.c.l.b16 %v3278
    %v3350 = vunpack.c.l.b16 %v3279
    %v3351 = vunpack.c.l.b16 %v3280
    %v3352 = vpack.c.b16 %v3321, %v3320
    %v3353 = vpack.c.b16 %v3323, %v3322
    %v3354 = vpack.c.b16 %v3325, %v3324
    %v3355 = vpack.c.b16 %v3327, %v3326
    %v3356 = vpack.c.b16 %v3329, %v3328
    %v3357 = vpack.c.b16 %v3331, %v3330
    %v3358 = vpack.c.b16 %v3333, %v3332
    %v3359 = vpack.c.b16 %v3335, %v3334
    %v3360 = vpack.c.b16 %v3337, %v3336
    %v3361 = vpack.c.b16 %v3339, %v3338
    %v3362 = vpack.c.b16 %v3341, %v3340
    %v3363 = vpack.c.b16 %v3343, %v3342
    %v3364 = vpack.c.b16 %v3345, %v3344
    %v3365 = vpack.c.b16 %v3347, %v3346
    %v3366 = vpack.c.b16 %v3349, %v3348
    %v3367 = vpack.c.b16 %v3351, %v3350
    %3384 = vmatprep.subr.bf16.mxu0 0
    %3385 = vmatpush1.bf16.msra.mxu0 %v3359
    %3386 = vmatprep.subr.bf16.mxu0 0
    %3387 = vmatpush1.bf16.msra.mxu0 %v3358
    %3388 = vmatprep.subr.bf16.mxu0 0
    %3389 = vmatpush1.bf16.msra.mxu0 %v3357
    %3390 = vmatprep.subr.bf16.mxu0 0
    %3391 = vmatpush1.bf16.msra.mxu0 %v3356
    %3392 = vmatprep.subr.bf16.mxu0 0
    %3393 = vmatpush1.bf16.msra.mxu0 %v3355
    %3394 = vmatprep.subr.bf16.mxu0 0
    %3395 = vmatpush1.bf16.msra.mxu0 %v3354
    %3396 = vmatprep.subr.bf16.mxu0 0
    %3397 = vmatpush1.bf16.msra.mxu0 %v3353
    %3398 = vmatprep.subr.bf16.mxu0 0
    %3399 = vmatpush1.bf16.msra.mxu0 %v3352
    %3400 = vmatprep.subr.bf16.mxu0 0
    %3401 = vmatpush2.bf16.msra.mxu0 %v3367
    %3402 = vmatprep.subr.bf16.mxu0 0
    %3403 = vmatpush2.bf16.msra.mxu0 %v3366
    %3404 = vmatprep.subr.bf16.mxu0 0
    %3405 = vmatpush2.bf16.msra.mxu0 %v3365
    %3406 = vmatprep.subr.bf16.mxu0 0
    %3407 = vmatpush2.bf16.msra.mxu0 %v3364
    %3408 = vmatprep.subr.bf16.mxu0 0
    %3409 = vmatpush2.bf16.msra.mxu0 %v3363
    %3410 = vmatprep.subr.bf16.mxu0 0
    %3411 = vmatpush2.bf16.msra.mxu0 %v3362
    %3412 = vmatprep.subr.bf16.mxu0 0
    %3413 = vmatpush2.bf16.msra.mxu0 %v3361
    %3414 = vmatprep.subr.bf16.mxu0 0
    %3415 = vmatpush2.bf16.msra.mxu0 %v3360
    %3416 = vmatprep.mubr.bf16.mxu0 %v3248
    %3417 = vmatmul.mubr.bf16.gmra.mxu0 %v3247
    %v3418 = vpop.f32.mrf.mxu0
    %v3419 = vadd.f32 %v3286, %v3418
    %v3420 = vpop.f32.mrf.mxu0
    %v3421 = vpop.f32.mrf.mxu0
    %v3422 = vpop.f32.mrf.mxu0
    %3423 = vdwg.mxu0
    %v3424 = vmax.f32 %v3419, 0.0
    %v3425 = vpack.c.bf16 %v3424, %v3424
    %v3426 = vld [vmem:[#allocation12] sm:$0xff]
    %v3427 = vld [vmem:[#allocation12 + $0x8] sm:$0xf]
    %v3428 = vld [vmem:[#allocation12 + $0xc] sm:$0xff]
    %v3429 = vld [vmem:[#allocation12 + $0x14] sm:$0xf]
    %v3430 = vld [vmem:[#allocation12 + $0x18] sm:$0xff]
    %v3431 = vld [vmem:[#allocation12 + $0x20] sm:$0xf]
    %v3432 = vld [vmem:[#allocation12 + $0x24] sm:$0xff]
    %v3433 = vld [vmem:[#allocation12 + $0x2c] sm:$0xf]
    %v3434 = vld [vmem:[#allocation12 + $0x30] sm:$0xff]
    %v3435 = vld [vmem:[#allocation12 + $0x38] sm:$0xf]
    %v3436 = vld [vmem:[#allocation12 + $0x3c] sm:$0xff]
    %v3437 = vld [vmem:[#allocation12 + $0x44] sm:$0xf]
    %v3438 = vld [vmem:[#allocation12 + $0x48] sm:$0xff]
    %v3439 = vld [vmem:[#allocation12 + $0x50] sm:$0xf]
    %v3440 = vld [vmem:[#allocation12 + $0x54] sm:$0xff]
    %v3441 = vld [vmem:[#allocation12 + $0x5c] sm:$0xf]
    %v3442 = vld [vmem:[#allocation12 + $0x60] sm:$0xff]
    %v3443 = vld [vmem:[#allocation12 + $0x68] sm:$0xf]
    %v3444 = vld [vmem:[#allocation12 + $0x6c] sm:$0xff]
    %v3445 = vld [vmem:[#allocation12 + $0x74] sm:$0xf]
    %v3446 = vld [vmem:[#allocation12 + $0x78] sm:$0xff]
    %v3447 = vld [vmem:[#allocation12 + $0x80] sm:$0xf]
    %v3448 = vld [vmem:[#allocation12 + $0x84] sm:$0xff]
    %v3449 = vld [vmem:[#allocation12 + $0x8c] sm:$0xf]
    %v3450 = vld [vmem:[#allocation12 + $0x90] sm:$0xff]
    %v3451 = vld [vmem:[#allocation12 + $0x98] sm:$0xf]
    %v3452 = vld [vmem:[#allocation12 + $0x9c] sm:$0xff]
    %v3453 = vld [vmem:[#allocation12 + $0xa4] sm:$0xf]
    %v3454 = vld [vmem:[#allocation12 + $0xa8] sm:$0xff]
    %v3455 = vld [vmem:[#allocation12 + $0xb0] sm:$0xf]
    %v3456 = vld [vmem:[#allocation12 + $0xb4] sm:$0xff]
    %v3457 = vld [vmem:[#allocation12 + $0xbc] sm:$0xf]
    %v3490 = vunpack.c.l.b16 %v3426
    %v3491 = vunpack.c.h.b16 %v3426
    %v3492 = vunpack.c.l.b16 %v3427
    %v3493 = vunpack.c.l.b16 %v3428
    %v3494 = vunpack.c.h.b16 %v3428
    %v3495 = vunpack.c.l.b16 %v3429
    %v3496 = vunpack.c.l.b16 %v3430
    %v3497 = vunpack.c.h.b16 %v3430
    %v3498 = vunpack.c.l.b16 %v3431
    %v3499 = vunpack.c.l.b16 %v3432
    %v3500 = vunpack.c.h.b16 %v3432
    %v3501 = vunpack.c.l.b16 %v3433
    %v3502 = vunpack.c.l.b16 %v3434
    %v3503 = vunpack.c.h.b16 %v3434
    %v3504 = vunpack.c.l.b16 %v3435
    %v3505 = vunpack.c.l.b16 %v3436
    %v3506 = vunpack.c.h.b16 %v3436
    %v3507 = vunpack.c.l.b16 %v3437
    %v3508 = vunpack.c.l.b16 %v3438
    %v3509 = vunpack.c.h.b16 %v3438
    %v3510 = vunpack.c.l.b16 %v3439
    %v3511 = vunpack.c.l.b16 %v3440
    %v3512 = vunpack.c.h.b16 %v3440
    %v3513 = vunpack.c.l.b16 %v3441
    %v3514 = vunpack.c.l.b16 %v3442
    %v3515 = vunpack.c.h.b16 %v3442
    %v3516 = vunpack.c.l.b16 %v3443
    %v3517 = vunpack.c.l.b16 %v3444
    %v3518 = vunpack.c.h.b16 %v3444
    %v3519 = vunpack.c.l.b16 %v3445
    %v3520 = vunpack.c.l.b16 %v3446
    %v3521 = vunpack.c.h.b16 %v3446
    %v3522 = vunpack.c.l.b16 %v3447
    %v3523 = vunpack.c.l.b16 %v3448
    %v3524 = vunpack.c.h.b16 %v3448
    %v3525 = vunpack.c.l.b16 %v3449
    %v3526 = vunpack.c.l.b16 %v3450
    %v3527 = vunpack.c.h.b16 %v3450
    %v3528 = vunpack.c.l.b16 %v3451
    %v3529 = vunpack.c.l.b16 %v3452
    %v3530 = vunpack.c.h.b16 %v3452
    %v3531 = vunpack.c.l.b16 %v3453
    %v3532 = vunpack.c.l.b16 %v3454
    %v3533 = vunpack.c.h.b16 %v3454
    %v3534 = vunpack.c.l.b16 %v3455
    %v3535 = vunpack.c.l.b16 %v3456
    %v3536 = vunpack.c.h.b16 %v3456
    %v3537 = vunpack.c.l.b16 %v3457
    %v3538 = vpack.c.b16 %v3493, %v3490
    %v3539 = vpack.c.b16 %v3494, %v3491
    %v3540 = vpack.c.b16 %v3495, %v3492
    %v3541 = vpack.c.b16 %v3499, %v3496
    %v3542 = vpack.c.b16 %v3500, %v3497
    %v3543 = vpack.c.b16 %v3501, %v3498
    %v3544 = vpack.c.b16 %v3505, %v3502
    %v3545 = vpack.c.b16 %v3506, %v3503
    %v3546 = vpack.c.b16 %v3507, %v3504
    %v3547 = vpack.c.b16 %v3511, %v3508
    %v3548 = vpack.c.b16 %v3512, %v3509
    %v3549 = vpack.c.b16 %v3513, %v3510
    %v3550 = vpack.c.b16 %v3517, %v3514
    %v3551 = vpack.c.b16 %v3518, %v3515
    %v3552 = vpack.c.b16 %v3519, %v3516
    %v3553 = vpack.c.b16 %v3523, %v3520
    %v3554 = vpack.c.b16 %v3524, %v3521
    %v3555 = vpack.c.b16 %v3525, %v3522
    %v3556 = vpack.c.b16 %v3529, %v3526
    %v3557 = vpack.c.b16 %v3530, %v3527
    %v3558 = vpack.c.b16 %v3531, %v3528
    %v3559 = vpack.c.b16 %v3535, %v3532
    %v3560 = vpack.c.b16 %v3536, %v3533
    %v3561 = vpack.c.b16 %v3537, %v3534
    %3586 = vmatprep.subr.bf16.mxu0 %v3560
    %3587 = vmatpush1.bf16.msra.mxu0 %v3559
    %3588 = vmatprep.subr.bf16.mxu0 %v3557
    %3589 = vmatpush1.bf16.msra.mxu0 %v3556
    %3590 = vmatprep.subr.bf16.mxu0 %v3554
    %3591 = vmatpush1.bf16.msra.mxu0 %v3553
    %3592 = vmatprep.subr.bf16.mxu0 %v3551
    %3593 = vmatpush1.bf16.msra.mxu0 %v3550
    %3594 = vmatprep.subr.bf16.mxu0 %v3548
    %3595 = vmatpush1.bf16.msra.mxu0 %v3547
    %3596 = vmatprep.subr.bf16.mxu0 %v3545
    %3597 = vmatpush1.bf16.msra.mxu0 %v3544
    %3598 = vmatprep.subr.bf16.mxu0 %v3542
    %3599 = vmatpush1.bf16.msra.mxu0 %v3541
    %3600 = vmatprep.subr.bf16.mxu0 %v3539
    %3601 = vmatpush1.bf16.msra.mxu0 %v3538
    %3602 = vmatprep.subr.bf16.mxu0 0
    %3603 = vmatpush2.bf16.msra.mxu0 0
    %3604 = vmatprep.subr.bf16.mxu0 0
    %3605 = vmatpush2.bf16.msra.mxu0 0
    %3606 = vmatprep.subr.bf16.mxu0 0
    %3607 = vmatpush2.bf16.msra.mxu0 0
    %3608 = vmatprep.subr.bf16.mxu0 0
    %3609 = vmatpush2.bf16.msra.mxu0 0
    %3610 = vmatprep.subr.bf16.mxu0 0
    %3611 = vmatpush2.bf16.msra.mxu0 0
    %3612 = vmatprep.subr.bf16.mxu0 0
    %3613 = vmatpush2.bf16.msra.mxu0 0
    %3614 = vmatprep.subr.bf16.mxu0 0
    %3615 = vmatpush2.bf16.msra.mxu0 0
    %3616 = vmatprep.subr.bf16.mxu0 0
    %3617 = vmatpush2.bf16.msra.mxu0 0
    %3618 = vmatprep.mubr.bf16.mxu0 0
    %3619 = vmatmul.mubr.bf16.gmra.mxu0 %v3425
    %v3620 = vpop.f32.mrf.mxu0
    %v3621 = vadd.f32 0.0, %v3620
    %v3622 = vpop.f32.mrf.mxu0
    %v3623 = vadd.f32 0.0, %v3622
    %v3624 = vpop.f32.mrf.mxu0
    %v3625 = vpop.f32.mrf.mxu0
    %3626 = vdwg.mxu0
    %3627 = vmatprep.subr.bf16.mxu0 0
    %3628 = vmatpush1.bf16.msra.mxu0 %v3561
    %3629 = vmatprep.subr.bf16.mxu0 0
    %3630 = vmatpush1.bf16.msra.mxu0 %v3558
    %3631 = vmatprep.subr.bf16.mxu0 0
    %3632 = vmatpush1.bf16.msra.mxu0 %v3555
    %3633 = vmatprep.subr.bf16.mxu0 0
    %3634 = vmatpush1.bf16.msra.mxu0 %v3552
    %3635 = vmatprep.subr.bf16.mxu0 0
    %3636 = vmatpush1.bf16.msra.mxu0 %v3549
    %3637 = vmatprep.subr.bf16.mxu0 0
    %3638 = vmatpush1.bf16.msra.mxu0 %v3546
    %3639 = vmatprep.subr.bf16.mxu0 0
    %3640 = vmatpush1.bf16.msra.mxu0 %v3543
    %3641 = vmatprep.subr.bf16.mxu0 0
    %3642 = vmatpush1.bf16.msra.mxu0 %v3540
    %3643 = vmatprep.subr.bf16.mxu0 0
    %3644 = vmatpush2.bf16.msra.mxu0 0
    %3645 = vmatprep.subr.bf16.mxu0 0
    %3646 = vmatpush2.bf16.msra.mxu0 0
    %3647 = vmatprep.subr.bf16.mxu0 0
    %3648 = vmatpush2.bf16.msra.mxu0 0
    %3649 = vmatprep.subr.bf16.mxu0 0
    %3650 = vmatpush2.bf16.msra.mxu0 0
    %3651 = vmatprep.subr.bf16.mxu0 0
    %3652 = vmatpush2.bf16.msra.mxu0 0
    %3653 = vmatprep.subr.bf16.mxu0 0
    %3654 = vmatpush2.bf16.msra.mxu0 0
    %3655 = vmatprep.subr.bf16.mxu0 0
    %3656 = vmatpush2.bf16.msra.mxu0 0
    %3657 = vmatprep.subr.bf16.mxu0 0
    %3658 = vmatpush2.bf16.msra.mxu0 0
    %3659 = vmatprep.mubr.bf16.mxu0 0
    %3660 = vmatmul.mubr.bf16.gmra.mxu0 %v3425
    %v3661 = vpop.f32.mrf.mxu0
    %v3662 = vadd.f32 0.0, %v3661
    %v3663 = vpop.f32.mrf.mxu0
    %v3664 = vpop.f32.mrf.mxu0
    %v3665 = vpop.f32.mrf.mxu0
    %3666 = vdwg.mxu0
    %v3667 = vadd.f32 %v2728, %v3621
    %v3668 = vld [vmem:[#allocation13] sm:$0x1]
    %v3670 = vlaneseq
    %v3671 = vshrl.u32 %v3670, 7
    %v3672 = vsub.s32 0, %v3671
    %v3673 = vrot.slane %v3668, %v3672
    %v3675 = vadd.f32 %v3667, %v3673
    %3676 = vst [vmem:[%s12] sm:$0xff] %v3675
    %v3677 = vld [vmem:[#allocation15] sm:$0x3]
    %v3679 = vlaneseq
    %v3680 = vshrl.u32 %v3679, 7
    %v3681 = vsub.s32 0, %v3680
    %v3682 = vrot.slane %v3677, %v3681
    %v3683 = vlaneseq
    %v3684 = vshrl.u32 %v3683, 7
    %v3685 = vsub.s32 1, %v3684
    %v3686 = vrot.slane %v3677, %v3685
    %v3689 = vadd.f32 %v3623, %v3682
    %v3690 = vadd.f32 %v3662, %v3686
    %v3691 = vmax.f32 %v3689, 0.0
    %v3692 = vmax.f32 %v3690, 0.0
    %v3693 = vpack.c.bf16 %v3691, %v3691
    %v3694 = vpack.c.bf16 %v3692, %v3692
    %v3695 = vld [vmem:[#allocation16] sm:$0xff]
    %v3696 = vld [vmem:[#allocation16 + $0x8] sm:$0xff]
    %v3697 = vld [vmem:[#allocation16 + $0x10] sm:$0xff]
    %v3698 = vld [vmem:[#allocation16 + $0x18] sm:$0xff]
    %v3699 = vld [vmem:[#allocation16 + $0x20] sm:$0xff]
    %v3700 = vld [vmem:[#allocation16 + $0x28] sm:$0xff]
    %v3701 = vld [vmem:[#allocation16 + $0x30] sm:$0xff]
    %v3702 = vld [vmem:[#allocation16 + $0x38] sm:$0xff]
    %v3703 = vld [vmem:[#allocation16 + $0x40] sm:$0xff]
    %v3704 = vld [vmem:[#allocation16 + $0x48] sm:$0xff]
    %v3705 = vld [vmem:[#allocation16 + $0x50] sm:$0xff]
    %v3706 = vld [vmem:[#allocation16 + $0x58] sm:$0xff]
    %v3707 = vld [vmem:[#allocation16 + $0x60] sm:$0xff]
    %v3708 = vld [vmem:[#allocation16 + $0x68] sm:$0xff]
    %v3709 = vld [vmem:[#allocation16 + $0x70] sm:$0xff]
    %v3710 = vld [vmem:[#allocation16 + $0x78] sm:$0xff]
    %v3711 = vld [vmem:[#allocation16 + $0x80] sm:$0xff]
    %v3712 = vld [vmem:[#allocation16 + $0x88] sm:$0xff]
    %v3713 = vld [vmem:[#allocation16 + $0x90] sm:$0xff]
    %v3714 = vld [vmem:[#allocation16 + $0x98] sm:$0xff]
    %v3715 = vld [vmem:[#allocation16 + $0xa0] sm:$0xff]
    %v3716 = vld [vmem:[#allocation16 + $0xa8] sm:$0xff]
    %v3717 = vld [vmem:[#allocation16 + $0xb0] sm:$0xff]
    %v3718 = vld [vmem:[#allocation16 + $0xb8] sm:$0xff]
    %v3719 = vld [vmem:[#allocation16 + $0xc0] sm:$0xff]
    %v3720 = vld [vmem:[#allocation16 + $0xc8] sm:$0xff]
    %v3721 = vld [vmem:[#allocation16 + $0xd0] sm:$0xff]
    %v3722 = vld [vmem:[#allocation16 + $0xd8] sm:$0xff]
    %v3723 = vld [vmem:[#allocation16 + $0xe0] sm:$0xff]
    %v3724 = vld [vmem:[#allocation16 + $0xe8] sm:$0xff]
    %v3725 = vld [vmem:[#allocation16 + $0xf0] sm:$0xff]
    %v3726 = vld [vmem:[#allocation16 + $0xf8] sm:$0xff]
    %v3727 = vld [vmem:[#allocation16 + $0x100] sm:$0xff]
    %v3728 = vld [vmem:[#allocation16 + $0x108] sm:$0xff]
    %v3729 = vld [vmem:[#allocation16 + $0x110] sm:$0xff]
    %v3730 = vld [vmem:[#allocation16 + $0x118] sm:$0xff]
    %v3731 = vld [vmem:[#allocation16 + $0x120] sm:$0xff]
    %v3732 = vld [vmem:[#allocation16 + $0x128] sm:$0xff]
    %v3733 = vld [vmem:[#allocation16 + $0x130] sm:$0xff]
    %v3734 = vld [vmem:[#allocation16 + $0x138] sm:$0xff]
    %v3735 = vld [vmem:[#allocation16 + $0x140] sm:$0xff]
    %v3736 = vld [vmem:[#allocation16 + $0x148] sm:$0xff]
    %v3737 = vld [vmem:[#allocation16 + $0x150] sm:$0xff]
    %v3738 = vld [vmem:[#allocation16 + $0x158] sm:$0xff]
    %v3739 = vld [vmem:[#allocation16 + $0x160] sm:$0xff]
    %v3740 = vld [vmem:[#allocation16 + $0x168] sm:$0xff]
    %v3741 = vld [vmem:[#allocation16 + $0x170] sm:$0xff]
    %v3742 = vld [vmem:[#allocation16 + $0x178] sm:$0xff]
    %v3743 = vld [vmem:[#allocation16 + $0x180] sm:$0xff]
    %v3744 = vld [vmem:[#allocation16 + $0x188] sm:$0xff]
    %v3745 = vld [vmem:[#allocation16 + $0x190] sm:$0xff]
    %v3746 = vld [vmem:[#allocation16 + $0x198] sm:$0xff]
    %v3747 = vld [vmem:[#allocation16 + $0x1a0] sm:$0xff]
    %v3748 = vld [vmem:[#allocation16 + $0x1a8] sm:$0xff]
    %v3749 = vld [vmem:[#allocation16 + $0x1b0] sm:$0xff]
    %v3750 = vld [vmem:[#allocation16 + $0x1b8] sm:$0xff]
    %v3751 = vld [vmem:[#allocation16 + $0x1c0] sm:$0xff]
    %v3752 = vld [vmem:[#allocation16 + $0x1c8] sm:$0xff]
    %v3753 = vld [vmem:[#allocation16 + $0x1d0] sm:$0xff]
    %v3754 = vld [vmem:[#allocation16 + $0x1d8] sm:$0xff]
    %v3755 = vld [vmem:[#allocation16 + $0x1e0] sm:$0xff]
    %v3756 = vld [vmem:[#allocation16 + $0x1e8] sm:$0xff]
    %v3757 = vld [vmem:[#allocation16 + $0x1f0] sm:$0xff]
    %v3758 = vld [vmem:[#allocation16 + $0x1f8] sm:$0xff]
    %v3759 = vld [vmem:[#allocation16 + $0x200] sm:$0xff]
    %v3760 = vld [vmem:[#allocation16 + $0x208] sm:$0xff]
    %v3761 = vld [vmem:[#allocation16 + $0x210] sm:$0xff]
    %v3762 = vld [vmem:[#allocation16 + $0x218] sm:$0xff]
    %v3763 = vld [vmem:[#allocation16 + $0x220] sm:$0xff]
    %v3764 = vld [vmem:[#allocation16 + $0x228] sm:$0xff]
    %v3765 = vld [vmem:[#allocation16 + $0x230] sm:$0xff]
    %v3766 = vld [vmem:[#allocation16 + $0x238] sm:$0xff]
    %v3767 = vld [vmem:[#allocation16 + $0x240] sm:$0xff]
    %v3768 = vld [vmem:[#allocation16 + $0x248] sm:$0xff]
    %v3769 = vld [vmem:[#allocation16 + $0x250] sm:$0xff]
    %v3770 = vld [vmem:[#allocation16 + $0x258] sm:$0xff]
    %v3771 = vld [vmem:[#allocation16 + $0x260] sm:$0xff]
    %v3772 = vld [vmem:[#allocation16 + $0x268] sm:$0xff]
    %v3773 = vld [vmem:[#allocation16 + $0x270] sm:$0xff]
    %v3774 = vld [vmem:[#allocation16 + $0x278] sm:$0xff]
    %v3775 = vld [vmem:[#allocation16 + $0x280] sm:$0xff]
    %v3776 = vld [vmem:[#allocation16 + $0x288] sm:$0xff]
    %v3777 = vld [vmem:[#allocation16 + $0x290] sm:$0xff]
    %v3778 = vld [vmem:[#allocation16 + $0x298] sm:$0xff]
    %v3779 = vld [vmem:[#allocation16 + $0x2a0] sm:$0xff]
    %v3780 = vld [vmem:[#allocation16 + $0x2a8] sm:$0xff]
    %v3781 = vld [vmem:[#allocation16 + $0x2b0] sm:$0xff]
    %v3782 = vld [vmem:[#allocation16 + $0x2b8] sm:$0xff]
    %v3783 = vld [vmem:[#allocation16 + $0x2c0] sm:$0xff]
    %v3784 = vld [vmem:[#allocation16 + $0x2c8] sm:$0xff]
    %v3785 = vld [vmem:[#allocation16 + $0x2d0] sm:$0xff]
    %v3786 = vld [vmem:[#allocation16 + $0x2d8] sm:$0xff]
    %v3787 = vld [vmem:[#allocation16 + $0x2e0] sm:$0xff]
    %v3788 = vld [vmem:[#allocation16 + $0x2e8] sm:$0xff]
    %v3789 = vld [vmem:[#allocation16 + $0x2f0] sm:$0xff]
    %v3790 = vld [vmem:[#allocation16 + $0x2f8] sm:$0xff]
    %v3791 = vld [vmem:[#allocation16 + $0x300] sm:$0xff]
    %v3792 = vld [vmem:[#allocation16 + $0x308] sm:$0xff]
    %v3793 = vld [vmem:[#allocation16 + $0x310] sm:$0xff]
    %v3794 = vld [vmem:[#allocation16 + $0x318] sm:$0xff]
    %v3795 = vld [vmem:[#allocation16 + $0x320] sm:$0xff]
    %v3796 = vld [vmem:[#allocation16 + $0x328] sm:$0xff]
    %v3797 = vld [vmem:[#allocation16 + $0x330] sm:$0xff]
    %v3798 = vld [vmem:[#allocation16 + $0x338] sm:$0xff]
    %v3799 = vld [vmem:[#allocation16 + $0x340] sm:$0xff]
    %v3800 = vld [vmem:[#allocation16 + $0x348] sm:$0xff]
    %v3801 = vld [vmem:[#allocation16 + $0x350] sm:$0xff]
    %v3802 = vld [vmem:[#allocation16 + $0x358] sm:$0xff]
    %v3803 = vld [vmem:[#allocation16 + $0x360] sm:$0xff]
    %v3804 = vld [vmem:[#allocation16 + $0x368] sm:$0xff]
    %v3805 = vld [vmem:[#allocation16 + $0x370] sm:$0xff]
    %v3806 = vld [vmem:[#allocation16 + $0x378] sm:$0xff]
    %v3807 = vld [vmem:[#allocation16 + $0x380] sm:$0xff]
    %v3808 = vld [vmem:[#allocation16 + $0x388] sm:$0xff]
    %v3809 = vld [vmem:[#allocation16 + $0x390] sm:$0xff]
    %v3810 = vld [vmem:[#allocation16 + $0x398] sm:$0xff]
    %v3811 = vld [vmem:[#allocation16 + $0x3a0] sm:$0xff]
    %v3812 = vld [vmem:[#allocation16 + $0x3a8] sm:$0xff]
    %v3813 = vld [vmem:[#allocation16 + $0x3b0] sm:$0xff]
    %v3814 = vld [vmem:[#allocation16 + $0x3b8] sm:$0xff]
    %v3815 = vld [vmem:[#allocation16 + $0x3c0] sm:$0xff]
    %v3816 = vld [vmem:[#allocation16 + $0x3c8] sm:$0xff]
    %v3817 = vld [vmem:[#allocation16 + $0x3d0] sm:$0xff]
    %v3818 = vld [vmem:[#allocation16 + $0x3d8] sm:$0xff]
    %v3819 = vld [vmem:[#allocation16 + $0x3e0] sm:$0xff]
    %v3820 = vld [vmem:[#allocation16 + $0x3e8] sm:$0xff]
    %v3821 = vld [vmem:[#allocation16 + $0x3f0] sm:$0xff]
    %v3822 = vld [vmem:[#allocation16 + $0x3f8] sm:$0xff]
    %v3823 = vld [vmem:[#allocation18] sm:$0xff]
    %v3825 = vlaneseq
    %v3826 = vshrl.u32 %v3825, 7
    %v3827 = vsub.s32 0, %v3826
    %v3828 = vrot.slane %v3823, %v3827
    %v3829 = vlaneseq
    %v3830 = vshrl.u32 %v3829, 7
    %v3831 = vsub.s32 1, %v3830
    %v3832 = vrot.slane %v3823, %v3831
    %v3833 = vlaneseq
    %v3834 = vshrl.u32 %v3833, 7
    %v3835 = vsub.s32 2, %v3834
    %v3836 = vrot.slane %v3823, %v3835
    %v3837 = vlaneseq
    %v3838 = vshrl.u32 %v3837, 7
    %v3839 = vsub.s32 3, %v3838
    %v3840 = vrot.slane %v3823, %v3839
    %v3841 = vlaneseq
    %v3842 = vshrl.u32 %v3841, 7
    %v3843 = vsub.s32 4, %v3842
    %v3844 = vrot.slane %v3823, %v3843
    %v3845 = vlaneseq
    %v3846 = vshrl.u32 %v3845, 7
    %v3847 = vsub.s32 5, %v3846
    %v3848 = vrot.slane %v3823, %v3847
    %v3849 = vlaneseq
    %v3850 = vshrl.u32 %v3849, 7
    %v3851 = vsub.s32 6, %v3850
    %v3852 = vrot.slane %v3823, %v3851
    %v3853 = vlaneseq
    %v3854 = vshrl.u32 %v3853, 7
    %v3855 = vsub.s32 7, %v3854
    %v3856 = vrot.slane %v3823, %v3855
    %v3993 = vunpack.c.l.b16 %v3695
    %v3994 = vunpack.c.h.b16 %v3695
    %v3995 = vunpack.c.l.b16 %v3696
    %v3996 = vunpack.c.h.b16 %v3696
    %v3997 = vunpack.c.l.b16 %v3697
    %v3998 = vunpack.c.h.b16 %v3697
    %v3999 = vunpack.c.l.b16 %v3698
    %v4000 = vunpack.c.h.b16 %v3698
    %v4001 = vunpack.c.l.b16 %v3699
    %v4002 = vunpack.c.h.b16 %v3699
    %v4003 = vunpack.c.l.b16 %v3700
    %v4004 = vunpack.c.h.b16 %v3700
    %v4005 = vunpack.c.l.b16 %v3701
    %v4006 = vunpack.c.h.b16 %v3701
    %v4007 = vunpack.c.l.b16 %v3702
    %v4008 = vunpack.c.h.b16 %v3702
    %v4009 = vunpack.c.l.b16 %v3703
    %v4010 = vunpack.c.h.b16 %v3703
    %v4011 = vunpack.c.l.b16 %v3704
    %v4012 = vunpack.c.h.b16 %v3704
    %v4013 = vunpack.c.l.b16 %v3705
    %v4014 = vunpack.c.h.b16 %v3705
    %v4015 = vunpack.c.l.b16 %v3706
    %v4016 = vunpack.c.h.b16 %v3706
    %v4017 = vunpack.c.l.b16 %v3707
    %v4018 = vunpack.c.h.b16 %v3707
    %v4019 = vunpack.c.l.b16 %v3708
    %v4020 = vunpack.c.h.b16 %v3708
    %v4021 = vunpack.c.l.b16 %v3709
    %v4022 = vunpack.c.h.b16 %v3709
    %v4023 = vunpack.c.l.b16 %v3710
    %v4024 = vunpack.c.h.b16 %v3710
    %v4025 = vunpack.c.l.b16 %v3711
    %v4026 = vunpack.c.h.b16 %v3711
    %v4027 = vunpack.c.l.b16 %v3712
    %v4028 = vunpack.c.h.b16 %v3712
    %v4029 = vunpack.c.l.b16 %v3713
    %v4030 = vunpack.c.h.b16 %v3713
    %v4031 = vunpack.c.l.b16 %v3714
    %v4032 = vunpack.c.h.b16 %v3714
    %v4033 = vunpack.c.l.b16 %v3715
    %v4034 = vunpack.c.h.b16 %v3715
    %v4035 = vunpack.c.l.b16 %v3716
    %v4036 = vunpack.c.h.b16 %v3716
    %v4037 = vunpack.c.l.b16 %v3717
    %v4038 = vunpack.c.h.b16 %v3717
    %v4039 = vunpack.c.l.b16 %v3718
    %v4040 = vunpack.c.h.b16 %v3718
    %v4041 = vunpack.c.l.b16 %v3719
    %v4042 = vunpack.c.h.b16 %v3719
    %v4043 = vunpack.c.l.b16 %v3720
    %v4044 = vunpack.c.h.b16 %v3720
    %v4045 = vunpack.c.l.b16 %v3721
    %v4046 = vunpack.c.h.b16 %v3721
    %v4047 = vunpack.c.l.b16 %v3722
    %v4048 = vunpack.c.h.b16 %v3722
    %v4049 = vunpack.c.l.b16 %v3723
    %v4050 = vunpack.c.h.b16 %v3723
    %v4051 = vunpack.c.l.b16 %v3724
    %v4052 = vunpack.c.h.b16 %v3724
    %v4053 = vunpack.c.l.b16 %v3725
    %v4054 = vunpack.c.h.b16 %v3725
    %v4055 = vunpack.c.l.b16 %v3726
    %v4056 = vunpack.c.h.b16 %v3726
    %v4057 = vunpack.c.l.b16 %v3727
    %v4058 = vunpack.c.h.b16 %v3727
    %v4059 = vunpack.c.l.b16 %v3728
    %v4060 = vunpack.c.h.b16 %v3728
    %v4061 = vunpack.c.l.b16 %v3729
    %v4062 = vunpack.c.h.b16 %v3729
    %v4063 = vunpack.c.l.b16 %v3730
    %v4064 = vunpack.c.h.b16 %v3730
    %v4065 = vunpack.c.l.b16 %v3731
    %v4066 = vunpack.c.h.b16 %v3731
    %v4067 = vunpack.c.l.b16 %v3732
    %v4068 = vunpack.c.h.b16 %v3732
    %v4069 = vunpack.c.l.b16 %v3733
    %v4070 = vunpack.c.h.b16 %v3733
    %v4071 = vunpack.c.l.b16 %v3734
    %v4072 = vunpack.c.h.b16 %v3734
    %v4073 = vunpack.c.l.b16 %v3735
    %v4074 = vunpack.c.h.b16 %v3735
    %v4075 = vunpack.c.l.b16 %v3736
    %v4076 = vunpack.c.h.b16 %v3736
    %v4077 = vunpack.c.l.b16 %v3737
    %v4078 = vunpack.c.h.b16 %v3737
    %v4079 = vunpack.c.l.b16 %v3738
    %v4080 = vunpack.c.h.b16 %v3738
    %v4081 = vunpack.c.l.b16 %v3739
    %v4082 = vunpack.c.h.b16 %v3739
    %v4083 = vunpack.c.l.b16 %v3740
    %v4084 = vunpack.c.h.b16 %v3740
    %v4085 = vunpack.c.l.b16 %v3741
    %v4086 = vunpack.c.h.b16 %v3741
    %v4087 = vunpack.c.l.b16 %v3742
    %v4088 = vunpack.c.h.b16 %v3742
    %v4089 = vunpack.c.l.b16 %v3743
    %v4090 = vunpack.c.h.b16 %v3743
    %v4091 = vunpack.c.l.b16 %v3744
    %v4092 = vunpack.c.h.b16 %v3744
    %v4093 = vunpack.c.l.b16 %v3745
    %v4094 = vunpack.c.h.b16 %v3745
    %v4095 = vunpack.c.l.b16 %v3746
    %v4096 = vunpack.c.h.b16 %v3746
    %v4097 = vunpack.c.l.b16 %v3747
    %v4098 = vunpack.c.h.b16 %v3747
    %v4099 = vunpack.c.l.b16 %v3748
    %v4100 = vunpack.c.h.b16 %v3748
    %v4101 = vunpack.c.l.b16 %v3749
    %v4102 = vunpack.c.h.b16 %v3749
    %v4103 = vunpack.c.l.b16 %v3750
    %v4104 = vunpack.c.h.b16 %v3750
    %v4105 = vunpack.c.l.b16 %v3751
    %v4106 = vunpack.c.h.b16 %v3751
    %v4107 = vunpack.c.l.b16 %v3752
    %v4108 = vunpack.c.h.b16 %v3752
    %v4109 = vunpack.c.l.b16 %v3753
    %v4110 = vunpack.c.h.b16 %v3753
    %v4111 = vunpack.c.l.b16 %v3754
    %v4112 = vunpack.c.h.b16 %v3754
    %v4113 = vunpack.c.l.b16 %v3755
    %v4114 = vunpack.c.h.b16 %v3755
    %v4115 = vunpack.c.l.b16 %v3756
    %v4116 = vunpack.c.h.b16 %v3756
    %v4117 = vunpack.c.l.b16 %v3757
    %v4118 = vunpack.c.h.b16 %v3757
    %v4119 = vunpack.c.l.b16 %v3758
    %v4120 = vunpack.c.h.b16 %v3758
    %v4121 = vunpack.c.l.b16 %v3759
    %v4122 = vunpack.c.h.b16 %v3759
    %v4123 = vunpack.c.l.b16 %v3760
    %v4124 = vunpack.c.h.b16 %v3760
    %v4125 = vunpack.c.l.b16 %v3761
    %v4126 = vunpack.c.h.b16 %v3761
    %v4127 = vunpack.c.l.b16 %v3762
    %v4128 = vunpack.c.h.b16 %v3762
    %v4129 = vunpack.c.l.b16 %v3763
    %v4130 = vunpack.c.h.b16 %v3763
    %v4131 = vunpack.c.l.b16 %v3764
    %v4132 = vunpack.c.h.b16 %v3764
    %v4133 = vunpack.c.l.b16 %v3765
    %v4134 = vunpack.c.h.b16 %v3765
    %v4135 = vunpack.c.l.b16 %v3766
    %v4136 = vunpack.c.h.b16 %v3766
    %v4137 = vunpack.c.l.b16 %v3767
    %v4138 = vunpack.c.h.b16 %v3767
    %v4139 = vunpack.c.l.b16 %v3768
    %v4140 = vunpack.c.h.b16 %v3768
    %v4141 = vunpack.c.l.b16 %v3769
    %v4142 = vunpack.c.h.b16 %v3769
    %v4143 = vunpack.c.l.b16 %v3770
    %v4144 = vunpack.c.h.b16 %v3770
    %v4145 = vunpack.c.l.b16 %v3771
    %v4146 = vunpack.c.h.b16 %v3771
    %v4147 = vunpack.c.l.b16 %v3772
    %v4148 = vunpack.c.h.b16 %v3772
    %v4149 = vunpack.c.l.b16 %v3773
    %v4150 = vunpack.c.h.b16 %v3773
    %v4151 = vunpack.c.l.b16 %v3774
    %v4152 = vunpack.c.h.b16 %v3774
    %v4153 = vunpack.c.l.b16 %v3775
    %v4154 = vunpack.c.h.b16 %v3775
    %v4155 = vunpack.c.l.b16 %v3776
    %v4156 = vunpack.c.h.b16 %v3776
    %v4157 = vunpack.c.l.b16 %v3777
    %v4158 = vunpack.c.h.b16 %v3777
    %v4159 = vunpack.c.l.b16 %v3778
    %v4160 = vunpack.c.h.b16 %v3778
    %v4161 = vunpack.c.l.b16 %v3779
    %v4162 = vunpack.c.h.b16 %v3779
    %v4163 = vunpack.c.l.b16 %v3780
    %v4164 = vunpack.c.h.b16 %v3780
    %v4165 = vunpack.c.l.b16 %v3781
    %v4166 = vunpack.c.h.b16 %v3781
    %v4167 = vunpack.c.l.b16 %v3782
    %v4168 = vunpack.c.h.b16 %v3782
    %v4169 = vunpack.c.l.b16 %v3783
    %v4170 = vunpack.c.h.b16 %v3783
    %v4171 = vunpack.c.l.b16 %v3784
    %v4172 = vunpack.c.h.b16 %v3784
    %v4173 = vunpack.c.l.b16 %v3785
    %v4174 = vunpack.c.h.b16 %v3785
    %v4175 = vunpack.c.l.b16 %v3786
    %v4176 = vunpack.c.h.b16 %v3786
    %v4177 = vunpack.c.l.b16 %v3787
    %v4178 = vunpack.c.h.b16 %v3787
    %v4179 = vunpack.c.l.b16 %v3788
    %v4180 = vunpack.c.h.b16 %v3788
    %v4181 = vunpack.c.l.b16 %v3789
    %v4182 = vunpack.c.h.b16 %v3789
    %v4183 = vunpack.c.l.b16 %v3790
    %v4184 = vunpack.c.h.b16 %v3790
    %v4185 = vunpack.c.l.b16 %v3791
    %v4186 = vunpack.c.h.b16 %v3791
    %v4187 = vunpack.c.l.b16 %v3792
    %v4188 = vunpack.c.h.b16 %v3792
    %v4189 = vunpack.c.l.b16 %v3793
    %v4190 = vunpack.c.h.b16 %v3793
    %v4191 = vunpack.c.l.b16 %v3794
    %v4192 = vunpack.c.h.b16 %v3794
    %v4193 = vunpack.c.l.b16 %v3795
    %v4194 = vunpack.c.h.b16 %v3795
    %v4195 = vunpack.c.l.b16 %v3796
    %v4196 = vunpack.c.h.b16 %v3796
    %v4197 = vunpack.c.l.b16 %v3797
    %v4198 = vunpack.c.h.b16 %v3797
    %v4199 = vunpack.c.l.b16 %v3798
    %v4200 = vunpack.c.h.b16 %v3798
    %v4201 = vunpack.c.l.b16 %v3799
    %v4202 = vunpack.c.h.b16 %v3799
    %v4203 = vunpack.c.l.b16 %v3800
    %v4204 = vunpack.c.h.b16 %v3800
    %v4205 = vunpack.c.l.b16 %v3801
    %v4206 = vunpack.c.h.b16 %v3801
    %v4207 = vunpack.c.l.b16 %v3802
    %v4208 = vunpack.c.h.b16 %v3802
    %v4209 = vunpack.c.l.b16 %v3803
    %v4210 = vunpack.c.h.b16 %v3803
    %v4211 = vunpack.c.l.b16 %v3804
    %v4212 = vunpack.c.h.b16 %v3804
    %v4213 = vunpack.c.l.b16 %v3805
    %v4214 = vunpack.c.h.b16 %v3805
    %v4215 = vunpack.c.l.b16 %v3806
    %v4216 = vunpack.c.h.b16 %v3806
    %v4217 = vunpack.c.l.b16 %v3807
    %v4218 = vunpack.c.h.b16 %v3807
    %v4219 = vunpack.c.l.b16 %v3808
    %v4220 = vunpack.c.h.b16 %v3808
    %v4221 = vunpack.c.l.b16 %v3809
    %v4222 = vunpack.c.h.b16 %v3809
    %v4223 = vunpack.c.l.b16 %v3810
    %v4224 = vunpack.c.h.b16 %v3810
    %v4225 = vunpack.c.l.b16 %v3811
    %v4226 = vunpack.c.h.b16 %v3811
    %v4227 = vunpack.c.l.b16 %v3812
    %v4228 = vunpack.c.h.b16 %v3812
    %v4229 = vunpack.c.l.b16 %v3813
    %v4230 = vunpack.c.h.b16 %v3813
    %v4231 = vunpack.c.l.b16 %v3814
    %v4232 = vunpack.c.h.b16 %v3814
    %v4233 = vunpack.c.l.b16 %v3815
    %v4234 = vunpack.c.h.b16 %v3815
    %v4235 = vunpack.c.l.b16 %v3816
    %v4236 = vunpack.c.h.b16 %v3816
    %v4237 = vunpack.c.l.b16 %v3817
    %v4238 = vunpack.c.h.b16 %v3817
    %v4239 = vunpack.c.l.b16 %v3818
    %v4240 = vunpack.c.h.b16 %v3818
    %v4241 = vunpack.c.l.b16 %v3819
    %v4242 = vunpack.c.h.b16 %v3819
    %v4243 = vunpack.c.l.b16 %v3820
    %v4244 = vunpack.c.h.b16 %v3820
    %v4245 = vunpack.c.l.b16 %v3821
    %v4246 = vunpack.c.h.b16 %v3821
    %v4247 = vunpack.c.l.b16 %v3822
    %v4248 = vunpack.c.h.b16 %v3822
    %v4249 = vpack.c.b16 %v4001, %v3993
    %v4250 = vpack.c.b16 %v4002, %v3994
    %v4251 = vpack.c.b16 %v4003, %v3995
    %v4252 = vpack.c.b16 %v4004, %v3996
    %v4253 = vpack.c.b16 %v4005, %v3997
    %v4254 = vpack.c.b16 %v4006, %v3998
    %v4255 = vpack.c.b16 %v4007, %v3999
    %v4256 = vpack.c.b16 %v4008, %v4000
    %v4257 = vpack.c.b16 %v4017, %v4009
    %v4258 = vpack.c.b16 %v4018, %v4010
    %v4259 = vpack.c.b16 %v4019, %v4011
    %v4260 = vpack.c.b16 %v4020, %v4012
    %v4261 = vpack.c.b16 %v4021, %v4013
    %v4262 = vpack.c.b16 %v4022, %v4014
    %v4263 = vpack.c.b16 %v4023, %v4015
    %v4264 = vpack.c.b16 %v4024, %v4016
    %v4265 = vpack.c.b16 %v4033, %v4025
    %v4266 = vpack.c.b16 %v4034, %v4026
    %v4267 = vpack.c.b16 %v4035, %v4027
    %v4268 = vpack.c.b16 %v4036, %v4028
    %v4269 = vpack.c.b16 %v4037, %v4029
    %v4270 = vpack.c.b16 %v4038, %v4030
    %v4271 = vpack.c.b16 %v4039, %v4031
    %v4272 = vpack.c.b16 %v4040, %v4032
    %v4273 = vpack.c.b16 %v4049, %v4041
    %v4274 = vpack.c.b16 %v4050, %v4042
    %v4275 = vpack.c.b16 %v4051, %v4043
    %v4276 = vpack.c.b16 %v4052, %v4044
    %v4277 = vpack.c.b16 %v4053, %v4045
    %v4278 = vpack.c.b16 %v4054, %v4046
    %v4279 = vpack.c.b16 %v4055, %v4047
    %v4280 = vpack.c.b16 %v4056, %v4048
    %v4281 = vpack.c.b16 %v4065, %v4057
    %v4282 = vpack.c.b16 %v4066, %v4058
    %v4283 = vpack.c.b16 %v4067, %v4059
    %v4284 = vpack.c.b16 %v4068, %v4060
    %v4285 = vpack.c.b16 %v4069, %v4061
    %v4286 = vpack.c.b16 %v4070, %v4062
    %v4287 = vpack.c.b16 %v4071, %v4063
    %v4288 = vpack.c.b16 %v4072, %v4064
    %v4289 = vpack.c.b16 %v4081, %v4073
    %v4290 = vpack.c.b16 %v4082, %v4074
    %v4291 = vpack.c.b16 %v4083, %v4075
    %v4292 = vpack.c.b16 %v4084, %v4076
    %v4293 = vpack.c.b16 %v4085, %v4077
    %v4294 = vpack.c.b16 %v4086, %v4078
    %v4295 = vpack.c.b16 %v4087, %v4079
    %v4296 = vpack.c.b16 %v4088, %v4080
    %v4297 = vpack.c.b16 %v4097, %v4089
    %v4298 = vpack.c.b16 %v4098, %v4090
    %v4299 = vpack.c.b16 %v4099, %v4091
    %v4300 = vpack.c.b16 %v4100, %v4092
    %v4301 = vpack.c.b16 %v4101, %v4093
    %v4302 = vpack.c.b16 %v4102, %v4094
    %v4303 = vpack.c.b16 %v4103, %v4095
    %v4304 = vpack.c.b16 %v4104, %v4096
    %v4305 = vpack.c.b16 %v4113, %v4105
    %v4306 = vpack.c.b16 %v4114, %v4106
    %v4307 = vpack.c.b16 %v4115, %v4107
    %v4308 = vpack.c.b16 %v4116, %v4108
    %v4309 = vpack.c.b16 %v4117, %v4109
    %v4310 = vpack.c.b16 %v4118, %v4110
    %v4311 = vpack.c.b16 %v4119, %v4111
    %v4312 = vpack.c.b16 %v4120, %v4112
    %v4313 = vpack.c.b16 %v4129, %v4121
    %v4314 = vpack.c.b16 %v4130, %v4122
    %v4315 = vpack.c.b16 %v4131, %v4123
    %v4316 = vpack.c.b16 %v4132, %v4124
    %v4317 = vpack.c.b16 %v4133, %v4125
    %v4318 = vpack.c.b16 %v4134, %v4126
    %v4319 = vpack.c.b16 %v4135, %v4127
    %v4320 = vpack.c.b16 %v4136, %v4128
    %v4321 = vpack.c.b16 %v4145, %v4137
    %v4322 = vpack.c.b16 %v4146, %v4138
    %v4323 = vpack.c.b16 %v4147, %v4139
    %v4324 = vpack.c.b16 %v4148, %v4140
    %v4325 = vpack.c.b16 %v4149, %v4141
    %v4326 = vpack.c.b16 %v4150, %v4142
    %v4327 = vpack.c.b16 %v4151, %v4143
    %v4328 = vpack.c.b16 %v4152, %v4144
    %v4329 = vpack.c.b16 %v4161, %v4153
    %v4330 = vpack.c.b16 %v4162, %v4154
    %v4331 = vpack.c.b16 %v4163, %v4155
    %v4332 = vpack.c.b16 %v4164, %v4156
    %v4333 = vpack.c.b16 %v4165, %v4157
    %v4334 = vpack.c.b16 %v4166, %v4158
    %v4335 = vpack.c.b16 %v4167, %v4159
    %v4336 = vpack.c.b16 %v4168, %v4160
    %v4337 = vpack.c.b16 %v4177, %v4169
    %v4338 = vpack.c.b16 %v4178, %v4170
    %v4339 = vpack.c.b16 %v4179, %v4171
    %v4340 = vpack.c.b16 %v4180, %v4172
    %v4341 = vpack.c.b16 %v4181, %v4173
    %v4342 = vpack.c.b16 %v4182, %v4174
    %v4343 = vpack.c.b16 %v4183, %v4175
    %v4344 = vpack.c.b16 %v4184, %v4176
    %v4345 = vpack.c.b16 %v4193, %v4185
    %v4346 = vpack.c.b16 %v4194, %v4186
    %v4347 = vpack.c.b16 %v4195, %v4187
    %v4348 = vpack.c.b16 %v4196, %v4188
    %v4349 = vpack.c.b16 %v4197, %v4189
    %v4350 = vpack.c.b16 %v4198, %v4190
    %v4351 = vpack.c.b16 %v4199, %v4191
    %v4352 = vpack.c.b16 %v4200, %v4192
    %v4353 = vpack.c.b16 %v4209, %v4201
    %v4354 = vpack.c.b16 %v4210, %v4202
    %v4355 = vpack.c.b16 %v4211, %v4203
    %v4356 = vpack.c.b16 %v4212, %v4204
    %v4357 = vpack.c.b16 %v4213, %v4205
    %v4358 = vpack.c.b16 %v4214, %v4206
    %v4359 = vpack.c.b16 %v4215, %v4207
    %v4360 = vpack.c.b16 %v4216, %v4208
    %v4361 = vpack.c.b16 %v4225, %v4217
    %v4362 = vpack.c.b16 %v4226, %v4218
    %v4363 = vpack.c.b16 %v4227, %v4219
    %v4364 = vpack.c.b16 %v4228, %v4220
    %v4365 = vpack.c.b16 %v4229, %v4221
    %v4366 = vpack.c.b16 %v4230, %v4222
    %v4367 = vpack.c.b16 %v4231, %v4223
    %v4368 = vpack.c.b16 %v4232, %v4224
    %v4369 = vpack.c.b16 %v4241, %v4233
    %v4370 = vpack.c.b16 %v4242, %v4234
    %v4371 = vpack.c.b16 %v4243, %v4235
    %v4372 = vpack.c.b16 %v4244, %v4236
    %v4373 = vpack.c.b16 %v4245, %v4237
    %v4374 = vpack.c.b16 %v4246, %v4238
    %v4375 = vpack.c.b16 %v4247, %v4239
    %v4376 = vpack.c.b16 %v4248, %v4240
    %4505 = vmatprep.subr.bf16.mxu0 %v4306
    %4506 = vmatpush1.bf16.msra.mxu0 %v4305
    %4507 = vmatprep.subr.bf16.mxu0 %v4298
    %4508 = vmatpush1.bf16.msra.mxu0 %v4297
    %4509 = vmatprep.subr.bf16.mxu0 %v4290
    %4510 = vmatpush1.bf16.msra.mxu0 %v4289
    %4511 = vmatprep.subr.bf16.mxu0 %v4282
    %4512 = vmatpush1.bf16.msra.mxu0 %v4281
    %4513 = vmatprep.subr.bf16.mxu0 %v4274
    %4514 = vmatpush1.bf16.msra.mxu0 %v4273
    %4515 = vmatprep.subr.bf16.mxu0 %v4266
    %4516 = vmatpush1.bf16.msra.mxu0 %v4265
    %4517 = vmatprep.subr.bf16.mxu0 %v4258
    %4518 = vmatpush1.bf16.msra.mxu0 %v4257
    %4519 = vmatprep.subr.bf16.mxu0 %v4250
    %4520 = vmatpush1.bf16.msra.mxu0 %v4249
    %4521 = vmatprep.subr.bf16.mxu0 %v4370
    %4522 = vmatpush2.bf16.msra.mxu0 %v4369
    %4523 = vmatprep.subr.bf16.mxu0 %v4362
    %4524 = vmatpush2.bf16.msra.mxu0 %v4361
    %4525 = vmatprep.subr.bf16.mxu0 %v4354
    %4526 = vmatpush2.bf16.msra.mxu0 %v4353
    %4527 = vmatprep.subr.bf16.mxu0 %v4346
    %4528 = vmatpush2.bf16.msra.mxu0 %v4345
    %4529 = vmatprep.subr.bf16.mxu0 %v4338
    %4530 = vmatpush2.bf16.msra.mxu0 %v4337
    %4531 = vmatprep.subr.bf16.mxu0 %v4330
    %4532 = vmatpush2.bf16.msra.mxu0 %v4329
    %4533 = vmatprep.subr.bf16.mxu0 %v4322
    %4534 = vmatpush2.bf16.msra.mxu0 %v4321
    %4535 = vmatprep.subr.bf16.mxu0 %v4314
    %4536 = vmatpush2.bf16.msra.mxu0 %v4313
    %4537 = vmatprep.mubr.bf16.mxu0 %v3694
    %4538 = vmatmul.mubr.bf16.gmra.mxu0 %v3693
    %v4539 = vpop.f32.mrf.mxu0
    %v4540 = vadd.f32 %v3828, %v4539
    %v4541 = vpop.f32.mrf.mxu0
    %v4542 = vadd.f32 %v3832, %v4541
    %v4543 = vpop.f32.mrf.mxu0
    %v4544 = vpop.f32.mrf.mxu0
    %4545 = vdwg.mxu0
    %4546 = vmatprep.subr.bf16.mxu0 %v4308
    %4547 = vmatpush1.bf16.msra.mxu0 %v4307
    %4548 = vmatprep.subr.bf16.mxu0 %v4300
    %4549 = vmatpush1.bf16.msra.mxu0 %v4299
    %4550 = vmatprep.subr.bf16.mxu0 %v4292
    %4551 = vmatpush1.bf16.msra.mxu0 %v4291
    %4552 = vmatprep.subr.bf16.mxu0 %v4284
    %4553 = vmatpush1.bf16.msra.mxu0 %v4283
    %4554 = vmatprep.subr.bf16.mxu0 %v4276
    %4555 = vmatpush1.bf16.msra.mxu0 %v4275
    %4556 = vmatprep.subr.bf16.mxu0 %v4268
    %4557 = vmatpush1.bf16.msra.mxu0 %v4267
    %4558 = vmatprep.subr.bf16.mxu0 %v4260
    %4559 = vmatpush1.bf16.msra.mxu0 %v4259
    %4560 = vmatprep.subr.bf16.mxu0 %v4252
    %4561 = vmatpush1.bf16.msra.mxu0 %v4251
    %4562 = vmatprep.subr.bf16.mxu0 %v4372
    %4563 = vmatpush2.bf16.msra.mxu0 %v4371
    %4564 = vmatprep.subr.bf16.mxu0 %v4364
    %4565 = vmatpush2.bf16.msra.mxu0 %v4363
    %4566 = vmatprep.subr.bf16.mxu0 %v4356
    %4567 = vmatpush2.bf16.msra.mxu0 %v4355
    %4568 = vmatprep.subr.bf16.mxu0 %v4348
    %4569 = vmatpush2.bf16.msra.mxu0 %v4347
    %4570 = vmatprep.subr.bf16.mxu0 %v4340
    %4571 = vmatpush2.bf16.msra.mxu0 %v4339
    %4572 = vmatprep.subr.bf16.mxu0 %v4332
    %4573 = vmatpush2.bf16.msra.mxu0 %v4331
    %4574 = vmatprep.subr.bf16.mxu0 %v4324
    %4575 = vmatpush2.bf16.msra.mxu0 %v4323
    %4576 = vmatprep.subr.bf16.mxu0 %v4316
    %4577 = vmatpush2.bf16.msra.mxu0 %v4315
    %4578 = vmatprep.mubr.bf16.mxu0 %v3694
    %4579 = vmatmul.mubr.bf16.gmra.mxu0 %v3693
    %v4580 = vpop.f32.mrf.mxu0
    %v4581 = vadd.f32 %v3836, %v4580
    %v4582 = vpop.f32.mrf.mxu0
    %v4583 = vadd.f32 %v3840, %v4582
    %v4584 = vpop.f32.mrf.mxu0
    %v4585 = vpop.f32.mrf.mxu0
    %4586 = vdwg.mxu0
    %4587 = vmatprep.subr.bf16.mxu0 %v4310
    %4588 = vmatpush1.bf16.msra.mxu0 %v4309
    %4589 = vmatprep.subr.bf16.mxu0 %v4302
    %4590 = vmatpush1.bf16.msra.mxu0 %v4301
    %4591 = vmatprep.subr.bf16.mxu0 %v4294
    %4592 = vmatpush1.bf16.msra.mxu0 %v4293
    %4593 = vmatprep.subr.bf16.mxu0 %v4286
    %4594 = vmatpush1.bf16.msra.mxu0 %v4285
    %4595 = vmatprep.subr.bf16.mxu0 %v4278
    %4596 = vmatpush1.bf16.msra.mxu0 %v4277
    %4597 = vmatprep.subr.bf16.mxu0 %v4270
    %4598 = vmatpush1.bf16.msra.mxu0 %v4269
    %4599 = vmatprep.subr.bf16.mxu0 %v4262
    %4600 = vmatpush1.bf16.msra.mxu0 %v4261
    %4601 = vmatprep.subr.bf16.mxu0 %v4254
    %4602 = vmatpush1.bf16.msra.mxu0 %v4253
    %4603 = vmatprep.subr.bf16.mxu0 %v4374
    %4604 = vmatpush2.bf16.msra.mxu0 %v4373
    %4605 = vmatprep.subr.bf16.mxu0 %v4366
    %4606 = vmatpush2.bf16.msra.mxu0 %v4365
    %4607 = vmatprep.subr.bf16.mxu0 %v4358
    %4608 = vmatpush2.bf16.msra.mxu0 %v4357
    %4609 = vmatprep.subr.bf16.mxu0 %v4350
    %4610 = vmatpush2.bf16.msra.mxu0 %v4349
    %4611 = vmatprep.subr.bf16.mxu0 %v4342
    %4612 = vmatpush2.bf16.msra.mxu0 %v4341
    %4613 = vmatprep.subr.bf16.mxu0 %v4334
    %4614 = vmatpush2.bf16.msra.mxu0 %v4333
    %4615 = vmatprep.subr.bf16.mxu0 %v4326
    %4616 = vmatpush2.bf16.msra.mxu0 %v4325
    %4617 = vmatprep.subr.bf16.mxu0 %v4318
    %4618 = vmatpush2.bf16.msra.mxu0 %v4317
    %4619 = vmatprep.mubr.bf16.mxu0 %v3694
    %4620 = vmatmul.mubr.bf16.gmra.mxu0 %v3693
    %v4621 = vpop.f32.mrf.mxu0
    %v4622 = vadd.f32 %v3844, %v4621
    %v4623 = vpop.f32.mrf.mxu0
    %v4624 = vadd.f32 %v3848, %v4623
    %v4625 = vpop.f32.mrf.mxu0
    %v4626 = vpop.f32.mrf.mxu0
    %4627 = vdwg.mxu0
    %4628 = vmatprep.subr.bf16.mxu0 %v4312
    %4629 = vmatpush1.bf16.msra.mxu0 %v4311
    %4630 = vmatprep.subr.bf16.mxu0 %v4304
    %4631 = vmatpush1.bf16.msra.mxu0 %v4303
    %4632 = vmatprep.subr.bf16.mxu0 %v4296
    %4633 = vmatpush1.bf16.msra.mxu0 %v4295
    %4634 = vmatprep.subr.bf16.mxu0 %v4288
    %4635 = vmatpush1.bf16.msra.mxu0 %v4287
    %4636 = vmatprep.subr.bf16.mxu0 %v4280
    %4637 = vmatpush1.bf16.msra.mxu0 %v4279
    %4638 = vmatprep.subr.bf16.mxu0 %v4272
    %4639 = vmatpush1.bf16.msra.mxu0 %v4271
    %4640 = vmatprep.subr.bf16.mxu0 %v4264
    %4641 = vmatpush1.bf16.msra.mxu0 %v4263
    %4642 = vmatprep.subr.bf16.mxu0 %v4256
    %4643 = vmatpush1.bf16.msra.mxu0 %v4255
    %4644 = vmatprep.subr.bf16.mxu0 %v4376
    %4645 = vmatpush2.bf16.msra.mxu0 %v4375
    %4646 = vmatprep.subr.bf16.mxu0 %v4368
    %4647 = vmatpush2.bf16.msra.mxu0 %v4367
    %4648 = vmatprep.subr.bf16.mxu0 %v4360
    %4649 = vmatpush2.bf16.msra.mxu0 %v4359
    %4650 = vmatprep.subr.bf16.mxu0 %v4352
    %4651 = vmatpush2.bf16.msra.mxu0 %v4351
    %4652 = vmatprep.subr.bf16.mxu0 %v4344
    %4653 = vmatpush2.bf16.msra.mxu0 %v4343
    %4654 = vmatprep.subr.bf16.mxu0 %v4336
    %4655 = vmatpush2.bf16.msra.mxu0 %v4335
    %4656 = vmatprep.subr.bf16.mxu0 %v4328
    %4657 = vmatpush2.bf16.msra.mxu0 %v4327
    %4658 = vmatprep.subr.bf16.mxu0 %v4320
    %4659 = vmatpush2.bf16.msra.mxu0 %v4319
    %4660 = vmatprep.mubr.bf16.mxu0 %v3694
    %4661 = vmatmul.mubr.bf16.gmra.mxu0 %v3693
    %v4662 = vpop.f32.mrf.mxu0
    %v4663 = vadd.f32 %v3852, %v4662
    %v4664 = vpop.f32.mrf.mxu0
    %v4665 = vadd.f32 %v3856, %v4664
    %v4666 = vpop.f32.mrf.mxu0
    %v4667 = vpop.f32.mrf.mxu0
    %4668 = vdwg.mxu0
    %4669 = vst [vmem:[%s13] sm:$0xff] %v4540
    %4670 = vst [vmem:[%s13 + $0x8] sm:$0xff] %v4542
    %4671 = vst [vmem:[%s13 + $0x10] sm:$0xff] %v4581
    %4672 = vst [vmem:[%s13 + $0x18] sm:$0xff] %v4583
    %4673 = vst [vmem:[%s13 + $0x20] sm:$0xff] %v4622
    %4674 = vst [vmem:[%s13 + $0x28] sm:$0xff] %v4624
    %4675 = vst [vmem:[%s13 + $0x30] sm:$0xff] %v4663
    %4676 = vst [vmem:[%s13 + $0x38] sm:$0xff] %v4665
    // Predicated region
    $region94: #{lcn100plain_forward.1} parent=1 // pred_check
      _
    $region95: #{lcn100plain_forward.1} parent=1 // pred_check_branch
      %4678 = sbr.rel (0) target = $region97
    $region96: #{lcn100plain_forward.1} parent=1 // pred_region
      _
    $region97: #{lcn100plain_forward.1} parent=1 // pred_fallthru
      _
    // Predicated region
    $region98: #{lcn100plain_forward.1} parent=1 // pred_check
      _
    $region99: #{lcn100plain_forward.1} parent=1 // pred_check_branch
      %4680 = sbr.rel (0) target = $region101
    $region100: #{lcn100plain_forward.1} parent=1 // pred_region
      _
    $region101: #{lcn100plain_forward.1} parent=1 // pred_fallthru
      _
    // Predicated region
    $region102: #{lcn100plain_forward.1} parent=1 // pred_check
      _
    $region103: #{lcn100plain_forward.1} parent=1 // pred_check_branch
      %4682 = sbr.rel (0) target = $region105
    $region104: #{lcn100plain_forward.1} parent=1 // pred_region
      _
    $region105: #{lcn100plain_forward.1} parent=1 // pred_fallthru
      _
    // Predicated region
    $region106: #{lcn100plain_forward.1} parent=1 // pred_check
      _
    $region107: #{lcn100plain_forward.1} parent=1 // pred_check_branch
      %4684 = sbr.rel (0) target = $region109
    $region108: #{lcn100plain_forward.1} parent=1 // pred_region
      _
    $region109: #{lcn100plain_forward.1} parent=1 // pred_fallthru
      _
    %4685 = vsyncpa [#allocation3], 1
    %4686 = vsyncpa [#allocation5], 1
    %4687 = vsyncpa [#allocation8], 1
    %4688 = vsyncpa [#allocation11], 1
    %4689 = vsyncpa [#allocation14], 1
    %4690 = vsyncpa [#allocation17], 1

</llo_original>
